<compile_context>
chip_gen: v5e
topology: v5e:2x2
jax: 0.10.0
libtpu: 0.0.40
codegen_flags: <defaults>
</compile_context>

<pallas_src>
import functools

import jax
import jax.numpy as jnp
from jax.experimental import pallas as pl
from jax.experimental.pallas import tpu as pltpu

F_ENC = 6
D_IN = 3 + 3 * 2 * F_ENC        # 39
H1 = 256                        # layer1/layer2 width
H2 = 128                        # layer4 width
D_OUT = 4                       # [rgb(3), sigma(1)]
H4EXT = H2 + D_OUT              # 132: layer4a fused with the sigma head


def _tpu_pre_v6():
    """True for v5e and older (no bf16 VALU, 1 vst slot)."""
    try:
        kind = jax.devices()[0].device_kind.lower()
    except Exception:
        return False
    return any(t in kind for t in ("v2", "v3", "v4", "v5"))


def _epilogue_dtype():
    # bf16 bias+relu epilogues only on v6e/v7x; keep f32 on older chips.
    return jnp.float32 if _tpu_pre_v6() else jnp.bfloat16


def _round_up(a, m):
    return (a + m - 1) // m * m


def nerf_kernel(x_ref, d_ref,
                w1_ref, b1_ref,
                w2_ref, b2_ref,
                w4a_ext_ref, w4b_ref, b4_ref,
                wo_h4_ref, bo_ref,
                out_ref):
    def bias_relu(acc_f32, b_ref):
        # Epilogue dtype follows the bias dtype (bf16 on v6e/v7x, f32 on v5e).
        h = acc_f32.astype(b_ref.dtype) + b_ref[...]
        return jnp.maximum(h, 0).astype(jnp.bfloat16)

    x = x_ref[...]                                     # (tm, 39)  bf16
    d = d_ref[...]                                     # (tm, 39)  bf16

    # layer1 + relu (f32 MXU accumulate)
    h = jnp.dot(x, w1_ref[...], preferred_element_type=jnp.float32)
    h = bias_relu(h, b1_ref)                           # (tm, 256) bf16

    # layer2 + relu
    h = jnp.dot(h, w2_ref[...], preferred_element_type=jnp.float32)
    h = bias_relu(h, b2_ref)                           # (tm, 256) bf16

    # layer4a fused with sigma head: h @ [W4a | 0 0 0 w3]  -> (tm, 132)
    t = jnp.dot(h, w4a_ext_ref[...], preferred_element_type=jnp.float32)
    h4_pre = t[:, :H2]                                 # (tm, 128) f32
    sigma_part = t[:, H2:]                             # (tm, 4)   f32 (col 3 = h@w3)

    # layer4 on concat([h, d]) == h @ W4a + d @ W4b  (no concat materialized)
    h4 = h4_pre + jnp.dot(d, w4b_ref[...], preferred_element_type=jnp.float32)
    h4 = bias_relu(h4, b4_ref)                         # (tm, 128) bf16

    # Output head: cols 0..2 <- layer5(h4) = rgb, col 3 <- sigma (from t).
    out = (jnp.dot(h4, wo_h4_ref[...], preferred_element_type=jnp.float32)
           + sigma_part + bo_ref[...])
    out_ref[...] = out.astype(out_ref.dtype)           # (tm, 4)


def nerf_forward(x, d, params, *, tm=None):
    """x, d: (N, 39).  params: output of prepare_params().  Returns (N, 4) f32."""
    (w1, b1, w2, b2, w4a_ext, w4b, b4, wo_h4, bo) = params
    N = x.shape[0]

    if tm is None:
        # v5e has a single vst slot -> keep strip-mined f32 intermediates smaller.
        tm = 2048 if _tpu_pre_v6() else 4096
    # Keep at least 2 grid blocks so v7x's 2 TensorCores both get work.
    if N > 8:
        tm = min(tm, _round_up(pl.cdiv(N, 2), 8))
    tm = max(tm, 8)

    n_blocks = pl.cdiv(N, tm)
    n_pad = n_blocks * tm

    # Cast to bf16 BEFORE padding: halves the wrapper-side copy traffic.
    x = x.astype(jnp.bfloat16)
    d = d.astype(jnp.bfloat16)
    if n_pad != N:
        x = jnp.pad(x, ((0, n_pad - N), (0, 0)))
        d = jnp.pad(d, ((0, n_pad - N), (0, 0)))

    def full_spec(arr):
        nd = arr.ndim
        return pl.BlockSpec(arr.shape, lambda i, _nd=nd: (0,) * _nd)

    flops = 2 * n_pad * (D_IN * H1 + H1 * H1 + H1 * H4EXT + D_IN * H2
                         + H2 * D_OUT)
    bytes_accessed = (x.size * x.dtype.itemsize + d.size * d.dtype.itemsize
                      + n_pad * D_OUT * 4
                      + sum(int(p.size) * p.dtype.itemsize for p in params))

    out = pl.pallas_call(
        nerf_kernel,
        out_shape=jax.ShapeDtypeStruct((n_pad, D_OUT), jnp.float32),
        grid_spec=pltpu.PrefetchScalarGridSpec(
            num_scalar_prefetch=0,
            grid=(n_blocks,),
            in_specs=[
                pl.BlockSpec((tm, D_IN), lambda i: (i, 0)),   # x tile
                pl.BlockSpec((tm, D_IN), lambda i: (i, 0)),   # d tile
                full_spec(w1), full_spec(b1),
                full_spec(w2), full_spec(b2),
                full_spec(w4a_ext), full_spec(w4b), full_spec(b4),
                full_spec(wo_h4), full_spec(bo),
            ],
            # (tm, 4) store is lane-sparse but amortized by the large tm.
            out_specs=pl.BlockSpec((tm, D_OUT), lambda i: (i, 0)),
        ),
        compiler_params=pltpu.CompilerParams(
            dimension_semantics=("parallel",),        # shards across v7x's 2 TCs
            vmem_limit_bytes=48 * 1024 * 1024),       # fits v7x's 64 MiB VMEM
        cost_estimate=pl.CostEstimate(flops=flops, transcendentals=0,
                                      bytes_accessed=bytes_accessed),
    )(x, d, w1, b1, w2, b2, w4a_ext, w4b, b4, wo_h4, bo)
    return out[:N]


def init_params(key):
    """PyTorch-style f32 params (shapes match the nn.Module)."""
    ks = jax.random.split(key, 5)

    def lin(k, fan_in, fan_out):
        kw, kb = jax.random.split(k)
        scale = 1.0 / jnp.sqrt(fan_in)
        w = jax.random.uniform(kw, (fan_in, fan_out), jnp.float32, -scale, scale)
        b = jax.random.uniform(kb, (1, fan_out), jnp.float32, -scale, scale)
        return w, b

    w1, b1 = lin(ks[0], D_IN, H1)                  # layer1: 39 -> 256
    w2, b2 = lin(ks[1], H1, H1)                    # layer2: 256 -> 256
    w3, b3 = lin(ks[2], H1, 1)                     # layer3: 256 -> 1
    w4, b4 = lin(ks[3], H1 + D_IN, H2)             # layer4: 295 -> 128
    w5, b5 = lin(ks[4], H2, 3)                     # layer5: 128 -> 3
    return (w1, b1, w2, b2, w3, b3, w4, b4, w5, b5)


def prepare_params(raw, *, ep_dtype=jnp.float32):
    """Split W4 for the concat, fuse sigma head into W4a, cast to bf16.

    ep_dtype controls the bias / epilogue dtype (bf16 on v6e/v7x, f32 on v5e).
    """
    (w1, b1, w2, b2, w3, b3, w4, b4, w5, b5) = raw
    w4a, w4b = w4[:H1], w4[H1:]                                   # concat split
    # Sigma head fused into layer4a:  [W4a | 0 0 0 w3]  -> (256, 132)
    wo_h = jnp.concatenate([jnp.zeros((H1, 3), jnp.float32), w3], axis=1)
    w4a_ext = jnp.concatenate([w4a, wo_h], axis=1)                # (256, 132)
    wo_h4 = jnp.concatenate([w5, jnp.zeros((H2, 1), jnp.float32)], axis=1)  # (128, 4)
    bo = jnp.concatenate([b5, b3], axis=1)                        # (1, 4)  f32
    bf = lambda a: a.astype(jnp.bfloat16)
    ep = lambda a: a.astype(ep_dtype)
    # bo stays f32: it is added to the f32 output accumulator.
    return (bf(w1), ep(b1), bf(w2), ep(b2), bf(w4a_ext), bf(w4b), ep(b4),
            bf(wo_h4), bo)


def nerf_reference(x, d, raw):
    (w1, b1, w2, b2, w3, b3, w4, b4, w5, b5) = raw
    h = jax.nn.relu(x @ w1 + b1)
    h = jax.nn.relu(h @ w2 + b2)
    sigma = h @ w3 + b3
    cat = jnp.concatenate([h, d], axis=-1)
    h4 = jax.nn.relu(cat @ w4 + b4)
    rgb = h4 @ w5 + b5
    return jnp.concatenate([rgb, sigma], axis=1)


if __name__ == "__main__":
    key = jax.random.PRNGKey(0)
    kx, kd, kp = jax.random.split(key, 3)

    N = 1000  # not a multiple of tm -> exercises padding + multi-block path
    x = jax.random.normal(kx, (N, D_IN), jnp.float32)   # encoded positions
    d = jax.random.normal(kd, (N, D_IN), jnp.float32)   # encoded view dirs

    raw = init_params(kp)
    params = prepare_params(raw, ep_dtype=_epilogue_dtype())

    out = nerf_forward(x, d, params)
    out = jax.block_until_ready(out)

    ref = nerf_reference(x, d, raw)
    assert out.shape == (N, 4)
    max_err = float(jnp.max(jnp.abs(out - ref)))
    # bf16 matmuls (+ bf16 epilogues on v6e/v7x) with f32 accumulation.
    assert max_err < 6e-2, f"max abs err {max_err}"

    print("KERNEL_OK")
</pallas_src>

<mosaic_0001>
module attributes {stable_mosaic.version = 11 : i64} {
  func.func @nerf_kernel(%arg0: i32, %arg1: memref<504x39xbf16, #tpu.memory_space<vmem>>, %arg2: memref<504x39xbf16, #tpu.memory_space<vmem>>, %arg3: memref<39x256xbf16, #tpu.memory_space<vmem>>, %arg4: memref<1x256xbf16, #tpu.memory_space<vmem>>, %arg5: memref<256x256xbf16, #tpu.memory_space<vmem>>, %arg6: memref<1x256xbf16, #tpu.memory_space<vmem>>, %arg7: memref<256x132xbf16, #tpu.memory_space<vmem>>, %arg8: memref<39x128xbf16, #tpu.memory_space<vmem>>, %arg9: memref<1x128xbf16, #tpu.memory_space<vmem>>, %arg10: memref<128x4xbf16, #tpu.memory_space<vmem>>, %arg11: memref<1x4xf32, #tpu.memory_space<vmem>>, %arg12: memref<504x4xf32, #tpu.memory_space<vmem>>) attributes {dimension_semantics = [#tpu.dimension_semantics<parallel>], iteration_bounds = array<i64: 2>, scalar_prefetch = 0 : i64, scratch_operands = 0 : i64, tpu.core_type = #tpu.core_type<tc>, window_params = [{transform_indices = @transform_0, window_bounds = array<i64: 504, 39>}, {transform_indices = @transform_1, window_bounds = array<i64: 504, 39>}, {pipeline_mode = #tpu.pipeline_mode<synchronous>, transform_indices = @transform_2, window_bounds = array<i64: 39, 256>}, {pipeline_mode = #tpu.pipeline_mode<synchronous>, transform_indices = @transform_3, window_bounds = array<i64: 1, 256>}, {pipeline_mode = #tpu.pipeline_mode<synchronous>, transform_indices = @transform_4, window_bounds = array<i64: 256, 256>}, {pipeline_mode = #tpu.pipeline_mode<synchronous>, transform_indices = @transform_5, window_bounds = array<i64: 1, 256>}, {pipeline_mode = #tpu.pipeline_mode<synchronous>, transform_indices = @transform_6, window_bounds = array<i64: 256, 132>}, {pipeline_mode = #tpu.pipeline_mode<synchronous>, transform_indices = @transform_7, window_bounds = array<i64: 39, 128>}, {pipeline_mode = #tpu.pipeline_mode<synchronous>, transform_indices = @transform_8, window_bounds = array<i64: 1, 128>}, {pipeline_mode = #tpu.pipeline_mode<synchronous>, transform_indices = @transform_9, window_bounds = array<i64: 128, 4>}, {pipeline_mode = #tpu.pipeline_mode<synchronous>, transform_indices = @transform_10, window_bounds = array<i64: 1, 4>}, {transform_indices = @transform_11, window_bounds = array<i64: 504, 4>}]} {
    %c0 = arith.constant 0 : index
    %c0_0 = arith.constant 0 : index
    %0 = vector.load %arg1[%c0, %c0_0] : memref<504x39xbf16, #tpu.memory_space<vmem>>, vector<504x39xbf16>
    %c0_1 = arith.constant 0 : index
    %c0_2 = arith.constant 0 : index
    %1 = vector.load %arg2[%c0_1, %c0_2] : memref<504x39xbf16, #tpu.memory_space<vmem>>, vector<504x39xbf16>
    %c0_3 = arith.constant 0 : index
    %c0_4 = arith.constant 0 : index
    %2 = vector.load %arg3[%c0_3, %c0_4] : memref<39x256xbf16, #tpu.memory_space<vmem>>, vector<39x256xbf16>
    %cst = arith.constant dense<0.000000e+00> : vector<504x256xf32>
    %3 = tpu.matmul %0, %2, %cst {dimension_numbers = #tpu.dot_dimension_numbers<[1], [0], [0], [1], [0, 0, 1, 1], [], []>} : vector<504x39xbf16>, vector<39x256xbf16>, vector<504x256xf32> -> vector<504x256xf32>
    %4 = arith.truncf %3 : vector<504x256xf32> to vector<504x256xbf16>
    %c0_5 = arith.constant 0 : index
    %c0_6 = arith.constant 0 : index
    %5 = vector.load %arg4[%c0_5, %c0_6] : memref<1x256xbf16, #tpu.memory_space<vmem>>, vector<1x256xbf16>
    %6 = vector.broadcast %5 : vector<1x256xbf16> to vector<504x256xbf16>
    %7 = arith.addf %4, %6 : vector<504x256xbf16>
    %cst_7 = arith.constant 0.000000e+00 : bf16
    %8 = vector.broadcast %cst_7 : bf16 to vector<504x256xbf16>
    %9 = arith.maximumf %7, %8 : vector<504x256xbf16>
    %c0_8 = arith.constant 0 : index
    %c0_9 = arith.constant 0 : index
    %10 = vector.load %arg5[%c0_8, %c0_9] : memref<256x256xbf16, #tpu.memory_space<vmem>>, vector<256x256xbf16>
    %cst_10 = arith.constant dense<0.000000e+00> : vector<504x256xf32>
    %11 = tpu.matmul %9, %10, %cst_10 {dimension_numbers = #tpu.dot_dimension_numbers<[1], [0], [0], [1], [0, 0, 1, 1], [], []>} : vector<504x256xbf16>, vector<256x256xbf16>, vector<504x256xf32> -> vector<504x256xf32>
    %12 = arith.truncf %11 : vector<504x256xf32> to vector<504x256xbf16>
    %c0_11 = arith.constant 0 : index
    %c0_12 = arith.constant 0 : index
    %13 = vector.load %arg6[%c0_11, %c0_12] : memref<1x256xbf16, #tpu.memory_space<vmem>>, vector<1x256xbf16>
    %14 = vector.broadcast %13 : vector<1x256xbf16> to vector<504x256xbf16>
    %15 = arith.addf %12, %14 : vector<504x256xbf16>
    %cst_13 = arith.constant 0.000000e+00 : bf16
    %16 = vector.broadcast %cst_13 : bf16 to vector<504x256xbf16>
    %17 = arith.maximumf %15, %16 : vector<504x256xbf16>
    %c0_14 = arith.constant 0 : index
    %c0_15 = arith.constant 0 : index
    %18 = vector.load %arg7[%c0_14, %c0_15] : memref<256x132xbf16, #tpu.memory_space<vmem>>, vector<256x132xbf16>
    %cst_16 = arith.constant dense<0.000000e+00> : vector<504x132xf32>
    %19 = tpu.matmul %17, %18, %cst_16 {dimension_numbers = #tpu.dot_dimension_numbers<[1], [0], [0], [1], [0, 0, 1, 1], [], []>} : vector<504x256xbf16>, vector<256x132xbf16>, vector<504x132xf32> -> vector<504x132xf32>
    %20 = vector.extract_strided_slice %19 {offsets = [0, 0], sizes = [504, 128], strides = [1, 1]} : vector<504x132xf32> to vector<504x128xf32>
    %21 = vector.extract_strided_slice %19 {offsets = [0, 128], sizes = [504, 4], strides = [1, 1]} : vector<504x132xf32> to vector<504x4xf32>
    %c0_17 = arith.constant 0 : index
    %c0_18 = arith.constant 0 : index
    %22 = vector.load %arg8[%c0_17, %c0_18] : memref<39x128xbf16, #tpu.memory_space<vmem>>, vector<39x128xbf16>
    %cst_19 = arith.constant dense<0.000000e+00> : vector<504x128xf32>
    %23 = tpu.matmul %1, %22, %cst_19 {dimension_numbers = #tpu.dot_dimension_numbers<[1], [0], [0], [1], [0, 0, 1, 1], [], []>} : vector<504x39xbf16>, vector<39x128xbf16>, vector<504x128xf32> -> vector<504x128xf32>
    %24 = arith.addf %20, %23 : vector<504x128xf32>
    %25 = arith.truncf %24 : vector<504x128xf32> to vector<504x128xbf16>
    %c0_20 = arith.constant 0 : index
    %c0_21 = arith.constant 0 : index
    %26 = vector.load %arg9[%c0_20, %c0_21] : memref<1x128xbf16, #tpu.memory_space<vmem>>, vector<1x128xbf16>
    %27 = vector.broadcast %26 : vector<1x128xbf16> to vector<504x128xbf16>
    %28 = arith.addf %25, %27 : vector<504x128xbf16>
    %cst_22 = arith.constant 0.000000e+00 : bf16
    %29 = vector.broadcast %cst_22 : bf16 to vector<504x128xbf16>
    %30 = arith.maximumf %28, %29 : vector<504x128xbf16>
    %c0_23 = arith.constant 0 : index
    %c0_24 = arith.constant 0 : index
    %31 = vector.load %arg10[%c0_23, %c0_24] : memref<128x4xbf16, #tpu.memory_space<vmem>>, vector<128x4xbf16>
    %cst_25 = arith.constant dense<0.000000e+00> : vector<504x4xf32>
    %32 = tpu.matmul %30, %31, %cst_25 {dimension_numbers = #tpu.dot_dimension_numbers<[1], [0], [0], [1], [0, 0, 1, 1], [], []>} : vector<504x128xbf16>, vector<128x4xbf16>, vector<504x4xf32> -> vector<504x4xf32>
    %33 = arith.addf %32, %21 : vector<504x4xf32>
    %c0_26 = arith.constant 0 : index
    %c0_27 = arith.constant 0 : index
    %34 = vector.load %arg11[%c0_26, %c0_27] : memref<1x4xf32, #tpu.memory_space<vmem>>, vector<1x4xf32>
    %35 = vector.broadcast %34 : vector<1x4xf32> to vector<504x4xf32>
    %36 = arith.addf %33, %35 : vector<504x4xf32>
    %c0_28 = arith.constant 0 : index
    %c0_29 = arith.constant 0 : index
    %37 = vector.load %arg12[%c0_28, %c0_29] : memref<504x4xf32, #tpu.memory_space<vmem>>, vector<504x4xf32>
    tpu.vector_store %arg12[%c0_28, %c0_29], %36 {strides = array<i32>} : memref<504x4xf32, #tpu.memory_space<vmem>>, vector<504x4xf32>,
    return
  }
  func.func @transform_0(%arg0: i32) -> (i32, i32) {
    %c0_i32 = arith.constant 0 : i32
    %c0_i32_0 = arith.constant 0 : i32
    return %arg0, %c0_i32 : i32, i32
  }
  func.func @transform_1(%arg0: i32) -> (i32, i32) {
    %c0_i32 = arith.constant 0 : i32
    %c0_i32_0 = arith.constant 0 : i32
    return %arg0, %c0_i32 : i32, i32
  }
  func.func @transform_2(%arg0: i32) -> (i32, i32) {
    %c0_i32 = arith.constant 0 : i32
    %c0_i32_0 = arith.constant 0 : i32
    %c0_i32_1 = arith.constant 0 : i32
    return %c0_i32, %c0_i32_0 : i32, i32
  }
  func.func @transform_3(%arg0: i32) -> (i32, i32) {
    %c0_i32 = arith.constant 0 : i32
    %c0_i32_0 = arith.constant 0 : i32
    %c0_i32_1 = arith.constant 0 : i32
    return %c0_i32, %c0_i32_0 : i32, i32
  }
  func.func @transform_4(%arg0: i32) -> (i32, i32) {
    %c0_i32 = arith.constant 0 : i32
    %c0_i32_0 = arith.constant 0 : i32
    %c0_i32_1 = arith.constant 0 : i32
    return %c0_i32, %c0_i32_0 : i32, i32
  }
  func.func @transform_5(%arg0: i32) -> (i32, i32) {
    %c0_i32 = arith.constant 0 : i32
    %c0_i32_0 = arith.constant 0 : i32
    %c0_i32_1 = arith.constant 0 : i32
    return %c0_i32, %c0_i32_0 : i32, i32
  }
  func.func @transform_6(%arg0: i32) -> (i32, i32) {
    %c0_i32 = arith.constant 0 : i32
    %c0_i32_0 = arith.constant 0 : i32
    %c0_i32_1 = arith.constant 0 : i32
    return %c0_i32, %c0_i32_0 : i32, i32
  }
  func.func @transform_7(%arg0: i32) -> (i32, i32) {
    %c0_i32 = arith.constant 0 : i32
    %c0_i32_0 = arith.constant 0 : i32
    %c0_i32_1 = arith.constant 0 : i32
    return %c0_i32, %c0_i32_0 : i32, i32
  }
  func.func @transform_8(%arg0: i32) -> (i32, i32) {
    %c0_i32 = arith.constant 0 : i32
    %c0_i32_0 = arith.constant 0 : i32
    %c0_i32_1 = arith.constant 0 : i32
    return %c0_i32, %c0_i32_0 : i32, i32
  }
  func.func @transform_9(%arg0: i32) -> (i32, i32) {
    %c0_i32 = arith.constant 0 : i32
    %c0_i32_0 = arith.constant 0 : i32
    %c0_i32_1 = arith.constant 0 : i32
    return %c0_i32, %c0_i32_0 : i32, i32
  }
  func.func @transform_10(%arg0: i32) -> (i32, i32) {
    %c0_i32 = arith.constant 0 : i32
    %c0_i32_0 = arith.constant 0 : i32
    %c0_i32_1 = arith.constant 0 : i32
    return %c0_i32, %c0_i32_0 : i32, i32
  }
  func.func @transform_11(%arg0: i32) -> (i32, i32) {
    %c0_i32 = arith.constant 0 : i32
    %c0_i32_0 = arith.constant 0 : i32
    return %arg0, %c0_i32 : i32, i32
  }
}

</mosaic_0001>

<llo_original>
// kernel: tpu_custom_call.1
$region0: #{tpu_custom_call.1}
  #allocation0 [shape = 'u32[]', space=smem, size = 0x4, offset = 0x4, fixed_abs, tag = 'smem constant byte address 0x4 - core index']
  #allocation1 [shape = 'u32[72,128]{1,0:T(1,128)}', space=vmem, size = 0x9000, scoped, tag = 'internal scratch']
  %s0 = inlined_call_operand.vmem [shape: bf16[1008,39], index: 0, kind: input, shape index: {}]
  %s1 = inlined_call_operand.vmem [shape: bf16[1008,39], index: 1, kind: input, shape index: {}]
  %s2 = inlined_call_operand.vmem [shape: bf16[39,256], index: 2, kind: input, shape index: {}]
  %s3 = inlined_call_operand.vmem [shape: bf16[1,256], index: 3, kind: input, shape index: {}]
  %s4 = inlined_call_operand.vmem [shape: bf16[256,256], index: 4, kind: input, shape index: {}]
  %s5 = inlined_call_operand.vmem [shape: bf16[1,256], index: 5, kind: input, shape index: {}]
  %s6 = inlined_call_operand.vmem [shape: bf16[256,132], index: 6, kind: input, shape index: {}]
  %s7 = inlined_call_operand.vmem [shape: bf16[39,128], index: 7, kind: input, shape index: {}]
  %s8 = inlined_call_operand.vmem [shape: bf16[1,128], index: 8, kind: input, shape index: {}]
  %s9 = inlined_call_operand.vmem [shape: bf16[128,4], index: 9, kind: input, shape index: {}]
  %s10 = inlined_call_operand.vmem [shape: f32[1,4], index: 10, kind: input, shape index: {}]
  %s11 = inlined_call_operand.vmem [shape: f32[1008,4], index: 11, kind: output, shape index: {}]
  %s12 = sld [smem:[#allocation0]]
  $region77: #{tpu_custom_call.1} parent=0
    _
  %s14 = ssub.s32 1, %s12
  %s15 = scalar_select 0, %s14, %s12
  loop: start=0, step=1, limit=4
  $region2: #{tpu_custom_call.1} parent=0 // loop_pre_header
    _
  $region3: #{tpu_custom_call.1} parent=0 // loop_header
    %s17 = sphi 0, %s21
    %p18 = scmp.ge.s32.totalorder %s17, 4
    %s27 = sphi 0, %s29
    %s30 = sphi 0, %s27
    %s31 = sphi 0, %s30
    %s47 = sphi 0, %s31
    %s53 = sphi 0, %s55
    %s56 = sphi 0, %s53
    %s57 = sphi 0, %s56
    %s73 = sphi 0, %s57
    %s77 = sphi 0, %s77
    %s79 = sphi 0, %s77
    %s80 = sphi 0, %s79
    %s94 = sphi 0, %s80
    %s98 = sphi 0, %s98
    %s100 = sphi 0, %s98
    %s101 = sphi 0, %s100
    %s115 = sphi 0, %s101
    %s119 = sphi 0, %s119
    %s121 = sphi 0, %s119
    %s122 = sphi 0, %s121
    %s136 = sphi 0, %s122
    %s140 = sphi 0, %s140
    %s142 = sphi 0, %s140
    %s143 = sphi 0, %s142
    %s157 = sphi 0, %s143
    %s161 = sphi 0, %s161
    %s163 = sphi 0, %s161
    %s164 = sphi 0, %s163
    %s178 = sphi 0, %s164
    %s182 = sphi 0, %s182
    %s184 = sphi 0, %s182
    %s185 = sphi 0, %s184
    %s199 = sphi 0, %s185
    %s203 = sphi 0, %s203
    %s205 = sphi 0, %s203
    %s206 = sphi 0, %s205
    %s220 = sphi 0, %s206
    %s224 = sphi 0, %s224
    %s226 = sphi 0, %s224
    %s227 = sphi 0, %s226
    %s241 = sphi 0, %s227
    %s245 = sphi 0, %s245
    %s247 = sphi 0, %s245
    %s248 = sphi 0, %s247
    %s262 = sphi 0, %s248
    %s268 = sphi 0, %s270
    %s271 = sphi 0, %s268
    %s272 = sphi 0, %s271
    %s288 = sphi 0, %s272
  $region4: #{tpu_custom_call.1} parent=0 // loop_header_branch
    %20 = sbr.rel (%p18) target = $region8
  $region5: #{tpu_custom_call.1} parent=0 // loop_body
    %s22 = ssub.s32 %s17, 1
    %s23 = ssub.s32 %s17, 2
    %s24 = sadd.s32 %s17, 1
    %s25 = ssub.s32 %s17, %s24
    %p26 = scmp.eq.s32.totalorder %s25, 0
    %s28 = sadd.s32 %s27, 1
    %s29 = scalar_select %p26, %s27, %s28
    %p32 = pneg %p26
    %p33 = scmp.eq.s32.totalorder %s17, 1
    %p34 = por %p32, %p33
    %p35 = scmp.ne.s32.totalorder %s27, %s30
    %p36 = scmp.eq.s32.totalorder %s17, 0
    %p37 = por %p35, %p36
    %p38 = scmp.ne.s32.totalorder %s27, %s30
    %p39 = scmp.eq.s32.totalorder %s22, 1
    %p40 = por %p38, %p39
    %p41 = scmp.ne.s32.totalorder %s30, %s31
    %p42 = scmp.eq.s32.totalorder %s22, 0
    %p43 = por %p41, %p42
    %p44 = scmp.ne.s32.totalorder %s30, %s31
    %p45 = scmp.eq.s32.totalorder %s23, 1
    %p46 = por %p44, %p45
    %p48 = scmp.ne.s32.totalorder %s31, %s47
    %p49 = scmp.eq.s32.totalorder %s23, 0
    %p50 = por %p48, %p49
    %s51 = ssub.s32 %s17, %s24
    %p52 = scmp.eq.s32.totalorder %s51, 0
    %s54 = sadd.s32 %s53, 1
    %s55 = scalar_select %p52, %s53, %s54
    %p58 = pneg %p52
    %p59 = scmp.eq.s32.totalorder %s17, 1
    %p60 = por %p58, %p59
    %p61 = scmp.ne.s32.totalorder %s53, %s56
    %p62 = scmp.eq.s32.totalorder %s17, 0
    %p63 = por %p61, %p62
    %p64 = scmp.ne.s32.totalorder %s53, %s56
    %p65 = scmp.eq.s32.totalorder %s22, 1
    %p66 = por %p64, %p65
    %p67 = scmp.ne.s32.totalorder %s56, %s57
    %p68 = scmp.eq.s32.totalorder %s22, 0
    %p69 = por %p67, %p68
    %p70 = scmp.ne.s32.totalorder %s56, %s57
    %p71 = scmp.eq.s32.totalorder %s23, 1
    %p72 = por %p70, %p71
    %p74 = scmp.ne.s32.totalorder %s57, %s73
    %p75 = scmp.eq.s32.totalorder %s23, 0
    %p76 = por %p74, %p75
    %s78 = sadd.s32 %s77, 1
    %p81 = scmp.eq.s32.totalorder %s17, 1
    %p82 = scmp.ne.s32.totalorder %s77, %s79
    %p83 = scmp.eq.s32.totalorder %s17, 0
    %p84 = por %p82, %p83
    %p85 = scmp.ne.s32.totalorder %s77, %s79
    %p86 = scmp.eq.s32.totalorder %s22, 1
    %p87 = por %p85, %p86
    %p88 = scmp.ne.s32.totalorder %s79, %s80
    %p89 = scmp.eq.s32.totalorder %s22, 0
    %p90 = por %p88, %p89
    %p91 = scmp.ne.s32.totalorder %s79, %s80
    %p92 = scmp.eq.s32.totalorder %s23, 1
    %p93 = por %p91, %p92
    %p95 = scmp.ne.s32.totalorder %s80, %s94
    %p96 = scmp.eq.s32.totalorder %s23, 0
    %p97 = por %p95, %p96
    %s99 = sadd.s32 %s98, 1
    %p102 = scmp.eq.s32.totalorder %s17, 1
    %p103 = scmp.ne.s32.totalorder %s98, %s100
    %p104 = scmp.eq.s32.totalorder %s17, 0
    %p105 = por %p103, %p104
    %p106 = scmp.ne.s32.totalorder %s98, %s100
    %p107 = scmp.eq.s32.totalorder %s22, 1
    %p108 = por %p106, %p107
    %p109 = scmp.ne.s32.totalorder %s100, %s101
    %p110 = scmp.eq.s32.totalorder %s22, 0
    %p111 = por %p109, %p110
    %p112 = scmp.ne.s32.totalorder %s100, %s101
    %p113 = scmp.eq.s32.totalorder %s23, 1
    %p114 = por %p112, %p113
    %p116 = scmp.ne.s32.totalorder %s101, %s115
    %p117 = scmp.eq.s32.totalorder %s23, 0
    %p118 = por %p116, %p117
    %s120 = sadd.s32 %s119, 1
    %p123 = scmp.eq.s32.totalorder %s17, 1
    %p124 = scmp.ne.s32.totalorder %s119, %s121
    %p125 = scmp.eq.s32.totalorder %s17, 0
    %p126 = por %p124, %p125
    %p127 = scmp.ne.s32.totalorder %s119, %s121
    %p128 = scmp.eq.s32.totalorder %s22, 1
    %p129 = por %p127, %p128
    %p130 = scmp.ne.s32.totalorder %s121, %s122
    %p131 = scmp.eq.s32.totalorder %s22, 0
    %p132 = por %p130, %p131
    %p133 = scmp.ne.s32.totalorder %s121, %s122
    %p134 = scmp.eq.s32.totalorder %s23, 1
    %p135 = por %p133, %p134
    %p137 = scmp.ne.s32.totalorder %s122, %s136
    %p138 = scmp.eq.s32.totalorder %s23, 0
    %p139 = por %p137, %p138
    %s141 = sadd.s32 %s140, 1
    %p144 = scmp.eq.s32.totalorder %s17, 1
    %p145 = scmp.ne.s32.totalorder %s140, %s142
    %p146 = scmp.eq.s32.totalorder %s17, 0
    %p147 = por %p145, %p146
    %p148 = scmp.ne.s32.totalorder %s140, %s142
    %p149 = scmp.eq.s32.totalorder %s22, 1
    %p150 = por %p148, %p149
    %p151 = scmp.ne.s32.totalorder %s142, %s143
    %p152 = scmp.eq.s32.totalorder %s22, 0
    %p153 = por %p151, %p152
    %p154 = scmp.ne.s32.totalorder %s142, %s143
    %p155 = scmp.eq.s32.totalorder %s23, 1
    %p156 = por %p154, %p155
    %p158 = scmp.ne.s32.totalorder %s143, %s157
    %p159 = scmp.eq.s32.totalorder %s23, 0
    %p160 = por %p158, %p159
    %s162 = sadd.s32 %s161, 1
    %p165 = scmp.eq.s32.totalorder %s17, 1
    %p166 = scmp.ne.s32.totalorder %s161, %s163
    %p167 = scmp.eq.s32.totalorder %s17, 0
    %p168 = por %p166, %p167
    %p169 = scmp.ne.s32.totalorder %s161, %s163
    %p170 = scmp.eq.s32.totalorder %s22, 1
    %p171 = por %p169, %p170
    %p172 = scmp.ne.s32.totalorder %s163, %s164
    %p173 = scmp.eq.s32.totalorder %s22, 0
    %p174 = por %p172, %p173
    %p175 = scmp.ne.s32.totalorder %s163, %s164
    %p176 = scmp.eq.s32.totalorder %s23, 1
    %p177 = por %p175, %p176
    %p179 = scmp.ne.s32.totalorder %s164, %s178
    %p180 = scmp.eq.s32.totalorder %s23, 0
    %p181 = por %p179, %p180
    %s183 = sadd.s32 %s182, 1
    %p186 = scmp.eq.s32.totalorder %s17, 1
    %p187 = scmp.ne.s32.totalorder %s182, %s184
    %p188 = scmp.eq.s32.totalorder %s17, 0
    %p189 = por %p187, %p188
    %p190 = scmp.ne.s32.totalorder %s182, %s184
    %p191 = scmp.eq.s32.totalorder %s22, 1
    %p192 = por %p190, %p191
    %p193 = scmp.ne.s32.totalorder %s184, %s185
    %p194 = scmp.eq.s32.totalorder %s22, 0
    %p195 = por %p193, %p194
    %p196 = scmp.ne.s32.totalorder %s184, %s185
    %p197 = scmp.eq.s32.totalorder %s23, 1
    %p198 = por %p196, %p197
    %p200 = scmp.ne.s32.totalorder %s185, %s199
    %p201 = scmp.eq.s32.totalorder %s23, 0
    %p202 = por %p200, %p201
    %s204 = sadd.s32 %s203, 1
    %p207 = scmp.eq.s32.totalorder %s17, 1
    %p208 = scmp.ne.s32.totalorder %s203, %s205
    %p209 = scmp.eq.s32.totalorder %s17, 0
    %p210 = por %p208, %p209
    %p211 = scmp.ne.s32.totalorder %s203, %s205
    %p212 = scmp.eq.s32.totalorder %s22, 1
    %p213 = por %p211, %p212
    %p214 = scmp.ne.s32.totalorder %s205, %s206
    %p215 = scmp.eq.s32.totalorder %s22, 0
    %p216 = por %p214, %p215
    %p217 = scmp.ne.s32.totalorder %s205, %s206
    %p218 = scmp.eq.s32.totalorder %s23, 1
    %p219 = por %p217, %p218
    %p221 = scmp.ne.s32.totalorder %s206, %s220
    %p222 = scmp.eq.s32.totalorder %s23, 0
    %p223 = por %p221, %p222
    %s225 = sadd.s32 %s224, 1
    %p228 = scmp.eq.s32.totalorder %s17, 1
    %p229 = scmp.ne.s32.totalorder %s224, %s226
    %p230 = scmp.eq.s32.totalorder %s17, 0
    %p231 = por %p229, %p230
    %p232 = scmp.ne.s32.totalorder %s224, %s226
    %p233 = scmp.eq.s32.totalorder %s22, 1
    %p234 = por %p232, %p233
    %p235 = scmp.ne.s32.totalorder %s226, %s227
    %p236 = scmp.eq.s32.totalorder %s22, 0
    %p237 = por %p235, %p236
    %p238 = scmp.ne.s32.totalorder %s226, %s227
    %p239 = scmp.eq.s32.totalorder %s23, 1
    %p240 = por %p238, %p239
    %p242 = scmp.ne.s32.totalorder %s227, %s241
    %p243 = scmp.eq.s32.totalorder %s23, 0
    %p244 = por %p242, %p243
    %s246 = sadd.s32 %s245, 1
    %p249 = scmp.eq.s32.totalorder %s17, 1
    %p250 = scmp.ne.s32.totalorder %s245, %s247
    %p251 = scmp.eq.s32.totalorder %s17, 0
    %p252 = por %p250, %p251
    %p253 = scmp.ne.s32.totalorder %s245, %s247
    %p254 = scmp.eq.s32.totalorder %s22, 1
    %p255 = por %p253, %p254
    %p256 = scmp.ne.s32.totalorder %s247, %s248
    %p257 = scmp.eq.s32.totalorder %s22, 0
    %p258 = por %p256, %p257
    %p259 = scmp.ne.s32.totalorder %s247, %s248
    %p260 = scmp.eq.s32.totalorder %s23, 1
    %p261 = por %p259, %p260
    %p263 = scmp.ne.s32.totalorder %s248, %s262
    %p264 = scmp.eq.s32.totalorder %s23, 0
    %p265 = por %p263, %p264
    %s266 = ssub.s32 %s17, %s24
    %p267 = scmp.eq.s32.totalorder %s266, 0
    %s269 = sadd.s32 %s268, 1
    %s270 = scalar_select %p267, %s268, %s269
    %p273 = pneg %p267
    %p274 = scmp.eq.s32.totalorder %s17, 1
    %p275 = por %p273, %p274
    %p276 = scmp.ne.s32.totalorder %s268, %s271
    %p277 = scmp.eq.s32.totalorder %s17, 0
    %p278 = por %p276, %p277
    %p279 = scmp.ne.s32.totalorder %s268, %s271
    %p280 = scmp.eq.s32.totalorder %s22, 1
    %p281 = por %p279, %p280
    %p282 = scmp.ne.s32.totalorder %s271, %s272
    %p283 = scmp.eq.s32.totalorder %s22, 0
    %p284 = por %p282, %p283
    %p285 = scmp.ne.s32.totalorder %s271, %s272
    %p286 = scmp.eq.s32.totalorder %s23, 1
    %p287 = por %p285, %p286
    %p289 = scmp.ne.s32.totalorder %s272, %s288
    %p290 = scmp.eq.s32.totalorder %s23, 0
    %p291 = por %p289, %p290
    %p292 = scmp.le.s32.totalorder 1, %s17
    %p293 = scmp.lt.s32.totalorder %s17, 3
    %p294 = pnand %p292, %p293
    %p295 = pneg %p294
    // Predicated region
    $region9: #{tpu_custom_call.1} parent=5 // pred_check
      _
    $region10: #{tpu_custom_call.1} parent=5 // pred_check_branch
      %297 = sbr.rel (%p294) target = $region12
    $region11: #{tpu_custom_call.1} parent=5 // pred_region
      %s298 = ssub.s32 %s17, 1
      // Predicated region
      $region13: #{tpu_custom_call.1} parent=11 // pred_check
        %p299 = pneg %p90
      $region14: #{tpu_custom_call.1} parent=11 // pred_check_branch
        %301 = sbr.rel (%p299) target = $region16
      $region15: #{tpu_custom_call.1} parent=11 // pred_region
        _
      $region16: #{tpu_custom_call.1} parent=11 // pred_fallthru
        _
      // Predicated region
      $region17: #{tpu_custom_call.1} parent=11 // pred_check
        %p302 = pneg %p111
      $region18: #{tpu_custom_call.1} parent=11 // pred_check_branch
        %304 = sbr.rel (%p302) target = $region20
      $region19: #{tpu_custom_call.1} parent=11 // pred_region
        _
      $region20: #{tpu_custom_call.1} parent=11 // pred_fallthru
        _
      // Predicated region
      $region21: #{tpu_custom_call.1} parent=11 // pred_check
        %p305 = pneg %p132
      $region22: #{tpu_custom_call.1} parent=11 // pred_check_branch
        %307 = sbr.rel (%p305) target = $region24
      $region23: #{tpu_custom_call.1} parent=11 // pred_region
        _
      $region24: #{tpu_custom_call.1} parent=11 // pred_fallthru
        _
      // Predicated region
      $region25: #{tpu_custom_call.1} parent=11 // pred_check
        %p308 = pneg %p153
      $region26: #{tpu_custom_call.1} parent=11 // pred_check_branch
        %310 = sbr.rel (%p308) target = $region28
      $region27: #{tpu_custom_call.1} parent=11 // pred_region
        _
      $region28: #{tpu_custom_call.1} parent=11 // pred_fallthru
        _
      // Predicated region
      $region29: #{tpu_custom_call.1} parent=11 // pred_check
        %p311 = pneg %p174
      $region30: #{tpu_custom_call.1} parent=11 // pred_check_branch
        %313 = sbr.rel (%p311) target = $region32
      $region31: #{tpu_custom_call.1} parent=11 // pred_region
        _
      $region32: #{tpu_custom_call.1} parent=11 // pred_fallthru
        _
      // Predicated region
      $region33: #{tpu_custom_call.1} parent=11 // pred_check
        %p314 = pneg %p195
      $region34: #{tpu_custom_call.1} parent=11 // pred_check_branch
        %316 = sbr.rel (%p314) target = $region36
      $region35: #{tpu_custom_call.1} parent=11 // pred_region
        _
      $region36: #{tpu_custom_call.1} parent=11 // pred_fallthru
        _
      // Predicated region
      $region37: #{tpu_custom_call.1} parent=11 // pred_check
        %p317 = pneg %p216
      $region38: #{tpu_custom_call.1} parent=11 // pred_check_branch
        %319 = sbr.rel (%p317) target = $region40
      $region39: #{tpu_custom_call.1} parent=11 // pred_region
        _
      $region40: #{tpu_custom_call.1} parent=11 // pred_fallthru
        _
      // Predicated region
      $region41: #{tpu_custom_call.1} parent=11 // pred_check
        %p320 = pneg %p237
      $region42: #{tpu_custom_call.1} parent=11 // pred_check_branch
        %322 = sbr.rel (%p320) target = $region44
      $region43: #{tpu_custom_call.1} parent=11 // pred_region
        _
      $region44: #{tpu_custom_call.1} parent=11 // pred_fallthru
        _
      // Predicated region
      $region45: #{tpu_custom_call.1} parent=11 // pred_check
        %p323 = pneg %p258
      $region46: #{tpu_custom_call.1} parent=11 // pred_check_branch
        %325 = sbr.rel (%p323) target = $region48
      $region47: #{tpu_custom_call.1} parent=11 // pred_region
        _
      $region48: #{tpu_custom_call.1} parent=11 // pred_fallthru
        _
    $region12: #{tpu_custom_call.1} parent=5 // pred_fallthru
      _
    %p326 = scmp.lt.s32.totalorder %s17, 2
    // Predicated region
    $region49: #{tpu_custom_call.1} parent=5 // pred_check
      %p327 = pneg %p326
    $region50: #{tpu_custom_call.1} parent=5 // pred_check_branch
      %329 = sbr.rel (%p327) target = $region52
    $region51: #{tpu_custom_call.1} parent=5 // pred_region
      // Predicated region
      $region53: #{tpu_custom_call.1} parent=51 // pred_check
        %p330 = pneg %p37
      $region54: #{tpu_custom_call.1} parent=51 // pred_check_branch
        %332 = sbr.rel (%p330) target = $region56
      $region55: #{tpu_custom_call.1} parent=51 // pred_region
        %s333 = smul.u32 63, %s17
        %p334 = scmp.lt.s32.totalorder %s333, 125
        %s335 = scalar_select %p334, %s333, 125
        %s336 = smul.addr %s335, 4
        %s337 = scalar_lea.vmem %s0, %s336
        %s338 = smul.u32 63, %s17
      $region56: #{tpu_custom_call.1} parent=51 // pred_fallthru
        _
      // Predicated region
      $region57: #{tpu_custom_call.1} parent=51 // pred_check
        %p339 = pneg %p63
      $region58: #{tpu_custom_call.1} parent=51 // pred_check_branch
        %341 = sbr.rel (%p339) target = $region60
      $region59: #{tpu_custom_call.1} parent=51 // pred_region
        %s342 = smul.u32 63, %s17
        %p343 = scmp.lt.s32.totalorder %s342, 125
        %s344 = scalar_select %p343, %s342, 125
        %s345 = smul.addr %s344, 4
        %s346 = scalar_lea.vmem %s1, %s345
        %s347 = smul.u32 63, %s17
      $region60: #{tpu_custom_call.1} parent=51 // pred_fallthru
        _
    $region52: #{tpu_custom_call.1} parent=5 // pred_fallthru
      _
    %p348 = scmp.le.s32.totalorder 1, %s17
    %p349 = scmp.lt.s32.totalorder %s17, 3
    %p350 = pnand %p348, %p349
    %p351 = pneg %p350
    // Predicated region
    $region61: #{tpu_custom_call.1} parent=5 // pred_check
      _
    $region62: #{tpu_custom_call.1} parent=5 // pred_check_branch
      %353 = sbr.rel (%p350) target = $region64
    $region63: #{tpu_custom_call.1} parent=5 // pred_region
      %s354 = ssub.s32 %s17, 1
      %s355 = smul.u32 63, %s22
      %p356 = scmp.lt.s32.totalorder %s355, 125
      %s357 = scalar_select %p356, %s355, 125
      %s358 = smul.addr %s357, 4
      %s359 = scalar_lea.vmem %s0, %s358
      %p360 = pneg %p43
      %p361 = pneg %p40
      %s362 = smul.u32 63, %s22
      %p363 = scmp.lt.s32.totalorder %s362, 125
      %s364 = scalar_select %p363, %s362, 125
      %s365 = smul.addr %s364, 4
      %s366 = scalar_lea.vmem %s1, %s365
      %p367 = pneg %p69
      %p368 = pneg %p66
      %p369 = pneg %p90
      %p370 = pneg %p87
      %p371 = pneg %p111
      %p372 = pneg %p108
      %p373 = pneg %p132
      %p374 = pneg %p129
      %p375 = pneg %p153
      %p376 = pneg %p150
      %p377 = pneg %p174
      %p378 = pneg %p171
      %p379 = pneg %p195
      %p380 = pneg %p192
      %p381 = pneg %p216
      %p382 = pneg %p213
      %p383 = pneg %p237
      %p384 = pneg %p234
      %p385 = pneg %p258
      %p386 = pneg %p255
      %p387 = pneg %p284
      %p388 = pneg %p281
      %s389 = smul.u32 63, %s22
      %p390 = scmp.lt.s32.totalorder %s389, 125
      %s391 = scalar_select %p390, %s389, 125
      %s392 = smul.addr %s391, 8
      %s393 = scalar_lea.vmem %s11, %s392
      %s394 = smul.u32 63, %s22
      %p395 = scmp.lt.s32.totalorder %s394, 125
      %s396 = scalar_select %p395, %s394, 125
      %s397 = smul.addr %s396, 4
      %s398 = scalar_lea.vmem %s0, %s397
      %s399 = smul.u32 63, %s22
      %s400 = smul.u32 63, %s22
      %p401 = scmp.lt.s32.totalorder %s400, 125
      %s402 = scalar_select %p401, %s400, 125
      %s403 = smul.addr %s402, 4
      %s404 = scalar_lea.vmem %s1, %s403
      %s405 = smul.u32 63, %s22
      %s406 = smul.u32 63, %s22
      %p407 = scmp.lt.s32.totalorder %s406, 125
      %s408 = scalar_select %p407, %s406, 125
      %s409 = smul.addr %s408, 8
      %s410 = scalar_lea.vmem %s11, %s409
      %s411 = smul.u32 63, %s22
      %v413 = vld [vmem:[%s398] sm:$0xf]
      %v414 = vld [vmem:[%s398 + $0x4] sm:$0xf]
      %v415 = vld [vmem:[%s398 + $0x8] sm:$0xf]
      %v416 = vld [vmem:[%s398 + $0xc] sm:$0xf]
      %v417 = vld [vmem:[%s398 + $0x10] sm:$0xf]
      %v418 = vld [vmem:[%s398 + $0x14] sm:$0xf]
      %v419 = vld [vmem:[%s398 + $0x18] sm:$0xf]
      %v420 = vld [vmem:[%s398 + $0x1c] sm:$0xf]
      %v421 = vld [vmem:[%s398 + $0x20] sm:$0xf]
      %v422 = vld [vmem:[%s398 + $0x24] sm:$0xf]
      %v423 = vld [vmem:[%s398 + $0x28] sm:$0xf]
      %v424 = vld [vmem:[%s398 + $0x2c] sm:$0xf]
      %v425 = vld [vmem:[%s398 + $0x30] sm:$0xf]
      %v426 = vld [vmem:[%s398 + $0x34] sm:$0xf]
      %v427 = vld [vmem:[%s398 + $0x38] sm:$0xf]
      %v428 = vld [vmem:[%s398 + $0x3c] sm:$0xf]
      %v429 = vld [vmem:[%s398 + $0x40] sm:$0xf]
      %v430 = vld [vmem:[%s398 + $0x44] sm:$0xf]
      %v431 = vld [vmem:[%s398 + $0x48] sm:$0xf]
      %v432 = vld [vmem:[%s398 + $0x4c] sm:$0xf]
      %v433 = vld [vmem:[%s398 + $0x50] sm:$0xf]
      %v434 = vld [vmem:[%s398 + $0x54] sm:$0xf]
      %v435 = vld [vmem:[%s398 + $0x58] sm:$0xf]
      %v436 = vld [vmem:[%s398 + $0x5c] sm:$0xf]
      %v437 = vld [vmem:[%s398 + $0x60] sm:$0xf]
      %v438 = vld [vmem:[%s398 + $0x64] sm:$0xf]
      %v439 = vld [vmem:[%s398 + $0x68] sm:$0xf]
      %v440 = vld [vmem:[%s398 + $0x6c] sm:$0xf]
      %v441 = vld [vmem:[%s398 + $0x70] sm:$0xf]
      %v442 = vld [vmem:[%s398 + $0x74] sm:$0xf]
      %v443 = vld [vmem:[%s398 + $0x78] sm:$0xf]
      %v444 = vld [vmem:[%s398 + $0x7c] sm:$0xf]
      %v445 = vld [vmem:[%s398 + $0x80] sm:$0xf]
      %v446 = vld [vmem:[%s398 + $0x84] sm:$0xf]
      %v447 = vld [vmem:[%s398 + $0x88] sm:$0xf]
      %v448 = vld [vmem:[%s398 + $0x8c] sm:$0xf]
      %v449 = vld [vmem:[%s398 + $0x90] sm:$0xf]
      %v450 = vld [vmem:[%s398 + $0x94] sm:$0xf]
      %v451 = vld [vmem:[%s398 + $0x98] sm:$0xf]
      %v452 = vld [vmem:[%s398 + $0x9c] sm:$0xf]
      %v453 = vld [vmem:[%s398 + $0xa0] sm:$0xf]
      %v454 = vld [vmem:[%s398 + $0xa4] sm:$0xf]
      %v455 = vld [vmem:[%s398 + $0xa8] sm:$0xf]
      %v456 = vld [vmem:[%s398 + $0xac] sm:$0xf]
      %v457 = vld [vmem:[%s398 + $0xb0] sm:$0xf]
      %v458 = vld [vmem:[%s398 + $0xb4] sm:$0xf]
      %v459 = vld [vmem:[%s398 + $0xb8] sm:$0xf]
      %v460 = vld [vmem:[%s398 + $0xbc] sm:$0xf]
      %v461 = vld [vmem:[%s398 + $0xc0] sm:$0xf]
      %v462 = vld [vmem:[%s398 + $0xc4] sm:$0xf]
      %v463 = vld [vmem:[%s398 + $0xc8] sm:$0xf]
      %v464 = vld [vmem:[%s398 + $0xcc] sm:$0xf]
      %v465 = vld [vmem:[%s398 + $0xd0] sm:$0xf]
      %v466 = vld [vmem:[%s398 + $0xd4] sm:$0xf]
      %v467 = vld [vmem:[%s398 + $0xd8] sm:$0xf]
      %v468 = vld [vmem:[%s398 + $0xdc] sm:$0xf]
      %v469 = vld [vmem:[%s398 + $0xe0] sm:$0xf]
      %v470 = vld [vmem:[%s398 + $0xe4] sm:$0xf]
      %v471 = vld [vmem:[%s398 + $0xe8] sm:$0xf]
      %v472 = vld [vmem:[%s398 + $0xec] sm:$0xf]
      %v473 = vld [vmem:[%s398 + $0xf0] sm:$0xf]
      %v474 = vld [vmem:[%s398 + $0xf4] sm:$0xf]
      %v475 = vld [vmem:[%s398 + $0xf8] sm:$0xf]
      %v476 = vld [vmem:[%s404] sm:$0xf]
      %v477 = vld [vmem:[%s404 + $0x4] sm:$0xf]
      %v478 = vld [vmem:[%s404 + $0x8] sm:$0xf]
      %v479 = vld [vmem:[%s404 + $0xc] sm:$0xf]
      %v480 = vld [vmem:[%s404 + $0x10] sm:$0xf]
      %v481 = vld [vmem:[%s404 + $0x14] sm:$0xf]
      %v482 = vld [vmem:[%s404 + $0x18] sm:$0xf]
      %v483 = vld [vmem:[%s404 + $0x1c] sm:$0xf]
      %v484 = vld [vmem:[%s404 + $0x20] sm:$0xf]
      %v485 = vld [vmem:[%s404 + $0x24] sm:$0xf]
      %v486 = vld [vmem:[%s404 + $0x28] sm:$0xf]
      %v487 = vld [vmem:[%s404 + $0x2c] sm:$0xf]
      %v488 = vld [vmem:[%s404 + $0x30] sm:$0xf]
      %v489 = vld [vmem:[%s404 + $0x34] sm:$0xf]
      %v490 = vld [vmem:[%s404 + $0x38] sm:$0xf]
      %v491 = vld [vmem:[%s404 + $0x3c] sm:$0xf]
      %v492 = vld [vmem:[%s404 + $0x40] sm:$0xf]
      %v493 = vld [vmem:[%s404 + $0x44] sm:$0xf]
      %v494 = vld [vmem:[%s404 + $0x48] sm:$0xf]
      %v495 = vld [vmem:[%s404 + $0x4c] sm:$0xf]
      %v496 = vld [vmem:[%s404 + $0x50] sm:$0xf]
      %v497 = vld [vmem:[%s404 + $0x54] sm:$0xf]
      %v498 = vld [vmem:[%s404 + $0x58] sm:$0xf]
      %v499 = vld [vmem:[%s404 + $0x5c] sm:$0xf]
      %v500 = vld [vmem:[%s404 + $0x60] sm:$0xf]
      %v501 = vld [vmem:[%s404 + $0x64] sm:$0xf]
      %v502 = vld [vmem:[%s404 + $0x68] sm:$0xf]
      %v503 = vld [vmem:[%s404 + $0x6c] sm:$0xf]
      %v504 = vld [vmem:[%s404 + $0x70] sm:$0xf]
      %v505 = vld [vmem:[%s404 + $0x74] sm:$0xf]
      %v506 = vld [vmem:[%s404 + $0x78] sm:$0xf]
      %v507 = vld [vmem:[%s404 + $0x7c] sm:$0xf]
      %v508 = vld [vmem:[%s404 + $0x80] sm:$0xf]
      %v509 = vld [vmem:[%s404 + $0x84] sm:$0xf]
      %v510 = vld [vmem:[%s404 + $0x88] sm:$0xf]
      %v511 = vld [vmem:[%s404 + $0x8c] sm:$0xf]
      %v512 = vld [vmem:[%s404 + $0x90] sm:$0xf]
      %v513 = vld [vmem:[%s404 + $0x94] sm:$0xf]
      %v514 = vld [vmem:[%s404 + $0x98] sm:$0xf]
      %v515 = vld [vmem:[%s404 + $0x9c] sm:$0xf]
      %v516 = vld [vmem:[%s404 + $0xa0] sm:$0xf]
      %v517 = vld [vmem:[%s404 + $0xa4] sm:$0xf]
      %v518 = vld [vmem:[%s404 + $0xa8] sm:$0xf]
      %v519 = vld [vmem:[%s404 + $0xac] sm:$0xf]
      %v520 = vld [vmem:[%s404 + $0xb0] sm:$0xf]
      %v521 = vld [vmem:[%s404 + $0xb4] sm:$0xf]
      %v522 = vld [vmem:[%s404 + $0xb8] sm:$0xf]
      %v523 = vld [vmem:[%s404 + $0xbc] sm:$0xf]
      %v524 = vld [vmem:[%s404 + $0xc0] sm:$0xf]
      %v525 = vld [vmem:[%s404 + $0xc4] sm:$0xf]
      %v526 = vld [vmem:[%s404 + $0xc8] sm:$0xf]
      %v527 = vld [vmem:[%s404 + $0xcc] sm:$0xf]
      %v528 = vld [vmem:[%s404 + $0xd0] sm:$0xf]
      %v529 = vld [vmem:[%s404 + $0xd4] sm:$0xf]
      %v530 = vld [vmem:[%s404 + $0xd8] sm:$0xf]
      %v531 = vld [vmem:[%s404 + $0xdc] sm:$0xf]
      %v532 = vld [vmem:[%s404 + $0xe0] sm:$0xf]
      %v533 = vld [vmem:[%s404 + $0xe4] sm:$0xf]
      %v534 = vld [vmem:[%s404 + $0xe8] sm:$0xf]
      %v535 = vld [vmem:[%s404 + $0xec] sm:$0xf]
      %v536 = vld [vmem:[%s404 + $0xf0] sm:$0xf]
      %v537 = vld [vmem:[%s404 + $0xf4] sm:$0xf]
      %v538 = vld [vmem:[%s404 + $0xf8] sm:$0xf]
      %v539 = vld [vmem:[%s2] sm:$0xff]
      %v540 = vld [vmem:[%s2 + $0x8] sm:$0xff]
      %v541 = vld [vmem:[%s2 + $0x10] sm:$0xff]
      %v542 = vld [vmem:[%s2 + $0x18] sm:$0xff]
      %v543 = vld [vmem:[%s2 + $0x20] sm:$0xff]
      %v607 = vunpack.c.l.b16 %v413
      %v608 = vunpack.c.l.b16 %v414
      %v609 = vunpack.c.l.b16 %v415
      %v610 = vunpack.c.l.b16 %v416
      %v611 = vunpack.c.l.b16 %v417
      %v612 = vunpack.c.l.b16 %v418
      %v613 = vunpack.c.l.b16 %v419
      %v614 = vunpack.c.l.b16 %v420
      %v615 = vunpack.c.l.b16 %v421
      %v616 = vunpack.c.l.b16 %v422
      %v617 = vunpack.c.l.b16 %v423
      %v618 = vunpack.c.l.b16 %v424
      %v619 = vunpack.c.l.b16 %v425
      %v620 = vunpack.c.l.b16 %v426
      %v621 = vunpack.c.l.b16 %v427
      %v622 = vunpack.c.l.b16 %v428
      %v623 = vunpack.c.l.b16 %v429
      %v624 = vunpack.c.l.b16 %v430
      %v625 = vunpack.c.l.b16 %v431
      %v626 = vunpack.c.l.b16 %v432
      %v627 = vunpack.c.l.b16 %v433
      %v628 = vunpack.c.l.b16 %v434
      %v629 = vunpack.c.l.b16 %v435
      %v630 = vunpack.c.l.b16 %v436
      %v631 = vunpack.c.l.b16 %v437
      %v632 = vunpack.c.l.b16 %v438
      %v633 = vunpack.c.l.b16 %v439
      %v634 = vunpack.c.l.b16 %v440
      %v635 = vunpack.c.l.b16 %v441
      %v636 = vunpack.c.l.b16 %v442
      %v637 = vunpack.c.l.b16 %v443
      %v638 = vunpack.c.l.b16 %v444
      %v639 = vunpack.c.l.b16 %v445
      %v640 = vunpack.c.l.b16 %v446
      %v641 = vunpack.c.l.b16 %v447
      %v642 = vunpack.c.l.b16 %v448
      %v643 = vunpack.c.l.b16 %v449
      %v644 = vunpack.c.l.b16 %v450
      %v645 = vunpack.c.l.b16 %v451
      %v646 = vunpack.c.l.b16 %v452
      %v647 = vunpack.c.l.b16 %v453
      %v648 = vunpack.c.l.b16 %v454
      %v649 = vunpack.c.l.b16 %v455
      %v650 = vunpack.c.l.b16 %v456
      %v651 = vunpack.c.l.b16 %v457
      %v652 = vunpack.c.l.b16 %v458
      %v653 = vunpack.c.l.b16 %v459
      %v654 = vunpack.c.l.b16 %v460
      %v655 = vunpack.c.l.b16 %v461
      %v656 = vunpack.c.l.b16 %v462
      %v657 = vunpack.c.l.b16 %v463
      %v658 = vunpack.c.l.b16 %v464
      %v659 = vunpack.c.l.b16 %v465
      %v660 = vunpack.c.l.b16 %v466
      %v661 = vunpack.c.l.b16 %v467
      %v662 = vunpack.c.l.b16 %v468
      %v663 = vunpack.c.l.b16 %v469
      %v664 = vunpack.c.l.b16 %v470
      %v665 = vunpack.c.l.b16 %v471
      %v666 = vunpack.c.l.b16 %v472
      %v667 = vunpack.c.l.b16 %v473
      %v668 = vunpack.c.l.b16 %v474
      %v669 = vunpack.c.l.b16 %v475
      %v670 = vpack.c.b16 %v608, %v607
      %v671 = vpack.c.b16 %v610, %v609
      %v672 = vpack.c.b16 %v612, %v611
      %v673 = vpack.c.b16 %v614, %v613
      %v674 = vpack.c.b16 %v616, %v615
      %v675 = vpack.c.b16 %v618, %v617
      %v676 = vpack.c.b16 %v620, %v619
      %v677 = vpack.c.b16 %v622, %v621
      %v678 = vpack.c.b16 %v624, %v623
      %v679 = vpack.c.b16 %v626, %v625
      %v680 = vpack.c.b16 %v628, %v627
      %v681 = vpack.c.b16 %v630, %v629
      %v682 = vpack.c.b16 %v632, %v631
      %v683 = vpack.c.b16 %v634, %v633
      %v684 = vpack.c.b16 %v636, %v635
      %v685 = vpack.c.b16 %v638, %v637
      %v686 = vpack.c.b16 %v640, %v639
      %v687 = vpack.c.b16 %v642, %v641
      %v688 = vpack.c.b16 %v644, %v643
      %v689 = vpack.c.b16 %v646, %v645
      %v690 = vpack.c.b16 %v648, %v647
      %v691 = vpack.c.b16 %v650, %v649
      %v692 = vpack.c.b16 %v652, %v651
      %v693 = vpack.c.b16 %v654, %v653
      %v694 = vpack.c.b16 %v656, %v655
      %v695 = vpack.c.b16 %v658, %v657
      %v696 = vpack.c.b16 %v660, %v659
      %v697 = vpack.c.b16 %v662, %v661
      %v698 = vpack.c.b16 %v664, %v663
      %v699 = vpack.c.b16 %v666, %v665
      %v700 = vpack.c.b16 %v668, %v667
      %v701 = vpack.c.b16 %v669, %v669
      %v707 = vunpack.c.l.b16 %v539
      %v708 = vunpack.c.h.b16 %v539
      %v709 = vunpack.c.l.b16 %v540
      %v710 = vunpack.c.h.b16 %v540
      %v711 = vunpack.c.l.b16 %v541
      %v712 = vunpack.c.h.b16 %v541
      %v713 = vunpack.c.l.b16 %v542
      %v714 = vunpack.c.h.b16 %v542
      %v715 = vunpack.c.l.b16 %v543
      %v716 = vunpack.c.h.b16 %v543
      %v717 = vpack.c.b16 %v709, %v707
      %v718 = vpack.c.b16 %v710, %v708
      %v719 = vpack.c.b16 %v713, %v711
      %v720 = vpack.c.b16 %v714, %v712
      %v721 = vpack.c.b16 %v715, %v715
      %v722 = vpack.c.b16 %v716, %v716
      %vm727 = vcmask 318464
      %v729 = vsel %vm727, %v670, 0
      %v732 = vsel %vm727, %v671, 0
      %v735 = vsel %vm727, %v672, 0
      %v738 = vsel %vm727, %v673, 0
      %v741 = vsel %vm727, %v674, 0
      %v744 = vsel %vm727, %v675, 0
      %v747 = vsel %vm727, %v676, 0
      %v750 = vsel %vm727, %v677, 0
      %v753 = vsel %vm727, %v678, 0
      %v756 = vsel %vm727, %v679, 0
      %v759 = vsel %vm727, %v680, 0
      %v762 = vsel %vm727, %v681, 0
      %v765 = vsel %vm727, %v682, 0
      %v768 = vsel %vm727, %v683, 0
      %v771 = vsel %vm727, %v684, 0
      %v774 = vsel %vm727, %v685, 0
      %v777 = vsel %vm727, %v686, 0
      %v780 = vsel %vm727, %v687, 0
      %v783 = vsel %vm727, %v688, 0
      %v786 = vsel %vm727, %v689, 0
      %v789 = vsel %vm727, %v690, 0
      %v792 = vsel %vm727, %v691, 0
      %v795 = vsel %vm727, %v692, 0
      %v798 = vsel %vm727, %v693, 0
      %v801 = vsel %vm727, %v694, 0
      %v804 = vsel %vm727, %v695, 0
      %v807 = vsel %vm727, %v696, 0
      %v810 = vsel %vm727, %v697, 0
      %v813 = vsel %vm727, %v698, 0
      %v816 = vsel %vm727, %v699, 0
      %v819 = vsel %vm727, %v700, 0
      %v822 = vsel %vm727, %v701, 0
      %vm824 = vcmask 1042432
      %vm825 = vcmask 1043456
      %v826 = vsel %vm824, 4294967295, 65535
      %v827 = vsel %vm825, %v826, 0
      %v829 = vand.u32 %v721, %v827
      %v832 = vand.u32 %v722, %v827
      %834 = vmatpush.bf16.msra.mxu0 0
      %835 = vmatpush.bf16.msra.mxu0 0
      %836 = vmatpush.bf16.msra.mxu0 0
      %837 = vmatpush.bf16.msra.mxu0 0
      %838 = vmatpush.bf16.msra.mxu0 0
      %839 = vmatpush.bf16.msra.mxu0 %v829
      %840 = vmatpush.bf16.msra.mxu0 %v719
      %841 = vmatpush.bf16.msra.mxu0 %v717
      %842 = vmatmul.bf16.gmra.mxu0 %v729
      %v843 = vpop.f32.mrf.mxu0
      %v844 = vadd.f32 0.0, %v843
      %v845 = vpop.f32.mrf.mxu0
      %v846 = vadd.f32 0.0, %v845
      %847 = vmatmul.bf16.gmra.mxu0 %v732
      %v848 = vpop.f32.mrf.mxu0
      %v849 = vadd.f32 0.0, %v848
      %v850 = vpop.f32.mrf.mxu0
      %v851 = vadd.f32 0.0, %v850
      %852 = vmatmul.bf16.gmra.mxu0 %v735
      %v853 = vpop.f32.mrf.mxu0
      %v854 = vadd.f32 0.0, %v853
      %v855 = vpop.f32.mrf.mxu0
      %v856 = vadd.f32 0.0, %v855
      %857 = vmatmul.bf16.gmra.mxu0 %v738
      %v858 = vpop.f32.mrf.mxu0
      %v859 = vadd.f32 0.0, %v858
      %v860 = vpop.f32.mrf.mxu0
      %v861 = vadd.f32 0.0, %v860
      %862 = vmatmul.bf16.gmra.mxu0 %v741
      %v863 = vpop.f32.mrf.mxu0
      %v864 = vadd.f32 0.0, %v863
      %v865 = vpop.f32.mrf.mxu0
      %v866 = vadd.f32 0.0, %v865
      %867 = vmatmul.bf16.gmra.mxu0 %v744
      %v868 = vpop.f32.mrf.mxu0
      %v869 = vadd.f32 0.0, %v868
      %v870 = vpop.f32.mrf.mxu0
      %v871 = vadd.f32 0.0, %v870
      %872 = vmatmul.bf16.gmra.mxu0 %v747
      %v873 = vpop.f32.mrf.mxu0
      %v874 = vadd.f32 0.0, %v873
      %v875 = vpop.f32.mrf.mxu0
      %v876 = vadd.f32 0.0, %v875
      %877 = vmatmul.bf16.gmra.mxu0 %v750
      %v878 = vpop.f32.mrf.mxu0
      %v879 = vadd.f32 0.0, %v878
      %v880 = vpop.f32.mrf.mxu0
      %v881 = vadd.f32 0.0, %v880
      %882 = vmatmul.bf16.gmra.mxu0 %v753
      %v883 = vpop.f32.mrf.mxu0
      %v884 = vadd.f32 0.0, %v883
      %v885 = vpop.f32.mrf.mxu0
      %v886 = vadd.f32 0.0, %v885
      %887 = vmatmul.bf16.gmra.mxu0 %v756
      %v888 = vpop.f32.mrf.mxu0
      %v889 = vadd.f32 0.0, %v888
      %v890 = vpop.f32.mrf.mxu0
      %v891 = vadd.f32 0.0, %v890
      %892 = vmatmul.bf16.gmra.mxu0 %v759
      %v893 = vpop.f32.mrf.mxu0
      %v894 = vadd.f32 0.0, %v893
      %v895 = vpop.f32.mrf.mxu0
      %v896 = vadd.f32 0.0, %v895
      %897 = vmatmul.bf16.gmra.mxu0 %v762
      %v898 = vpop.f32.mrf.mxu0
      %v899 = vadd.f32 0.0, %v898
      %v900 = vpop.f32.mrf.mxu0
      %v901 = vadd.f32 0.0, %v900
      %902 = vmatmul.bf16.gmra.mxu0 %v765
      %v903 = vpop.f32.mrf.mxu0
      %v904 = vadd.f32 0.0, %v903
      %v905 = vpop.f32.mrf.mxu0
      %v906 = vadd.f32 0.0, %v905
      %907 = vmatmul.bf16.gmra.mxu0 %v768
      %v908 = vpop.f32.mrf.mxu0
      %v909 = vadd.f32 0.0, %v908
      %v910 = vpop.f32.mrf.mxu0
      %v911 = vadd.f32 0.0, %v910
      %912 = vmatmul.bf16.gmra.mxu0 %v771
      %v913 = vpop.f32.mrf.mxu0
      %v914 = vadd.f32 0.0, %v913
      %v915 = vpop.f32.mrf.mxu0
      %v916 = vadd.f32 0.0, %v915
      %917 = vmatmul.bf16.gmra.mxu0 %v774
      %v918 = vpop.f32.mrf.mxu0
      %v919 = vadd.f32 0.0, %v918
      %v920 = vpop.f32.mrf.mxu0
      %v921 = vadd.f32 0.0, %v920
      %922 = vmatmul.bf16.gmra.mxu0 %v777
      %v923 = vpop.f32.mrf.mxu0
      %v924 = vadd.f32 0.0, %v923
      %v925 = vpop.f32.mrf.mxu0
      %v926 = vadd.f32 0.0, %v925
      %927 = vmatmul.bf16.gmra.mxu0 %v780
      %v928 = vpop.f32.mrf.mxu0
      %v929 = vadd.f32 0.0, %v928
      %v930 = vpop.f32.mrf.mxu0
      %v931 = vadd.f32 0.0, %v930
      %932 = vmatmul.bf16.gmra.mxu0 %v783
      %v933 = vpop.f32.mrf.mxu0
      %v934 = vadd.f32 0.0, %v933
      %v935 = vpop.f32.mrf.mxu0
      %v936 = vadd.f32 0.0, %v935
      %937 = vmatmul.bf16.gmra.mxu0 %v786
      %v938 = vpop.f32.mrf.mxu0
      %v939 = vadd.f32 0.0, %v938
      %v940 = vpop.f32.mrf.mxu0
      %v941 = vadd.f32 0.0, %v940
      %942 = vmatmul.bf16.gmra.mxu0 %v789
      %v943 = vpop.f32.mrf.mxu0
      %v944 = vadd.f32 0.0, %v943
      %v945 = vpop.f32.mrf.mxu0
      %v946 = vadd.f32 0.0, %v945
      %947 = vmatmul.bf16.gmra.mxu0 %v792
      %v948 = vpop.f32.mrf.mxu0
      %v949 = vadd.f32 0.0, %v948
      %v950 = vpop.f32.mrf.mxu0
      %v951 = vadd.f32 0.0, %v950
      %952 = vmatmul.bf16.gmra.mxu0 %v795
      %v953 = vpop.f32.mrf.mxu0
      %v954 = vadd.f32 0.0, %v953
      %v955 = vpop.f32.mrf.mxu0
      %v956 = vadd.f32 0.0, %v955
      %957 = vmatmul.bf16.gmra.mxu0 %v798
      %v958 = vpop.f32.mrf.mxu0
      %v959 = vadd.f32 0.0, %v958
      %v960 = vpop.f32.mrf.mxu0
      %v961 = vadd.f32 0.0, %v960
      %962 = vmatmul.bf16.gmra.mxu0 %v801
      %v963 = vpop.f32.mrf.mxu0
      %v964 = vadd.f32 0.0, %v963
      %v965 = vpop.f32.mrf.mxu0
      %v966 = vadd.f32 0.0, %v965
      %967 = vmatmul.bf16.gmra.mxu0 %v804
      %v968 = vpop.f32.mrf.mxu0
      %v969 = vadd.f32 0.0, %v968
      %v970 = vpop.f32.mrf.mxu0
      %v971 = vadd.f32 0.0, %v970
      %972 = vmatmul.bf16.gmra.mxu0 %v807
      %v973 = vpop.f32.mrf.mxu0
      %v974 = vadd.f32 0.0, %v973
      %v975 = vpop.f32.mrf.mxu0
      %v976 = vadd.f32 0.0, %v975
      %977 = vmatmul.bf16.gmra.mxu0 %v810
      %v978 = vpop.f32.mrf.mxu0
      %v979 = vadd.f32 0.0, %v978
      %v980 = vpop.f32.mrf.mxu0
      %v981 = vadd.f32 0.0, %v980
      %982 = vmatmul.bf16.gmra.mxu0 %v813
      %v983 = vpop.f32.mrf.mxu0
      %v984 = vadd.f32 0.0, %v983
      %v985 = vpop.f32.mrf.mxu0
      %v986 = vadd.f32 0.0, %v985
      %987 = vmatmul.bf16.gmra.mxu0 %v816
      %v988 = vpop.f32.mrf.mxu0
      %v989 = vadd.f32 0.0, %v988
      %v990 = vpop.f32.mrf.mxu0
      %v991 = vadd.f32 0.0, %v990
      %992 = vmatmul.bf16.gmra.mxu0 %v819
      %v993 = vpop.f32.mrf.mxu0
      %v994 = vadd.f32 0.0, %v993
      %v995 = vpop.f32.mrf.mxu0
      %v996 = vadd.f32 0.0, %v995
      %997 = vmatmul.bf16.gmra.mxu0 %v822
      %v998 = vpop.f32.mrf.mxu0
      %v999 = vadd.f32 0.0, %v998
      %v1000 = vpop.f32.mrf.mxu0
      %1001 = vdwg.mxu0
      %1002 = vmatpush.bf16.msra.mxu0 0
      %1003 = vmatpush.bf16.msra.mxu0 0
      %1004 = vmatpush.bf16.msra.mxu0 0
      %1005 = vmatpush.bf16.msra.mxu0 0
      %1006 = vmatpush.bf16.msra.mxu0 0
      %1007 = vmatpush.bf16.msra.mxu0 %v832
      %1008 = vmatpush.bf16.msra.mxu0 %v720
      %1009 = vmatpush.bf16.msra.mxu0 %v718
      %1010 = vmatmul.bf16.gmra.mxu0 %v729
      %v1011 = vpop.f32.mrf.mxu0
      %v1012 = vadd.f32 0.0, %v1011
      %v1013 = vpop.f32.mrf.mxu0
      %v1014 = vadd.f32 0.0, %v1013
      %1015 = vmatmul.bf16.gmra.mxu0 %v732
      %v1016 = vpop.f32.mrf.mxu0
      %v1017 = vadd.f32 0.0, %v1016
      %v1018 = vpop.f32.mrf.mxu0
      %v1019 = vadd.f32 0.0, %v1018
      %1020 = vmatmul.bf16.gmra.mxu0 %v735
      %v1021 = vpop.f32.mrf.mxu0
      %v1022 = vadd.f32 0.0, %v1021
      %v1023 = vpop.f32.mrf.mxu0
      %v1024 = vadd.f32 0.0, %v1023
      %1025 = vmatmul.bf16.gmra.mxu0 %v738
      %v1026 = vpop.f32.mrf.mxu0
      %v1027 = vadd.f32 0.0, %v1026
      %v1028 = vpop.f32.mrf.mxu0
      %v1029 = vadd.f32 0.0, %v1028
      %1030 = vmatmul.bf16.gmra.mxu0 %v741
      %v1031 = vpop.f32.mrf.mxu0
      %v1032 = vadd.f32 0.0, %v1031
      %v1033 = vpop.f32.mrf.mxu0
      %v1034 = vadd.f32 0.0, %v1033
      %1035 = vmatmul.bf16.gmra.mxu0 %v744
      %v1036 = vpop.f32.mrf.mxu0
      %v1037 = vadd.f32 0.0, %v1036
      %v1038 = vpop.f32.mrf.mxu0
      %v1039 = vadd.f32 0.0, %v1038
      %1040 = vmatmul.bf16.gmra.mxu0 %v747
      %v1041 = vpop.f32.mrf.mxu0
      %v1042 = vadd.f32 0.0, %v1041
      %v1043 = vpop.f32.mrf.mxu0
      %v1044 = vadd.f32 0.0, %v1043
      %1045 = vmatmul.bf16.gmra.mxu0 %v750
      %v1046 = vpop.f32.mrf.mxu0
      %v1047 = vadd.f32 0.0, %v1046
      %v1048 = vpop.f32.mrf.mxu0
      %v1049 = vadd.f32 0.0, %v1048
      %1050 = vmatmul.bf16.gmra.mxu0 %v753
      %v1051 = vpop.f32.mrf.mxu0
      %v1052 = vadd.f32 0.0, %v1051
      %v1053 = vpop.f32.mrf.mxu0
      %v1054 = vadd.f32 0.0, %v1053
      %1055 = vmatmul.bf16.gmra.mxu0 %v756
      %v1056 = vpop.f32.mrf.mxu0
      %v1057 = vadd.f32 0.0, %v1056
      %v1058 = vpop.f32.mrf.mxu0
      %v1059 = vadd.f32 0.0, %v1058
      %1060 = vmatmul.bf16.gmra.mxu0 %v759
      %v1061 = vpop.f32.mrf.mxu0
      %v1062 = vadd.f32 0.0, %v1061
      %v1063 = vpop.f32.mrf.mxu0
      %v1064 = vadd.f32 0.0, %v1063
      %1065 = vmatmul.bf16.gmra.mxu0 %v762
      %v1066 = vpop.f32.mrf.mxu0
      %v1067 = vadd.f32 0.0, %v1066
      %v1068 = vpop.f32.mrf.mxu0
      %v1069 = vadd.f32 0.0, %v1068
      %1070 = vmatmul.bf16.gmra.mxu0 %v765
      %v1071 = vpop.f32.mrf.mxu0
      %v1072 = vadd.f32 0.0, %v1071
      %v1073 = vpop.f32.mrf.mxu0
      %v1074 = vadd.f32 0.0, %v1073
      %1075 = vmatmul.bf16.gmra.mxu0 %v768
      %v1076 = vpop.f32.mrf.mxu0
      %v1077 = vadd.f32 0.0, %v1076
      %v1078 = vpop.f32.mrf.mxu0
      %v1079 = vadd.f32 0.0, %v1078
      %1080 = vmatmul.bf16.gmra.mxu0 %v771
      %v1081 = vpop.f32.mrf.mxu0
      %v1082 = vadd.f32 0.0, %v1081
      %v1083 = vpop.f32.mrf.mxu0
      %v1084 = vadd.f32 0.0, %v1083
      %1085 = vmatmul.bf16.gmra.mxu0 %v774
      %v1086 = vpop.f32.mrf.mxu0
      %v1087 = vadd.f32 0.0, %v1086
      %v1088 = vpop.f32.mrf.mxu0
      %v1089 = vadd.f32 0.0, %v1088
      %1090 = vmatmul.bf16.gmra.mxu0 %v777
      %v1091 = vpop.f32.mrf.mxu0
      %v1092 = vadd.f32 0.0, %v1091
      %v1093 = vpop.f32.mrf.mxu0
      %v1094 = vadd.f32 0.0, %v1093
      %1095 = vmatmul.bf16.gmra.mxu0 %v780
      %v1096 = vpop.f32.mrf.mxu0
      %v1097 = vadd.f32 0.0, %v1096
      %v1098 = vpop.f32.mrf.mxu0
      %v1099 = vadd.f32 0.0, %v1098
      %1100 = vmatmul.bf16.gmra.mxu0 %v783
      %v1101 = vpop.f32.mrf.mxu0
      %v1102 = vadd.f32 0.0, %v1101
      %v1103 = vpop.f32.mrf.mxu0
      %v1104 = vadd.f32 0.0, %v1103
      %1105 = vmatmul.bf16.gmra.mxu0 %v786
      %v1106 = vpop.f32.mrf.mxu0
      %v1107 = vadd.f32 0.0, %v1106
      %v1108 = vpop.f32.mrf.mxu0
      %v1109 = vadd.f32 0.0, %v1108
      %1110 = vmatmul.bf16.gmra.mxu0 %v789
      %v1111 = vpop.f32.mrf.mxu0
      %v1112 = vadd.f32 0.0, %v1111
      %v1113 = vpop.f32.mrf.mxu0
      %v1114 = vadd.f32 0.0, %v1113
      %1115 = vmatmul.bf16.gmra.mxu0 %v792
      %v1116 = vpop.f32.mrf.mxu0
      %v1117 = vadd.f32 0.0, %v1116
      %v1118 = vpop.f32.mrf.mxu0
      %v1119 = vadd.f32 0.0, %v1118
      %1120 = vmatmul.bf16.gmra.mxu0 %v795
      %v1121 = vpop.f32.mrf.mxu0
      %v1122 = vadd.f32 0.0, %v1121
      %v1123 = vpop.f32.mrf.mxu0
      %v1124 = vadd.f32 0.0, %v1123
      %1125 = vmatmul.bf16.gmra.mxu0 %v798
      %v1126 = vpop.f32.mrf.mxu0
      %v1127 = vadd.f32 0.0, %v1126
      %v1128 = vpop.f32.mrf.mxu0
      %v1129 = vadd.f32 0.0, %v1128
      %1130 = vmatmul.bf16.gmra.mxu0 %v801
      %v1131 = vpop.f32.mrf.mxu0
      %v1132 = vadd.f32 0.0, %v1131
      %v1133 = vpop.f32.mrf.mxu0
      %v1134 = vadd.f32 0.0, %v1133
      %1135 = vmatmul.bf16.gmra.mxu0 %v804
      %v1136 = vpop.f32.mrf.mxu0
      %v1137 = vadd.f32 0.0, %v1136
      %v1138 = vpop.f32.mrf.mxu0
      %v1139 = vadd.f32 0.0, %v1138
      %1140 = vmatmul.bf16.gmra.mxu0 %v807
      %v1141 = vpop.f32.mrf.mxu0
      %v1142 = vadd.f32 0.0, %v1141
      %v1143 = vpop.f32.mrf.mxu0
      %v1144 = vadd.f32 0.0, %v1143
      %1145 = vmatmul.bf16.gmra.mxu0 %v810
      %v1146 = vpop.f32.mrf.mxu0
      %v1147 = vadd.f32 0.0, %v1146
      %v1148 = vpop.f32.mrf.mxu0
      %v1149 = vadd.f32 0.0, %v1148
      %1150 = vmatmul.bf16.gmra.mxu0 %v813
      %v1151 = vpop.f32.mrf.mxu0
      %v1152 = vadd.f32 0.0, %v1151
      %v1153 = vpop.f32.mrf.mxu0
      %v1154 = vadd.f32 0.0, %v1153
      %1155 = vmatmul.bf16.gmra.mxu0 %v816
      %v1156 = vpop.f32.mrf.mxu0
      %v1157 = vadd.f32 0.0, %v1156
      %v1158 = vpop.f32.mrf.mxu0
      %v1159 = vadd.f32 0.0, %v1158
      %1160 = vmatmul.bf16.gmra.mxu0 %v819
      %v1161 = vpop.f32.mrf.mxu0
      %v1162 = vadd.f32 0.0, %v1161
      %v1163 = vpop.f32.mrf.mxu0
      %v1164 = vadd.f32 0.0, %v1163
      %1165 = vmatmul.bf16.gmra.mxu0 %v822
      %v1166 = vpop.f32.mrf.mxu0
      %v1167 = vadd.f32 0.0, %v1166
      %v1168 = vpop.f32.mrf.mxu0
      %1169 = vdwg.mxu0
      %v1170 = vpack.c.bf16 %v1012, %v844
      %v1171 = vpack.c.bf16 %v1014, %v846
      %v1172 = vpack.c.bf16 %v1017, %v849
      %v1173 = vpack.c.bf16 %v1019, %v851
      %v1174 = vpack.c.bf16 %v1022, %v854
      %v1175 = vpack.c.bf16 %v1024, %v856
      %v1176 = vpack.c.bf16 %v1027, %v859
      %v1177 = vpack.c.bf16 %v1029, %v861
      %v1178 = vpack.c.bf16 %v1032, %v864
      %v1179 = vpack.c.bf16 %v1034, %v866
      %v1180 = vpack.c.bf16 %v1037, %v869
      %v1181 = vpack.c.bf16 %v1039, %v871
      %v1182 = vpack.c.bf16 %v1042, %v874
      %v1183 = vpack.c.bf16 %v1044, %v876
      %v1184 = vpack.c.bf16 %v1047, %v879
      %v1185 = vpack.c.bf16 %v1049, %v881
      %v1186 = vpack.c.bf16 %v1052, %v884
      %v1187 = vpack.c.bf16 %v1054, %v886
      %v1188 = vpack.c.bf16 %v1057, %v889
      %v1189 = vpack.c.bf16 %v1059, %v891
      %v1190 = vpack.c.bf16 %v1062, %v894
      %v1191 = vpack.c.bf16 %v1064, %v896
      %v1192 = vpack.c.bf16 %v1067, %v899
      %v1193 = vpack.c.bf16 %v1069, %v901
      %v1194 = vpack.c.bf16 %v1072, %v904
      %v1195 = vpack.c.bf16 %v1074, %v906
      %v1196 = vpack.c.bf16 %v1077, %v909
      %v1197 = vpack.c.bf16 %v1079, %v911
      %v1198 = vpack.c.bf16 %v1082, %v914
      %v1199 = vpack.c.bf16 %v1084, %v916
      %v1200 = vpack.c.bf16 %v1087, %v919
      %v1201 = vpack.c.bf16 %v1089, %v921
      %v1202 = vpack.c.bf16 %v1092, %v924
      %v1203 = vpack.c.bf16 %v1094, %v926
      %v1204 = vpack.c.bf16 %v1097, %v929
      %v1205 = vpack.c.bf16 %v1099, %v931
      %v1206 = vpack.c.bf16 %v1102, %v934
      %v1207 = vpack.c.bf16 %v1104, %v936
      %v1208 = vpack.c.bf16 %v1107, %v939
      %v1209 = vpack.c.bf16 %v1109, %v941
      %v1210 = vpack.c.bf16 %v1112, %v944
      %v1211 = vpack.c.bf16 %v1114, %v946
      %v1212 = vpack.c.bf16 %v1117, %v949
      %v1213 = vpack.c.bf16 %v1119, %v951
      %v1214 = vpack.c.bf16 %v1122, %v954
      %v1215 = vpack.c.bf16 %v1124, %v956
      %v1216 = vpack.c.bf16 %v1127, %v959
      %v1217 = vpack.c.bf16 %v1129, %v961
      %v1218 = vpack.c.bf16 %v1132, %v964
      %v1219 = vpack.c.bf16 %v1134, %v966
      %v1220 = vpack.c.bf16 %v1137, %v969
      %v1221 = vpack.c.bf16 %v1139, %v971
      %v1222 = vpack.c.bf16 %v1142, %v974
      %v1223 = vpack.c.bf16 %v1144, %v976
      %v1224 = vpack.c.bf16 %v1147, %v979
      %v1225 = vpack.c.bf16 %v1149, %v981
      %v1226 = vpack.c.bf16 %v1152, %v984
      %v1227 = vpack.c.bf16 %v1154, %v986
      %v1228 = vpack.c.bf16 %v1157, %v989
      %v1229 = vpack.c.bf16 %v1159, %v991
      %v1230 = vpack.c.bf16 %v1162, %v994
      %v1231 = vpack.c.bf16 %v1164, %v996
      %v1232 = vpack.c.bf16 %v1167, %v999
      %v1233 = vld [vmem:[%s3] sm:$0x3]
      %1235 = vst [vmem:[#allocation1] ss:$9 sm:$0xff] %v1233
      %v1236 = vld [vmem:[#allocation1] sm:$0xff]
      %v1237 = vld [vmem:[#allocation1 + $0x9] sm:$0xff]
      %v1238 = vpack.i.b16 %v1236, %v1236
      %v1240 = vperm.slane %v1238, 0
      %v1241 = vpack.i.b16 %v1237, %v1237
      %v1243 = vperm.slane %v1241, 0
      %v1244 = vunpack.c.l.bf16 %v1170
      %v1245 = vunpack.c.h.bf16 %v1170
      %v1246 = vunpack.c.l.bf16 %v1171
      %v1247 = vunpack.c.h.bf16 %v1171
      %v1248 = vunpack.c.l.bf16 %v1172
      %v1249 = vunpack.c.h.bf16 %v1172
      %v1250 = vunpack.c.l.bf16 %v1173
      %v1251 = vunpack.c.h.bf16 %v1173
      %v1252 = vunpack.c.l.bf16 %v1174
      %v1253 = vunpack.c.h.bf16 %v1174
      %v1254 = vunpack.c.l.bf16 %v1175
      %v1255 = vunpack.c.h.bf16 %v1175
      %v1256 = vunpack.c.l.bf16 %v1176
      %v1257 = vunpack.c.h.bf16 %v1176
      %v1258 = vunpack.c.l.bf16 %v1177
      %v1259 = vunpack.c.h.bf16 %v1177
      %v1260 = vunpack.c.l.bf16 %v1178
      %v1261 = vunpack.c.h.bf16 %v1178
      %v1262 = vunpack.c.l.bf16 %v1179
      %v1263 = vunpack.c.h.bf16 %v1179
      %v1264 = vunpack.c.l.bf16 %v1180
      %v1265 = vunpack.c.h.bf16 %v1180
      %v1266 = vunpack.c.l.bf16 %v1181
      %v1267 = vunpack.c.h.bf16 %v1181
      %v1268 = vunpack.c.l.bf16 %v1182
      %v1269 = vunpack.c.h.bf16 %v1182
      %v1270 = vunpack.c.l.bf16 %v1183
      %v1271 = vunpack.c.h.bf16 %v1183
      %v1272 = vunpack.c.l.bf16 %v1184
      %v1273 = vunpack.c.h.bf16 %v1184
      %v1274 = vunpack.c.l.bf16 %v1185
      %v1275 = vunpack.c.h.bf16 %v1185
      %v1276 = vunpack.c.l.bf16 %v1186
      %v1277 = vunpack.c.h.bf16 %v1186
      %v1278 = vunpack.c.l.bf16 %v1187
      %v1279 = vunpack.c.h.bf16 %v1187
      %v1280 = vunpack.c.l.bf16 %v1188
      %v1281 = vunpack.c.h.bf16 %v1188
      %v1282 = vunpack.c.l.bf16 %v1189
      %v1283 = vunpack.c.h.bf16 %v1189
      %v1284 = vunpack.c.l.bf16 %v1190
      %v1285 = vunpack.c.h.bf16 %v1190
      %v1286 = vunpack.c.l.bf16 %v1191
      %v1287 = vunpack.c.h.bf16 %v1191
      %v1288 = vunpack.c.l.bf16 %v1192
      %v1289 = vunpack.c.h.bf16 %v1192
      %v1290 = vunpack.c.l.bf16 %v1193
      %v1291 = vunpack.c.h.bf16 %v1193
      %v1292 = vunpack.c.l.bf16 %v1194
      %v1293 = vunpack.c.h.bf16 %v1194
      %v1294 = vunpack.c.l.bf16 %v1195
      %v1295 = vunpack.c.h.bf16 %v1195
      %v1296 = vunpack.c.l.bf16 %v1196
      %v1297 = vunpack.c.h.bf16 %v1196
      %v1298 = vunpack.c.l.bf16 %v1197
      %v1299 = vunpack.c.h.bf16 %v1197
      %v1300 = vunpack.c.l.bf16 %v1198
      %v1301 = vunpack.c.h.bf16 %v1198
      %v1302 = vunpack.c.l.bf16 %v1199
      %v1303 = vunpack.c.h.bf16 %v1199
      %v1304 = vunpack.c.l.bf16 %v1200
      %v1305 = vunpack.c.h.bf16 %v1200
      %v1306 = vunpack.c.l.bf16 %v1201
      %v1307 = vunpack.c.h.bf16 %v1201
      %v1308 = vunpack.c.l.bf16 %v1202
      %v1309 = vunpack.c.h.bf16 %v1202
      %v1310 = vunpack.c.l.bf16 %v1203
      %v1311 = vunpack.c.h.bf16 %v1203
      %v1312 = vunpack.c.l.bf16 %v1204
      %v1313 = vunpack.c.h.bf16 %v1204
      %v1314 = vunpack.c.l.bf16 %v1205
      %v1315 = vunpack.c.h.bf16 %v1205
      %v1316 = vunpack.c.l.bf16 %v1206
      %v1317 = vunpack.c.h.bf16 %v1206
      %v1318 = vunpack.c.l.bf16 %v1207
      %v1319 = vunpack.c.h.bf16 %v1207
      %v1320 = vunpack.c.l.bf16 %v1208
      %v1321 = vunpack.c.h.bf16 %v1208
      %v1322 = vunpack.c.l.bf16 %v1209
      %v1323 = vunpack.c.h.bf16 %v1209
      %v1324 = vunpack.c.l.bf16 %v1210
      %v1325 = vunpack.c.h.bf16 %v1210
      %v1326 = vunpack.c.l.bf16 %v1211
      %v1327 = vunpack.c.h.bf16 %v1211
      %v1328 = vunpack.c.l.bf16 %v1212
      %v1329 = vunpack.c.h.bf16 %v1212
      %v1330 = vunpack.c.l.bf16 %v1213
      %v1331 = vunpack.c.h.bf16 %v1213
      %v1332 = vunpack.c.l.bf16 %v1214
      %v1333 = vunpack.c.h.bf16 %v1214
      %v1334 = vunpack.c.l.bf16 %v1215
      %v1335 = vunpack.c.h.bf16 %v1215
      %v1336 = vunpack.c.l.bf16 %v1216
      %v1337 = vunpack.c.h.bf16 %v1216
      %v1338 = vunpack.c.l.bf16 %v1217
      %v1339 = vunpack.c.h.bf16 %v1217
      %v1340 = vunpack.c.l.bf16 %v1218
      %v1341 = vunpack.c.h.bf16 %v1218
      %v1342 = vunpack.c.l.bf16 %v1219
      %v1343 = vunpack.c.h.bf16 %v1219
      %v1344 = vunpack.c.l.bf16 %v1220
      %v1345 = vunpack.c.h.bf16 %v1220
      %v1346 = vunpack.c.l.bf16 %v1221
      %v1347 = vunpack.c.h.bf16 %v1221
      %v1348 = vunpack.c.l.bf16 %v1222
      %v1349 = vunpack.c.h.bf16 %v1222
      %v1350 = vunpack.c.l.bf16 %v1223
      %v1351 = vunpack.c.h.bf16 %v1223
      %v1352 = vunpack.c.l.bf16 %v1224
      %v1353 = vunpack.c.h.bf16 %v1224
      %v1354 = vunpack.c.l.bf16 %v1225
      %v1355 = vunpack.c.h.bf16 %v1225
      %v1356 = vunpack.c.l.bf16 %v1226
      %v1357 = vunpack.c.h.bf16 %v1226
      %v1358 = vunpack.c.l.bf16 %v1227
      %v1359 = vunpack.c.h.bf16 %v1227
      %v1360 = vunpack.c.l.bf16 %v1228
      %v1361 = vunpack.c.h.bf16 %v1228
      %v1362 = vunpack.c.l.bf16 %v1229
      %v1363 = vunpack.c.h.bf16 %v1229
      %v1364 = vunpack.c.l.bf16 %v1230
      %v1365 = vunpack.c.h.bf16 %v1230
      %v1366 = vunpack.c.l.bf16 %v1231
      %v1367 = vunpack.c.h.bf16 %v1231
      %v1368 = vunpack.c.l.bf16 %v1232
      %v1369 = vunpack.c.h.bf16 %v1232
      %v1370 = vunpack.c.l.bf16 %v1240
      %v1371 = vunpack.c.l.bf16 %v1243
      %v1372 = vadd.f32 %v1244, %v1370
      %v1373 = vadd.f32 %v1245, %v1371
      %v1374 = vadd.f32 %v1246, %v1370
      %v1375 = vadd.f32 %v1247, %v1371
      %v1376 = vadd.f32 %v1248, %v1370
      %v1377 = vadd.f32 %v1249, %v1371
      %v1378 = vadd.f32 %v1250, %v1370
      %v1379 = vadd.f32 %v1251, %v1371
      %v1380 = vadd.f32 %v1252, %v1370
      %v1381 = vadd.f32 %v1253, %v1371
      %v1382 = vadd.f32 %v1254, %v1370
      %v1383 = vadd.f32 %v1255, %v1371
      %v1384 = vadd.f32 %v1256, %v1370
      %v1385 = vadd.f32 %v1257, %v1371
      %v1386 = vadd.f32 %v1258, %v1370
      %v1387 = vadd.f32 %v1259, %v1371
      %v1388 = vadd.f32 %v1260, %v1370
      %v1389 = vadd.f32 %v1261, %v1371
      %v1390 = vadd.f32 %v1262, %v1370
      %v1391 = vadd.f32 %v1263, %v1371
      %v1392 = vadd.f32 %v1264, %v1370
      %v1393 = vadd.f32 %v1265, %v1371
      %v1394 = vadd.f32 %v1266, %v1370
      %v1395 = vadd.f32 %v1267, %v1371
      %v1396 = vadd.f32 %v1268, %v1370
      %v1397 = vadd.f32 %v1269, %v1371
      %v1398 = vadd.f32 %v1270, %v1370
      %v1399 = vadd.f32 %v1271, %v1371
      %v1400 = vadd.f32 %v1272, %v1370
      %v1401 = vadd.f32 %v1273, %v1371
      %v1402 = vadd.f32 %v1274, %v1370
      %v1403 = vadd.f32 %v1275, %v1371
      %v1404 = vadd.f32 %v1276, %v1370
      %v1405 = vadd.f32 %v1277, %v1371
      %v1406 = vadd.f32 %v1278, %v1370
      %v1407 = vadd.f32 %v1279, %v1371
      %v1408 = vadd.f32 %v1280, %v1370
      %v1409 = vadd.f32 %v1281, %v1371
      %v1410 = vadd.f32 %v1282, %v1370
      %v1411 = vadd.f32 %v1283, %v1371
      %v1412 = vadd.f32 %v1284, %v1370
      %v1413 = vadd.f32 %v1285, %v1371
      %v1414 = vadd.f32 %v1286, %v1370
      %v1415 = vadd.f32 %v1287, %v1371
      %v1416 = vadd.f32 %v1288, %v1370
      %v1417 = vadd.f32 %v1289, %v1371
      %v1418 = vadd.f32 %v1290, %v1370
      %v1419 = vadd.f32 %v1291, %v1371
      %v1420 = vadd.f32 %v1292, %v1370
      %v1421 = vadd.f32 %v1293, %v1371
      %v1422 = vadd.f32 %v1294, %v1370
      %v1423 = vadd.f32 %v1295, %v1371
      %v1424 = vadd.f32 %v1296, %v1370
      %v1425 = vadd.f32 %v1297, %v1371
      %v1426 = vadd.f32 %v1298, %v1370
      %v1427 = vadd.f32 %v1299, %v1371
      %v1428 = vadd.f32 %v1300, %v1370
      %v1429 = vadd.f32 %v1301, %v1371
      %v1430 = vadd.f32 %v1302, %v1370
      %v1431 = vadd.f32 %v1303, %v1371
      %v1432 = vadd.f32 %v1304, %v1370
      %v1433 = vadd.f32 %v1305, %v1371
      %v1434 = vadd.f32 %v1306, %v1370
      %v1435 = vadd.f32 %v1307, %v1371
      %v1436 = vadd.f32 %v1308, %v1370
      %v1437 = vadd.f32 %v1309, %v1371
      %v1438 = vadd.f32 %v1310, %v1370
      %v1439 = vadd.f32 %v1311, %v1371
      %v1440 = vadd.f32 %v1312, %v1370
      %v1441 = vadd.f32 %v1313, %v1371
      %v1442 = vadd.f32 %v1314, %v1370
      %v1443 = vadd.f32 %v1315, %v1371
      %v1444 = vadd.f32 %v1316, %v1370
      %v1445 = vadd.f32 %v1317, %v1371
      %v1446 = vadd.f32 %v1318, %v1370
      %v1447 = vadd.f32 %v1319, %v1371
      %v1448 = vadd.f32 %v1320, %v1370
      %v1449 = vadd.f32 %v1321, %v1371
      %v1450 = vadd.f32 %v1322, %v1370
      %v1451 = vadd.f32 %v1323, %v1371
      %v1452 = vadd.f32 %v1324, %v1370
      %v1453 = vadd.f32 %v1325, %v1371
      %v1454 = vadd.f32 %v1326, %v1370
      %v1455 = vadd.f32 %v1327, %v1371
      %v1456 = vadd.f32 %v1328, %v1370
      %v1457 = vadd.f32 %v1329, %v1371
      %v1458 = vadd.f32 %v1330, %v1370
      %v1459 = vadd.f32 %v1331, %v1371
      %v1460 = vadd.f32 %v1332, %v1370
      %v1461 = vadd.f32 %v1333, %v1371
      %v1462 = vadd.f32 %v1334, %v1370
      %v1463 = vadd.f32 %v1335, %v1371
      %v1464 = vadd.f32 %v1336, %v1370
      %v1465 = vadd.f32 %v1337, %v1371
      %v1466 = vadd.f32 %v1338, %v1370
      %v1467 = vadd.f32 %v1339, %v1371
      %v1468 = vadd.f32 %v1340, %v1370
      %v1469 = vadd.f32 %v1341, %v1371
      %v1470 = vadd.f32 %v1342, %v1370
      %v1471 = vadd.f32 %v1343, %v1371
      %v1472 = vadd.f32 %v1344, %v1370
      %v1473 = vadd.f32 %v1345, %v1371
      %v1474 = vadd.f32 %v1346, %v1370
      %v1475 = vadd.f32 %v1347, %v1371
      %v1476 = vadd.f32 %v1348, %v1370
      %v1477 = vadd.f32 %v1349, %v1371
      %v1478 = vadd.f32 %v1350, %v1370
      %v1479 = vadd.f32 %v1351, %v1371
      %v1480 = vadd.f32 %v1352, %v1370
      %v1481 = vadd.f32 %v1353, %v1371
      %v1482 = vadd.f32 %v1354, %v1370
      %v1483 = vadd.f32 %v1355, %v1371
      %v1484 = vadd.f32 %v1356, %v1370
      %v1485 = vadd.f32 %v1357, %v1371
      %v1486 = vadd.f32 %v1358, %v1370
      %v1487 = vadd.f32 %v1359, %v1371
      %v1488 = vadd.f32 %v1360, %v1370
      %v1489 = vadd.f32 %v1361, %v1371
      %v1490 = vadd.f32 %v1362, %v1370
      %v1491 = vadd.f32 %v1363, %v1371
      %v1492 = vadd.f32 %v1364, %v1370
      %v1493 = vadd.f32 %v1365, %v1371
      %v1494 = vadd.f32 %v1366, %v1370
      %v1495 = vadd.f32 %v1367, %v1371
      %v1496 = vadd.f32 %v1368, %v1370
      %v1497 = vadd.f32 %v1369, %v1371
      %v1498 = vpack.c.bf16 %v1373, %v1372
      %v1499 = vpack.c.bf16 %v1375, %v1374
      %v1500 = vpack.c.bf16 %v1377, %v1376
      %v1501 = vpack.c.bf16 %v1379, %v1378
      %v1502 = vpack.c.bf16 %v1381, %v1380
      %v1503 = vpack.c.bf16 %v1383, %v1382
      %v1504 = vpack.c.bf16 %v1385, %v1384
      %v1505 = vpack.c.bf16 %v1387, %v1386
      %v1506 = vpack.c.bf16 %v1389, %v1388
      %v1507 = vpack.c.bf16 %v1391, %v1390
      %v1508 = vpack.c.bf16 %v1393, %v1392
      %v1509 = vpack.c.bf16 %v1395, %v1394
      %v1510 = vpack.c.bf16 %v1397, %v1396
      %v1511 = vpack.c.bf16 %v1399, %v1398
      %v1512 = vpack.c.bf16 %v1401, %v1400
      %v1513 = vpack.c.bf16 %v1403, %v1402
      %v1514 = vpack.c.bf16 %v1405, %v1404
      %v1515 = vpack.c.bf16 %v1407, %v1406
      %v1516 = vpack.c.bf16 %v1409, %v1408
      %v1517 = vpack.c.bf16 %v1411, %v1410
      %v1518 = vpack.c.bf16 %v1413, %v1412
      %v1519 = vpack.c.bf16 %v1415, %v1414
      %v1520 = vpack.c.bf16 %v1417, %v1416
      %v1521 = vpack.c.bf16 %v1419, %v1418
      %v1522 = vpack.c.bf16 %v1421, %v1420
      %v1523 = vpack.c.bf16 %v1423, %v1422
      %v1524 = vpack.c.bf16 %v1425, %v1424
      %v1525 = vpack.c.bf16 %v1427, %v1426
      %v1526 = vpack.c.bf16 %v1429, %v1428
      %v1527 = vpack.c.bf16 %v1431, %v1430
      %v1528 = vpack.c.bf16 %v1433, %v1432
      %v1529 = vpack.c.bf16 %v1435, %v1434
      %v1530 = vpack.c.bf16 %v1437, %v1436
      %v1531 = vpack.c.bf16 %v1439, %v1438
      %v1532 = vpack.c.bf16 %v1441, %v1440
      %v1533 = vpack.c.bf16 %v1443, %v1442
      %v1534 = vpack.c.bf16 %v1445, %v1444
      %v1535 = vpack.c.bf16 %v1447, %v1446
      %v1536 = vpack.c.bf16 %v1449, %v1448
      %v1537 = vpack.c.bf16 %v1451, %v1450
      %v1538 = vpack.c.bf16 %v1453, %v1452
      %v1539 = vpack.c.bf16 %v1455, %v1454
      %v1540 = vpack.c.bf16 %v1457, %v1456
      %v1541 = vpack.c.bf16 %v1459, %v1458
      %v1542 = vpack.c.bf16 %v1461, %v1460
      %v1543 = vpack.c.bf16 %v1463, %v1462
      %v1544 = vpack.c.bf16 %v1465, %v1464
      %v1545 = vpack.c.bf16 %v1467, %v1466
      %v1546 = vpack.c.bf16 %v1469, %v1468
      %v1547 = vpack.c.bf16 %v1471, %v1470
      %v1548 = vpack.c.bf16 %v1473, %v1472
      %v1549 = vpack.c.bf16 %v1475, %v1474
      %v1550 = vpack.c.bf16 %v1477, %v1476
      %v1551 = vpack.c.bf16 %v1479, %v1478
      %v1552 = vpack.c.bf16 %v1481, %v1480
      %v1553 = vpack.c.bf16 %v1483, %v1482
      %v1554 = vpack.c.bf16 %v1485, %v1484
      %v1555 = vpack.c.bf16 %v1487, %v1486
      %v1556 = vpack.c.bf16 %v1489, %v1488
      %v1557 = vpack.c.bf16 %v1491, %v1490
      %v1558 = vpack.c.bf16 %v1493, %v1492
      %v1559 = vpack.c.bf16 %v1495, %v1494
      %v1560 = vpack.c.bf16 %v1497, %v1496
      %v1561 = vunpack.c.l.bf16 %v1498
      %v1562 = vunpack.c.h.bf16 %v1498
      %v1563 = vunpack.c.l.bf16 %v1499
      %v1564 = vunpack.c.h.bf16 %v1499
      %v1565 = vunpack.c.l.bf16 %v1500
      %v1566 = vunpack.c.h.bf16 %v1500
      %v1567 = vunpack.c.l.bf16 %v1501
      %v1568 = vunpack.c.h.bf16 %v1501
      %v1569 = vunpack.c.l.bf16 %v1502
      %v1570 = vunpack.c.h.bf16 %v1502
      %v1571 = vunpack.c.l.bf16 %v1503
      %v1572 = vunpack.c.h.bf16 %v1503
      %v1573 = vunpack.c.l.bf16 %v1504
      %v1574 = vunpack.c.h.bf16 %v1504
      %v1575 = vunpack.c.l.bf16 %v1505
      %v1576 = vunpack.c.h.bf16 %v1505
      %v1577 = vunpack.c.l.bf16 %v1506
      %v1578 = vunpack.c.h.bf16 %v1506
      %v1579 = vunpack.c.l.bf16 %v1507
      %v1580 = vunpack.c.h.bf16 %v1507
      %v1581 = vunpack.c.l.bf16 %v1508
      %v1582 = vunpack.c.h.bf16 %v1508
      %v1583 = vunpack.c.l.bf16 %v1509
      %v1584 = vunpack.c.h.bf16 %v1509
      %v1585 = vunpack.c.l.bf16 %v1510
      %v1586 = vunpack.c.h.bf16 %v1510
      %v1587 = vunpack.c.l.bf16 %v1511
      %v1588 = vunpack.c.h.bf16 %v1511
      %v1589 = vunpack.c.l.bf16 %v1512
      %v1590 = vunpack.c.h.bf16 %v1512
      %v1591 = vunpack.c.l.bf16 %v1513
      %v1592 = vunpack.c.h.bf16 %v1513
      %v1593 = vunpack.c.l.bf16 %v1514
      %v1594 = vunpack.c.h.bf16 %v1514
      %v1595 = vunpack.c.l.bf16 %v1515
      %v1596 = vunpack.c.h.bf16 %v1515
      %v1597 = vunpack.c.l.bf16 %v1516
      %v1598 = vunpack.c.h.bf16 %v1516
      %v1599 = vunpack.c.l.bf16 %v1517
      %v1600 = vunpack.c.h.bf16 %v1517
      %v1601 = vunpack.c.l.bf16 %v1518
      %v1602 = vunpack.c.h.bf16 %v1518
      %v1603 = vunpack.c.l.bf16 %v1519
      %v1604 = vunpack.c.h.bf16 %v1519
      %v1605 = vunpack.c.l.bf16 %v1520
      %v1606 = vunpack.c.h.bf16 %v1520
      %v1607 = vunpack.c.l.bf16 %v1521
      %v1608 = vunpack.c.h.bf16 %v1521
      %v1609 = vunpack.c.l.bf16 %v1522
      %v1610 = vunpack.c.h.bf16 %v1522
      %v1611 = vunpack.c.l.bf16 %v1523
      %v1612 = vunpack.c.h.bf16 %v1523
      %v1613 = vunpack.c.l.bf16 %v1524
      %v1614 = vunpack.c.h.bf16 %v1524
      %v1615 = vunpack.c.l.bf16 %v1525
      %v1616 = vunpack.c.h.bf16 %v1525
      %v1617 = vunpack.c.l.bf16 %v1526
      %v1618 = vunpack.c.h.bf16 %v1526
      %v1619 = vunpack.c.l.bf16 %v1527
      %v1620 = vunpack.c.h.bf16 %v1527
      %v1621 = vunpack.c.l.bf16 %v1528
      %v1622 = vunpack.c.h.bf16 %v1528
      %v1623 = vunpack.c.l.bf16 %v1529
      %v1624 = vunpack.c.h.bf16 %v1529
      %v1625 = vunpack.c.l.bf16 %v1530
      %v1626 = vunpack.c.h.bf16 %v1530
      %v1627 = vunpack.c.l.bf16 %v1531
      %v1628 = vunpack.c.h.bf16 %v1531
      %v1629 = vunpack.c.l.bf16 %v1532
      %v1630 = vunpack.c.h.bf16 %v1532
      %v1631 = vunpack.c.l.bf16 %v1533
      %v1632 = vunpack.c.h.bf16 %v1533
      %v1633 = vunpack.c.l.bf16 %v1534
      %v1634 = vunpack.c.h.bf16 %v1534
      %v1635 = vunpack.c.l.bf16 %v1535
      %v1636 = vunpack.c.h.bf16 %v1535
      %v1637 = vunpack.c.l.bf16 %v1536
      %v1638 = vunpack.c.h.bf16 %v1536
      %v1639 = vunpack.c.l.bf16 %v1537
      %v1640 = vunpack.c.h.bf16 %v1537
      %v1641 = vunpack.c.l.bf16 %v1538
      %v1642 = vunpack.c.h.bf16 %v1538
      %v1643 = vunpack.c.l.bf16 %v1539
      %v1644 = vunpack.c.h.bf16 %v1539
      %v1645 = vunpack.c.l.bf16 %v1540
      %v1646 = vunpack.c.h.bf16 %v1540
      %v1647 = vunpack.c.l.bf16 %v1541
      %v1648 = vunpack.c.h.bf16 %v1541
      %v1649 = vunpack.c.l.bf16 %v1542
      %v1650 = vunpack.c.h.bf16 %v1542
      %v1651 = vunpack.c.l.bf16 %v1543
      %v1652 = vunpack.c.h.bf16 %v1543
      %v1653 = vunpack.c.l.bf16 %v1544
      %v1654 = vunpack.c.h.bf16 %v1544
      %v1655 = vunpack.c.l.bf16 %v1545
      %v1656 = vunpack.c.h.bf16 %v1545
      %v1657 = vunpack.c.l.bf16 %v1546
      %v1658 = vunpack.c.h.bf16 %v1546
      %v1659 = vunpack.c.l.bf16 %v1547
      %v1660 = vunpack.c.h.bf16 %v1547
      %v1661 = vunpack.c.l.bf16 %v1548
      %v1662 = vunpack.c.h.bf16 %v1548
      %v1663 = vunpack.c.l.bf16 %v1549
      %v1664 = vunpack.c.h.bf16 %v1549
      %v1665 = vunpack.c.l.bf16 %v1550
      %v1666 = vunpack.c.h.bf16 %v1550
      %v1667 = vunpack.c.l.bf16 %v1551
      %v1668 = vunpack.c.h.bf16 %v1551
      %v1669 = vunpack.c.l.bf16 %v1552
      %v1670 = vunpack.c.h.bf16 %v1552
      %v1671 = vunpack.c.l.bf16 %v1553
      %v1672 = vunpack.c.h.bf16 %v1553
      %v1673 = vunpack.c.l.bf16 %v1554
      %v1674 = vunpack.c.h.bf16 %v1554
      %v1675 = vunpack.c.l.bf16 %v1555
      %v1676 = vunpack.c.h.bf16 %v1555
      %v1677 = vunpack.c.l.bf16 %v1556
      %v1678 = vunpack.c.h.bf16 %v1556
      %v1679 = vunpack.c.l.bf16 %v1557
      %v1680 = vunpack.c.h.bf16 %v1557
      %v1681 = vunpack.c.l.bf16 %v1558
      %v1682 = vunpack.c.h.bf16 %v1558
      %v1683 = vunpack.c.l.bf16 %v1559
      %v1684 = vunpack.c.h.bf16 %v1559
      %v1685 = vunpack.c.l.bf16 %v1560
      %v1686 = vunpack.c.h.bf16 %v1560
      %v1687 = vmax.f32 %v1561, 0.0
      %v1688 = vmax.f32 %v1562, 0.0
      %v1689 = vmax.f32 %v1563, 0.0
      %v1690 = vmax.f32 %v1564, 0.0
      %v1691 = vmax.f32 %v1565, 0.0
      %v1692 = vmax.f32 %v1566, 0.0
      %v1693 = vmax.f32 %v1567, 0.0
      %v1694 = vmax.f32 %v1568, 0.0
      %v1695 = vmax.f32 %v1569, 0.0
      %v1696 = vmax.f32 %v1570, 0.0
      %v1697 = vmax.f32 %v1571, 0.0
      %v1698 = vmax.f32 %v1572, 0.0
      %v1699 = vmax.f32 %v1573, 0.0
      %v1700 = vmax.f32 %v1574, 0.0
      %v1701 = vmax.f32 %v1575, 0.0
      %v1702 = vmax.f32 %v1576, 0.0
      %v1703 = vmax.f32 %v1577, 0.0
      %v1704 = vmax.f32 %v1578, 0.0
      %v1705 = vmax.f32 %v1579, 0.0
      %v1706 = vmax.f32 %v1580, 0.0
      %v1707 = vmax.f32 %v1581, 0.0
      %v1708 = vmax.f32 %v1582, 0.0
      %v1709 = vmax.f32 %v1583, 0.0
      %v1710 = vmax.f32 %v1584, 0.0
      %v1711 = vmax.f32 %v1585, 0.0
      %v1712 = vmax.f32 %v1586, 0.0
      %v1713 = vmax.f32 %v1587, 0.0
      %v1714 = vmax.f32 %v1588, 0.0
      %v1715 = vmax.f32 %v1589, 0.0
      %v1716 = vmax.f32 %v1590, 0.0
      %v1717 = vmax.f32 %v1591, 0.0
      %v1718 = vmax.f32 %v1592, 0.0
      %v1719 = vmax.f32 %v1593, 0.0
      %v1720 = vmax.f32 %v1594, 0.0
      %v1721 = vmax.f32 %v1595, 0.0
      %v1722 = vmax.f32 %v1596, 0.0
      %v1723 = vmax.f32 %v1597, 0.0
      %v1724 = vmax.f32 %v1598, 0.0
      %v1725 = vmax.f32 %v1599, 0.0
      %v1726 = vmax.f32 %v1600, 0.0
      %v1727 = vmax.f32 %v1601, 0.0
      %v1728 = vmax.f32 %v1602, 0.0
      %v1729 = vmax.f32 %v1603, 0.0
      %v1730 = vmax.f32 %v1604, 0.0
      %v1731 = vmax.f32 %v1605, 0.0
      %v1732 = vmax.f32 %v1606, 0.0
      %v1733 = vmax.f32 %v1607, 0.0
      %v1734 = vmax.f32 %v1608, 0.0
      %v1735 = vmax.f32 %v1609, 0.0
      %v1736 = vmax.f32 %v1610, 0.0
      %v1737 = vmax.f32 %v1611, 0.0
      %v1738 = vmax.f32 %v1612, 0.0
      %v1739 = vmax.f32 %v1613, 0.0
      %v1740 = vmax.f32 %v1614, 0.0
      %v1741 = vmax.f32 %v1615, 0.0
      %v1742 = vmax.f32 %v1616, 0.0
      %v1743 = vmax.f32 %v1617, 0.0
      %v1744 = vmax.f32 %v1618, 0.0
      %v1745 = vmax.f32 %v1619, 0.0
      %v1746 = vmax.f32 %v1620, 0.0
      %v1747 = vmax.f32 %v1621, 0.0
      %v1748 = vmax.f32 %v1622, 0.0
      %v1749 = vmax.f32 %v1623, 0.0
      %v1750 = vmax.f32 %v1624, 0.0
      %v1751 = vmax.f32 %v1625, 0.0
      %v1752 = vmax.f32 %v1626, 0.0
      %v1753 = vmax.f32 %v1627, 0.0
      %v1754 = vmax.f32 %v1628, 0.0
      %v1755 = vmax.f32 %v1629, 0.0
      %v1756 = vmax.f32 %v1630, 0.0
      %v1757 = vmax.f32 %v1631, 0.0
      %v1758 = vmax.f32 %v1632, 0.0
      %v1759 = vmax.f32 %v1633, 0.0
      %v1760 = vmax.f32 %v1634, 0.0
      %v1761 = vmax.f32 %v1635, 0.0
      %v1762 = vmax.f32 %v1636, 0.0
      %v1763 = vmax.f32 %v1637, 0.0
      %v1764 = vmax.f32 %v1638, 0.0
      %v1765 = vmax.f32 %v1639, 0.0
      %v1766 = vmax.f32 %v1640, 0.0
      %v1767 = vmax.f32 %v1641, 0.0
      %v1768 = vmax.f32 %v1642, 0.0
      %v1769 = vmax.f32 %v1643, 0.0
      %v1770 = vmax.f32 %v1644, 0.0
      %v1771 = vmax.f32 %v1645, 0.0
      %v1772 = vmax.f32 %v1646, 0.0
      %v1773 = vmax.f32 %v1647, 0.0
      %v1774 = vmax.f32 %v1648, 0.0
      %v1775 = vmax.f32 %v1649, 0.0
      %v1776 = vmax.f32 %v1650, 0.0
      %v1777 = vmax.f32 %v1651, 0.0
      %v1778 = vmax.f32 %v1652, 0.0
      %v1779 = vmax.f32 %v1653, 0.0
      %v1780 = vmax.f32 %v1654, 0.0
      %v1781 = vmax.f32 %v1655, 0.0
      %v1782 = vmax.f32 %v1656, 0.0
      %v1783 = vmax.f32 %v1657, 0.0
      %v1784 = vmax.f32 %v1658, 0.0
      %v1785 = vmax.f32 %v1659, 0.0
      %v1786 = vmax.f32 %v1660, 0.0
      %v1787 = vmax.f32 %v1661, 0.0
      %v1788 = vmax.f32 %v1662, 0.0
      %v1789 = vmax.f32 %v1663, 0.0
      %v1790 = vmax.f32 %v1664, 0.0
      %v1791 = vmax.f32 %v1665, 0.0
      %v1792 = vmax.f32 %v1666, 0.0
      %v1793 = vmax.f32 %v1667, 0.0
      %v1794 = vmax.f32 %v1668, 0.0
      %v1795 = vmax.f32 %v1669, 0.0
      %v1796 = vmax.f32 %v1670, 0.0
      %v1797 = vmax.f32 %v1671, 0.0
      %v1798 = vmax.f32 %v1672, 0.0
      %v1799 = vmax.f32 %v1673, 0.0
      %v1800 = vmax.f32 %v1674, 0.0
      %v1801 = vmax.f32 %v1675, 0.0
      %v1802 = vmax.f32 %v1676, 0.0
      %v1803 = vmax.f32 %v1677, 0.0
      %v1804 = vmax.f32 %v1678, 0.0
      %v1805 = vmax.f32 %v1679, 0.0
      %v1806 = vmax.f32 %v1680, 0.0
      %v1807 = vmax.f32 %v1681, 0.0
      %v1808 = vmax.f32 %v1682, 0.0
      %v1809 = vmax.f32 %v1683, 0.0
      %v1810 = vmax.f32 %v1684, 0.0
      %v1811 = vmax.f32 %v1685, 0.0
      %v1812 = vmax.f32 %v1686, 0.0
      %v1813 = vpack.c.bf16 %v1689, %v1687
      %v1814 = vpack.c.bf16 %v1690, %v1688
      %v1815 = vpack.c.bf16 %v1693, %v1691
      %v1816 = vpack.c.bf16 %v1694, %v1692
      %v1817 = vpack.c.bf16 %v1697, %v1695
      %v1818 = vpack.c.bf16 %v1698, %v1696
      %v1819 = vpack.c.bf16 %v1701, %v1699
      %v1820 = vpack.c.bf16 %v1702, %v1700
      %v1821 = vpack.c.bf16 %v1705, %v1703
      %v1822 = vpack.c.bf16 %v1706, %v1704
      %v1823 = vpack.c.bf16 %v1709, %v1707
      %v1824 = vpack.c.bf16 %v1710, %v1708
      %v1825 = vpack.c.bf16 %v1713, %v1711
      %v1826 = vpack.c.bf16 %v1714, %v1712
      %v1827 = vpack.c.bf16 %v1717, %v1715
      %v1828 = vpack.c.bf16 %v1718, %v1716
      %v1829 = vpack.c.bf16 %v1721, %v1719
      %v1830 = vpack.c.bf16 %v1722, %v1720
      %v1831 = vpack.c.bf16 %v1725, %v1723
      %v1832 = vpack.c.bf16 %v1726, %v1724
      %v1833 = vpack.c.bf16 %v1729, %v1727
      %v1834 = vpack.c.bf16 %v1730, %v1728
      %v1835 = vpack.c.bf16 %v1733, %v1731
      %v1836 = vpack.c.bf16 %v1734, %v1732
      %v1837 = vpack.c.bf16 %v1737, %v1735
      %v1838 = vpack.c.bf16 %v1738, %v1736
      %v1839 = vpack.c.bf16 %v1741, %v1739
      %v1840 = vpack.c.bf16 %v1742, %v1740
      %v1841 = vpack.c.bf16 %v1745, %v1743
      %v1842 = vpack.c.bf16 %v1746, %v1744
      %v1843 = vpack.c.bf16 %v1749, %v1747
      %v1844 = vpack.c.bf16 %v1750, %v1748
      %v1845 = vpack.c.bf16 %v1753, %v1751
      %v1846 = vpack.c.bf16 %v1754, %v1752
      %v1847 = vpack.c.bf16 %v1757, %v1755
      %v1848 = vpack.c.bf16 %v1758, %v1756
      %v1849 = vpack.c.bf16 %v1761, %v1759
      %v1850 = vpack.c.bf16 %v1762, %v1760
      %v1851 = vpack.c.bf16 %v1765, %v1763
      %v1852 = vpack.c.bf16 %v1766, %v1764
      %v1853 = vpack.c.bf16 %v1769, %v1767
      %v1854 = vpack.c.bf16 %v1770, %v1768
      %v1855 = vpack.c.bf16 %v1773, %v1771
      %v1856 = vpack.c.bf16 %v1774, %v1772
      %v1857 = vpack.c.bf16 %v1777, %v1775
      %v1858 = vpack.c.bf16 %v1778, %v1776
      %v1859 = vpack.c.bf16 %v1781, %v1779
      %v1860 = vpack.c.bf16 %v1782, %v1780
      %v1861 = vpack.c.bf16 %v1785, %v1783
      %v1862 = vpack.c.bf16 %v1786, %v1784
      %v1863 = vpack.c.bf16 %v1789, %v1787
      %v1864 = vpack.c.bf16 %v1790, %v1788
      %v1865 = vpack.c.bf16 %v1793, %v1791
      %v1866 = vpack.c.bf16 %v1794, %v1792
      %v1867 = vpack.c.bf16 %v1797, %v1795
      %v1868 = vpack.c.bf16 %v1798, %v1796
      %v1869 = vpack.c.bf16 %v1801, %v1799
      %v1870 = vpack.c.bf16 %v1802, %v1800
      %v1871 = vpack.c.bf16 %v1805, %v1803
      %v1872 = vpack.c.bf16 %v1806, %v1804
      %v1873 = vpack.c.bf16 %v1809, %v1807
      %v1874 = vpack.c.bf16 %v1810, %v1808
      %v1875 = vpack.c.bf16 %v1811, %v1811
      %v1876 = vpack.c.bf16 %v1812, %v1812
      %v1877 = vld [vmem:[%s4] sm:$0xff]
      %v1878 = vld [vmem:[%s4 + $0x8] sm:$0xff]
      %v1879 = vld [vmem:[%s4 + $0x10] sm:$0xff]
      %v1880 = vld [vmem:[%s4 + $0x18] sm:$0xff]
      %v1881 = vld [vmem:[%s4 + $0x20] sm:$0xff]
      %v1882 = vld [vmem:[%s4 + $0x28] sm:$0xff]
      %v1883 = vld [vmem:[%s4 + $0x30] sm:$0xff]
      %v1884 = vld [vmem:[%s4 + $0x38] sm:$0xff]
      %v1885 = vld [vmem:[%s4 + $0x40] sm:$0xff]
      %v1886 = vld [vmem:[%s4 + $0x48] sm:$0xff]
      %v1887 = vld [vmem:[%s4 + $0x50] sm:$0xff]
      %v1888 = vld [vmem:[%s4 + $0x58] sm:$0xff]
      %v1889 = vld [vmem:[%s4 + $0x60] sm:$0xff]
      %v1890 = vld [vmem:[%s4 + $0x68] sm:$0xff]
      %v1891 = vld [vmem:[%s4 + $0x70] sm:$0xff]
      %v1892 = vld [vmem:[%s4 + $0x78] sm:$0xff]
      %v1893 = vld [vmem:[%s4 + $0x80] sm:$0xff]
      %v1894 = vld [vmem:[%s4 + $0x88] sm:$0xff]
      %v1895 = vld [vmem:[%s4 + $0x90] sm:$0xff]
      %v1896 = vld [vmem:[%s4 + $0x98] sm:$0xff]
      %v1897 = vld [vmem:[%s4 + $0xa0] sm:$0xff]
      %v1898 = vld [vmem:[%s4 + $0xa8] sm:$0xff]
      %v1899 = vld [vmem:[%s4 + $0xb0] sm:$0xff]
      %v1900 = vld [vmem:[%s4 + $0xb8] sm:$0xff]
      %v1901 = vld [vmem:[%s4 + $0xc0] sm:$0xff]
      %v1902 = vld [vmem:[%s4 + $0xc8] sm:$0xff]
      %v1903 = vld [vmem:[%s4 + $0xd0] sm:$0xff]
      %v1904 = vld [vmem:[%s4 + $0xd8] sm:$0xff]
      %v1905 = vld [vmem:[%s4 + $0xe0] sm:$0xff]
      %v1906 = vld [vmem:[%s4 + $0xe8] sm:$0xff]
      %v1907 = vld [vmem:[%s4 + $0xf0] sm:$0xff]
      %v1908 = vld [vmem:[%s4 + $0xf8] sm:$0xff]
      %v1941 = vunpack.c.l.b16 %v1877
      %v1942 = vunpack.c.h.b16 %v1877
      %v1943 = vunpack.c.l.b16 %v1878
      %v1944 = vunpack.c.h.b16 %v1878
      %v1945 = vunpack.c.l.b16 %v1879
      %v1946 = vunpack.c.h.b16 %v1879
      %v1947 = vunpack.c.l.b16 %v1880
      %v1948 = vunpack.c.h.b16 %v1880
      %v1949 = vunpack.c.l.b16 %v1881
      %v1950 = vunpack.c.h.b16 %v1881
      %v1951 = vunpack.c.l.b16 %v1882
      %v1952 = vunpack.c.h.b16 %v1882
      %v1953 = vunpack.c.l.b16 %v1883
      %v1954 = vunpack.c.h.b16 %v1883
      %v1955 = vunpack.c.l.b16 %v1884
      %v1956 = vunpack.c.h.b16 %v1884
      %v1957 = vunpack.c.l.b16 %v1885
      %v1958 = vunpack.c.h.b16 %v1885
      %v1959 = vunpack.c.l.b16 %v1886
      %v1960 = vunpack.c.h.b16 %v1886
      %v1961 = vunpack.c.l.b16 %v1887
      %v1962 = vunpack.c.h.b16 %v1887
      %v1963 = vunpack.c.l.b16 %v1888
      %v1964 = vunpack.c.h.b16 %v1888
      %v1965 = vunpack.c.l.b16 %v1889
      %v1966 = vunpack.c.h.b16 %v1889
      %v1967 = vunpack.c.l.b16 %v1890
      %v1968 = vunpack.c.h.b16 %v1890
      %v1969 = vunpack.c.l.b16 %v1891
      %v1970 = vunpack.c.h.b16 %v1891
      %v1971 = vunpack.c.l.b16 %v1892
      %v1972 = vunpack.c.h.b16 %v1892
      %v1973 = vunpack.c.l.b16 %v1893
      %v1974 = vunpack.c.h.b16 %v1893
      %v1975 = vunpack.c.l.b16 %v1894
      %v1976 = vunpack.c.h.b16 %v1894
      %v1977 = vunpack.c.l.b16 %v1895
      %v1978 = vunpack.c.h.b16 %v1895
      %v1979 = vunpack.c.l.b16 %v1896
      %v1980 = vunpack.c.h.b16 %v1896
      %v1981 = vunpack.c.l.b16 %v1897
      %v1982 = vunpack.c.h.b16 %v1897
      %v1983 = vunpack.c.l.b16 %v1898
      %v1984 = vunpack.c.h.b16 %v1898
      %v1985 = vunpack.c.l.b16 %v1899
      %v1986 = vunpack.c.h.b16 %v1899
      %v1987 = vunpack.c.l.b16 %v1900
      %v1988 = vunpack.c.h.b16 %v1900
      %v1989 = vunpack.c.l.b16 %v1901
      %v1990 = vunpack.c.h.b16 %v1901
      %v1991 = vunpack.c.l.b16 %v1902
      %v1992 = vunpack.c.h.b16 %v1902
      %v1993 = vunpack.c.l.b16 %v1903
      %v1994 = vunpack.c.h.b16 %v1903
      %v1995 = vunpack.c.l.b16 %v1904
      %v1996 = vunpack.c.h.b16 %v1904
      %v1997 = vunpack.c.l.b16 %v1905
      %v1998 = vunpack.c.h.b16 %v1905
      %v1999 = vunpack.c.l.b16 %v1906
      %v2000 = vunpack.c.h.b16 %v1906
      %v2001 = vunpack.c.l.b16 %v1907
      %v2002 = vunpack.c.h.b16 %v1907
      %v2003 = vunpack.c.l.b16 %v1908
      %v2004 = vunpack.c.h.b16 %v1908
      %v2005 = vpack.c.b16 %v1943, %v1941
      %v2006 = vpack.c.b16 %v1944, %v1942
      %v2007 = vpack.c.b16 %v1947, %v1945
      %v2008 = vpack.c.b16 %v1948, %v1946
      %v2009 = vpack.c.b16 %v1951, %v1949
      %v2010 = vpack.c.b16 %v1952, %v1950
      %v2011 = vpack.c.b16 %v1955, %v1953
      %v2012 = vpack.c.b16 %v1956, %v1954
      %v2013 = vpack.c.b16 %v1959, %v1957
      %v2014 = vpack.c.b16 %v1960, %v1958
      %v2015 = vpack.c.b16 %v1963, %v1961
      %v2016 = vpack.c.b16 %v1964, %v1962
      %v2017 = vpack.c.b16 %v1967, %v1965
      %v2018 = vpack.c.b16 %v1968, %v1966
      %v2019 = vpack.c.b16 %v1971, %v1969
      %v2020 = vpack.c.b16 %v1972, %v1970
      %v2021 = vpack.c.b16 %v1975, %v1973
      %v2022 = vpack.c.b16 %v1976, %v1974
      %v2023 = vpack.c.b16 %v1979, %v1977
      %v2024 = vpack.c.b16 %v1980, %v1978
      %v2025 = vpack.c.b16 %v1983, %v1981
      %v2026 = vpack.c.b16 %v1984, %v1982
      %v2027 = vpack.c.b16 %v1987, %v1985
      %v2028 = vpack.c.b16 %v1988, %v1986
      %v2029 = vpack.c.b16 %v1991, %v1989
      %v2030 = vpack.c.b16 %v1992, %v1990
      %v2031 = vpack.c.b16 %v1995, %v1993
      %v2032 = vpack.c.b16 %v1996, %v1994
      %v2033 = vpack.c.b16 %v1999, %v1997
      %v2034 = vpack.c.b16 %v2000, %v1998
      %v2035 = vpack.c.b16 %v2003, %v2001
      %v2036 = vpack.c.b16 %v2004, %v2002
      %2069 = vmatpush.bf16.msra.mxu0 %v2019
      %2070 = vmatpush.bf16.msra.mxu0 %v2017
      %2071 = vmatpush.bf16.msra.mxu0 %v2015
      %2072 = vmatpush.bf16.msra.mxu0 %v2013
      %2073 = vmatpush.bf16.msra.mxu0 %v2011
      %2074 = vmatpush.bf16.msra.mxu0 %v2009
      %2075 = vmatpush.bf16.msra.mxu0 %v2007
      %2076 = vmatpush.bf16.msra.mxu0 %v2005
      %2077 = vmatmul.bf16.gmra.mxu0 %v1813
      %v2078 = vpop.f32.mrf.mxu0
      %v2079 = vadd.f32 0.0, %v2078
      %v2080 = vpop.f32.mrf.mxu0
      %v2081 = vadd.f32 0.0, %v2080
      %2082 = vmatmul.bf16.gmra.mxu0 %v1815
      %v2083 = vpop.f32.mrf.mxu0
      %v2084 = vadd.f32 0.0, %v2083
      %v2085 = vpop.f32.mrf.mxu0
      %v2086 = vadd.f32 0.0, %v2085
      %2087 = vmatmul.bf16.gmra.mxu0 %v1817
      %v2088 = vpop.f32.mrf.mxu0
      %v2089 = vadd.f32 0.0, %v2088
      %v2090 = vpop.f32.mrf.mxu0
      %v2091 = vadd.f32 0.0, %v2090
      %2092 = vmatmul.bf16.gmra.mxu0 %v1819
      %v2093 = vpop.f32.mrf.mxu0
      %v2094 = vadd.f32 0.0, %v2093
      %v2095 = vpop.f32.mrf.mxu0
      %v2096 = vadd.f32 0.0, %v2095
      %2097 = vmatmul.bf16.gmra.mxu0 %v1821
      %v2098 = vpop.f32.mrf.mxu0
      %v2099 = vadd.f32 0.0, %v2098
      %v2100 = vpop.f32.mrf.mxu0
      %v2101 = vadd.f32 0.0, %v2100
      %2102 = vmatmul.bf16.gmra.mxu0 %v1823
      %v2103 = vpop.f32.mrf.mxu0
      %v2104 = vadd.f32 0.0, %v2103
      %v2105 = vpop.f32.mrf.mxu0
      %v2106 = vadd.f32 0.0, %v2105
      %2107 = vmatmul.bf16.gmra.mxu0 %v1825
      %v2108 = vpop.f32.mrf.mxu0
      %v2109 = vadd.f32 0.0, %v2108
      %v2110 = vpop.f32.mrf.mxu0
      %v2111 = vadd.f32 0.0, %v2110
      %2112 = vmatmul.bf16.gmra.mxu0 %v1827
      %v2113 = vpop.f32.mrf.mxu0
      %v2114 = vadd.f32 0.0, %v2113
      %v2115 = vpop.f32.mrf.mxu0
      %v2116 = vadd.f32 0.0, %v2115
      %2117 = vmatmul.bf16.gmra.mxu0 %v1829
      %v2118 = vpop.f32.mrf.mxu0
      %v2119 = vadd.f32 0.0, %v2118
      %v2120 = vpop.f32.mrf.mxu0
      %v2121 = vadd.f32 0.0, %v2120
      %2122 = vmatmul.bf16.gmra.mxu0 %v1831
      %v2123 = vpop.f32.mrf.mxu0
      %v2124 = vadd.f32 0.0, %v2123
      %v2125 = vpop.f32.mrf.mxu0
      %v2126 = vadd.f32 0.0, %v2125
      %2127 = vmatmul.bf16.gmra.mxu0 %v1833
      %v2128 = vpop.f32.mrf.mxu0
      %v2129 = vadd.f32 0.0, %v2128
      %v2130 = vpop.f32.mrf.mxu0
      %v2131 = vadd.f32 0.0, %v2130
      %2132 = vmatmul.bf16.gmra.mxu0 %v1835
      %v2133 = vpop.f32.mrf.mxu0
      %v2134 = vadd.f32 0.0, %v2133
      %v2135 = vpop.f32.mrf.mxu0
      %v2136 = vadd.f32 0.0, %v2135
      %2137 = vmatmul.bf16.gmra.mxu0 %v1837
      %v2138 = vpop.f32.mrf.mxu0
      %v2139 = vadd.f32 0.0, %v2138
      %v2140 = vpop.f32.mrf.mxu0
      %v2141 = vadd.f32 0.0, %v2140
      %2142 = vmatmul.bf16.gmra.mxu0 %v1839
      %v2143 = vpop.f32.mrf.mxu0
      %v2144 = vadd.f32 0.0, %v2143
      %v2145 = vpop.f32.mrf.mxu0
      %v2146 = vadd.f32 0.0, %v2145
      %2147 = vmatmul.bf16.gmra.mxu0 %v1841
      %v2148 = vpop.f32.mrf.mxu0
      %v2149 = vadd.f32 0.0, %v2148
      %v2150 = vpop.f32.mrf.mxu0
      %v2151 = vadd.f32 0.0, %v2150
      %2152 = vmatmul.bf16.gmra.mxu0 %v1843
      %v2153 = vpop.f32.mrf.mxu0
      %v2154 = vadd.f32 0.0, %v2153
      %v2155 = vpop.f32.mrf.mxu0
      %v2156 = vadd.f32 0.0, %v2155
      %2157 = vmatmul.bf16.gmra.mxu0 %v1845
      %v2158 = vpop.f32.mrf.mxu0
      %v2159 = vadd.f32 0.0, %v2158
      %v2160 = vpop.f32.mrf.mxu0
      %v2161 = vadd.f32 0.0, %v2160
      %2162 = vmatmul.bf16.gmra.mxu0 %v1847
      %v2163 = vpop.f32.mrf.mxu0
      %v2164 = vadd.f32 0.0, %v2163
      %v2165 = vpop.f32.mrf.mxu0
      %v2166 = vadd.f32 0.0, %v2165
      %2167 = vmatmul.bf16.gmra.mxu0 %v1849
      %v2168 = vpop.f32.mrf.mxu0
      %v2169 = vadd.f32 0.0, %v2168
      %v2170 = vpop.f32.mrf.mxu0
      %v2171 = vadd.f32 0.0, %v2170
      %2172 = vmatmul.bf16.gmra.mxu0 %v1851
      %v2173 = vpop.f32.mrf.mxu0
      %v2174 = vadd.f32 0.0, %v2173
      %v2175 = vpop.f32.mrf.mxu0
      %v2176 = vadd.f32 0.0, %v2175
      %2177 = vmatmul.bf16.gmra.mxu0 %v1853
      %v2178 = vpop.f32.mrf.mxu0
      %v2179 = vadd.f32 0.0, %v2178
      %v2180 = vpop.f32.mrf.mxu0
      %v2181 = vadd.f32 0.0, %v2180
      %2182 = vmatmul.bf16.gmra.mxu0 %v1855
      %v2183 = vpop.f32.mrf.mxu0
      %v2184 = vadd.f32 0.0, %v2183
      %v2185 = vpop.f32.mrf.mxu0
      %v2186 = vadd.f32 0.0, %v2185
      %2187 = vmatmul.bf16.gmra.mxu0 %v1857
      %v2188 = vpop.f32.mrf.mxu0
      %v2189 = vadd.f32 0.0, %v2188
      %v2190 = vpop.f32.mrf.mxu0
      %v2191 = vadd.f32 0.0, %v2190
      %2192 = vmatmul.bf16.gmra.mxu0 %v1859
      %v2193 = vpop.f32.mrf.mxu0
      %v2194 = vadd.f32 0.0, %v2193
      %v2195 = vpop.f32.mrf.mxu0
      %v2196 = vadd.f32 0.0, %v2195
      %2197 = vmatmul.bf16.gmra.mxu0 %v1861
      %v2198 = vpop.f32.mrf.mxu0
      %v2199 = vadd.f32 0.0, %v2198
      %v2200 = vpop.f32.mrf.mxu0
      %v2201 = vadd.f32 0.0, %v2200
      %2202 = vmatmul.bf16.gmra.mxu0 %v1863
      %v2203 = vpop.f32.mrf.mxu0
      %v2204 = vadd.f32 0.0, %v2203
      %v2205 = vpop.f32.mrf.mxu0
      %v2206 = vadd.f32 0.0, %v2205
      %2207 = vmatmul.bf16.gmra.mxu0 %v1865
      %v2208 = vpop.f32.mrf.mxu0
      %v2209 = vadd.f32 0.0, %v2208
      %v2210 = vpop.f32.mrf.mxu0
      %v2211 = vadd.f32 0.0, %v2210
      %2212 = vmatmul.bf16.gmra.mxu0 %v1867
      %v2213 = vpop.f32.mrf.mxu0
      %v2214 = vadd.f32 0.0, %v2213
      %v2215 = vpop.f32.mrf.mxu0
      %v2216 = vadd.f32 0.0, %v2215
      %2217 = vmatmul.bf16.gmra.mxu0 %v1869
      %v2218 = vpop.f32.mrf.mxu0
      %v2219 = vadd.f32 0.0, %v2218
      %v2220 = vpop.f32.mrf.mxu0
      %v2221 = vadd.f32 0.0, %v2220
      %2222 = vmatmul.bf16.gmra.mxu0 %v1871
      %v2223 = vpop.f32.mrf.mxu0
      %v2224 = vadd.f32 0.0, %v2223
      %v2225 = vpop.f32.mrf.mxu0
      %v2226 = vadd.f32 0.0, %v2225
      %2227 = vmatmul.bf16.gmra.mxu0 %v1873
      %v2228 = vpop.f32.mrf.mxu0
      %v2229 = vadd.f32 0.0, %v2228
      %v2230 = vpop.f32.mrf.mxu0
      %v2231 = vadd.f32 0.0, %v2230
      %2232 = vmatmul.bf16.gmra.mxu0 %v1875
      %v2233 = vpop.f32.mrf.mxu0
      %v2234 = vadd.f32 0.0, %v2233
      %v2235 = vpop.f32.mrf.mxu0
      %2236 = vdwg.mxu0
      %2237 = vmatpush.bf16.msra.mxu0 %v2035
      %2238 = vmatpush.bf16.msra.mxu0 %v2033
      %2239 = vmatpush.bf16.msra.mxu0 %v2031
      %2240 = vmatpush.bf16.msra.mxu0 %v2029
      %2241 = vmatpush.bf16.msra.mxu0 %v2027
      %2242 = vmatpush.bf16.msra.mxu0 %v2025
      %2243 = vmatpush.bf16.msra.mxu0 %v2023
      %2244 = vmatpush.bf16.msra.mxu0 %v2021
      %2245 = vmatmul.bf16.gmra.mxu0 %v1814
      %v2246 = vpop.f32.mrf.mxu0
      %v2247 = vadd.f32 %v2079, %v2246
      %v2248 = vpop.f32.mrf.mxu0
      %v2249 = vadd.f32 %v2081, %v2248
      %2250 = vmatmul.bf16.gmra.mxu0 %v1816
      %v2251 = vpop.f32.mrf.mxu0
      %v2252 = vadd.f32 %v2084, %v2251
      %v2253 = vpop.f32.mrf.mxu0
      %v2254 = vadd.f32 %v2086, %v2253
      %2255 = vmatmul.bf16.gmra.mxu0 %v1818
      %v2256 = vpop.f32.mrf.mxu0
      %v2257 = vadd.f32 %v2089, %v2256
      %v2258 = vpop.f32.mrf.mxu0
      %v2259 = vadd.f32 %v2091, %v2258
      %2260 = vmatmul.bf16.gmra.mxu0 %v1820
      %v2261 = vpop.f32.mrf.mxu0
      %v2262 = vadd.f32 %v2094, %v2261
      %v2263 = vpop.f32.mrf.mxu0
      %v2264 = vadd.f32 %v2096, %v2263
      %2265 = vmatmul.bf16.gmra.mxu0 %v1822
      %v2266 = vpop.f32.mrf.mxu0
      %v2267 = vadd.f32 %v2099, %v2266
      %v2268 = vpop.f32.mrf.mxu0
      %v2269 = vadd.f32 %v2101, %v2268
      %2270 = vmatmul.bf16.gmra.mxu0 %v1824
      %v2271 = vpop.f32.mrf.mxu0
      %v2272 = vadd.f32 %v2104, %v2271
      %v2273 = vpop.f32.mrf.mxu0
      %v2274 = vadd.f32 %v2106, %v2273
      %2275 = vmatmul.bf16.gmra.mxu0 %v1826
      %v2276 = vpop.f32.mrf.mxu0
      %v2277 = vadd.f32 %v2109, %v2276
      %v2278 = vpop.f32.mrf.mxu0
      %v2279 = vadd.f32 %v2111, %v2278
      %2280 = vmatmul.bf16.gmra.mxu0 %v1828
      %v2281 = vpop.f32.mrf.mxu0
      %v2282 = vadd.f32 %v2114, %v2281
      %v2283 = vpop.f32.mrf.mxu0
      %v2284 = vadd.f32 %v2116, %v2283
      %2285 = vmatmul.bf16.gmra.mxu0 %v1830
      %v2286 = vpop.f32.mrf.mxu0
      %v2287 = vadd.f32 %v2119, %v2286
      %v2288 = vpop.f32.mrf.mxu0
      %v2289 = vadd.f32 %v2121, %v2288
      %2290 = vmatmul.bf16.gmra.mxu0 %v1832
      %v2291 = vpop.f32.mrf.mxu0
      %v2292 = vadd.f32 %v2124, %v2291
      %v2293 = vpop.f32.mrf.mxu0
      %v2294 = vadd.f32 %v2126, %v2293
      %2295 = vmatmul.bf16.gmra.mxu0 %v1834
      %v2296 = vpop.f32.mrf.mxu0
      %v2297 = vadd.f32 %v2129, %v2296
      %v2298 = vpop.f32.mrf.mxu0
      %v2299 = vadd.f32 %v2131, %v2298
      %2300 = vmatmul.bf16.gmra.mxu0 %v1836
      %v2301 = vpop.f32.mrf.mxu0
      %v2302 = vadd.f32 %v2134, %v2301
      %v2303 = vpop.f32.mrf.mxu0
      %v2304 = vadd.f32 %v2136, %v2303
      %2305 = vmatmul.bf16.gmra.mxu0 %v1838
      %v2306 = vpop.f32.mrf.mxu0
      %v2307 = vadd.f32 %v2139, %v2306
      %v2308 = vpop.f32.mrf.mxu0
      %v2309 = vadd.f32 %v2141, %v2308
      %2310 = vmatmul.bf16.gmra.mxu0 %v1840
      %v2311 = vpop.f32.mrf.mxu0
      %v2312 = vadd.f32 %v2144, %v2311
      %v2313 = vpop.f32.mrf.mxu0
      %v2314 = vadd.f32 %v2146, %v2313
      %2315 = vmatmul.bf16.gmra.mxu0 %v1842
      %v2316 = vpop.f32.mrf.mxu0
      %v2317 = vadd.f32 %v2149, %v2316
      %v2318 = vpop.f32.mrf.mxu0
      %v2319 = vadd.f32 %v2151, %v2318
      %2320 = vmatmul.bf16.gmra.mxu0 %v1844
      %v2321 = vpop.f32.mrf.mxu0
      %v2322 = vadd.f32 %v2154, %v2321
      %v2323 = vpop.f32.mrf.mxu0
      %v2324 = vadd.f32 %v2156, %v2323
      %2325 = vmatmul.bf16.gmra.mxu0 %v1846
      %v2326 = vpop.f32.mrf.mxu0
      %v2327 = vadd.f32 %v2159, %v2326
      %v2328 = vpop.f32.mrf.mxu0
      %v2329 = vadd.f32 %v2161, %v2328
      %2330 = vmatmul.bf16.gmra.mxu0 %v1848
      %v2331 = vpop.f32.mrf.mxu0
      %v2332 = vadd.f32 %v2164, %v2331
      %v2333 = vpop.f32.mrf.mxu0
      %v2334 = vadd.f32 %v2166, %v2333
      %2335 = vmatmul.bf16.gmra.mxu0 %v1850
      %v2336 = vpop.f32.mrf.mxu0
      %v2337 = vadd.f32 %v2169, %v2336
      %v2338 = vpop.f32.mrf.mxu0
      %v2339 = vadd.f32 %v2171, %v2338
      %2340 = vmatmul.bf16.gmra.mxu0 %v1852
      %v2341 = vpop.f32.mrf.mxu0
      %v2342 = vadd.f32 %v2174, %v2341
      %v2343 = vpop.f32.mrf.mxu0
      %v2344 = vadd.f32 %v2176, %v2343
      %2345 = vmatmul.bf16.gmra.mxu0 %v1854
      %v2346 = vpop.f32.mrf.mxu0
      %v2347 = vadd.f32 %v2179, %v2346
      %v2348 = vpop.f32.mrf.mxu0
      %v2349 = vadd.f32 %v2181, %v2348
      %2350 = vmatmul.bf16.gmra.mxu0 %v1856
      %v2351 = vpop.f32.mrf.mxu0
      %v2352 = vadd.f32 %v2184, %v2351
      %v2353 = vpop.f32.mrf.mxu0
      %v2354 = vadd.f32 %v2186, %v2353
      %2355 = vmatmul.bf16.gmra.mxu0 %v1858
      %v2356 = vpop.f32.mrf.mxu0
      %v2357 = vadd.f32 %v2189, %v2356
      %v2358 = vpop.f32.mrf.mxu0
      %v2359 = vadd.f32 %v2191, %v2358
      %2360 = vmatmul.bf16.gmra.mxu0 %v1860
      %v2361 = vpop.f32.mrf.mxu0
      %v2362 = vadd.f32 %v2194, %v2361
      %v2363 = vpop.f32.mrf.mxu0
      %v2364 = vadd.f32 %v2196, %v2363
      %2365 = vmatmul.bf16.gmra.mxu0 %v1862
      %v2366 = vpop.f32.mrf.mxu0
      %v2367 = vadd.f32 %v2199, %v2366
      %v2368 = vpop.f32.mrf.mxu0
      %v2369 = vadd.f32 %v2201, %v2368
      %2370 = vmatmul.bf16.gmra.mxu0 %v1864
      %v2371 = vpop.f32.mrf.mxu0
      %v2372 = vadd.f32 %v2204, %v2371
      %v2373 = vpop.f32.mrf.mxu0
      %v2374 = vadd.f32 %v2206, %v2373
      %2375 = vmatmul.bf16.gmra.mxu0 %v1866
      %v2376 = vpop.f32.mrf.mxu0
      %v2377 = vadd.f32 %v2209, %v2376
      %v2378 = vpop.f32.mrf.mxu0
      %v2379 = vadd.f32 %v2211, %v2378
      %2380 = vmatmul.bf16.gmra.mxu0 %v1868
      %v2381 = vpop.f32.mrf.mxu0
      %v2382 = vadd.f32 %v2214, %v2381
      %v2383 = vpop.f32.mrf.mxu0
      %v2384 = vadd.f32 %v2216, %v2383
      %2385 = vmatmul.bf16.gmra.mxu0 %v1870
      %v2386 = vpop.f32.mrf.mxu0
      %v2387 = vadd.f32 %v2219, %v2386
      %v2388 = vpop.f32.mrf.mxu0
      %v2389 = vadd.f32 %v2221, %v2388
      %2390 = vmatmul.bf16.gmra.mxu0 %v1872
      %v2391 = vpop.f32.mrf.mxu0
      %v2392 = vadd.f32 %v2224, %v2391
      %v2393 = vpop.f32.mrf.mxu0
      %v2394 = vadd.f32 %v2226, %v2393
      %2395 = vmatmul.bf16.gmra.mxu0 %v1874
      %v2396 = vpop.f32.mrf.mxu0
      %v2397 = vadd.f32 %v2229, %v2396
      %v2398 = vpop.f32.mrf.mxu0
      %v2399 = vadd.f32 %v2231, %v2398
      %2400 = vmatmul.bf16.gmra.mxu0 %v1876
      %v2401 = vpop.f32.mrf.mxu0
      %v2402 = vadd.f32 %v2234, %v2401
      %v2403 = vpop.f32.mrf.mxu0
      %2404 = vdwg.mxu0
      %2405 = vmatpush.bf16.msra.mxu0 %v2020
      %2406 = vmatpush.bf16.msra.mxu0 %v2018
      %2407 = vmatpush.bf16.msra.mxu0 %v2016
      %2408 = vmatpush.bf16.msra.mxu0 %v2014
      %2409 = vmatpush.bf16.msra.mxu0 %v2012
      %2410 = vmatpush.bf16.msra.mxu0 %v2010
      %2411 = vmatpush.bf16.msra.mxu0 %v2008
      %2412 = vmatpush.bf16.msra.mxu0 %v2006
      %2413 = vmatmul.bf16.gmra.mxu0 %v1813
      %v2414 = vpop.f32.mrf.mxu0
      %v2415 = vadd.f32 0.0, %v2414
      %v2416 = vpop.f32.mrf.mxu0
      %v2417 = vadd.f32 0.0, %v2416
      %2418 = vmatmul.bf16.gmra.mxu0 %v1815
      %v2419 = vpop.f32.mrf.mxu0
      %v2420 = vadd.f32 0.0, %v2419
      %v2421 = vpop.f32.mrf.mxu0
      %v2422 = vadd.f32 0.0, %v2421
      %2423 = vmatmul.bf16.gmra.mxu0 %v1817
      %v2424 = vpop.f32.mrf.mxu0
      %v2425 = vadd.f32 0.0, %v2424
      %v2426 = vpop.f32.mrf.mxu0
      %v2427 = vadd.f32 0.0, %v2426
      %2428 = vmatmul.bf16.gmra.mxu0 %v1819
      %v2429 = vpop.f32.mrf.mxu0
      %v2430 = vadd.f32 0.0, %v2429
      %v2431 = vpop.f32.mrf.mxu0
      %v2432 = vadd.f32 0.0, %v2431
      %2433 = vmatmul.bf16.gmra.mxu0 %v1821
      %v2434 = vpop.f32.mrf.mxu0
      %v2435 = vadd.f32 0.0, %v2434
      %v2436 = vpop.f32.mrf.mxu0
      %v2437 = vadd.f32 0.0, %v2436
      %2438 = vmatmul.bf16.gmra.mxu0 %v1823
      %v2439 = vpop.f32.mrf.mxu0
      %v2440 = vadd.f32 0.0, %v2439
      %v2441 = vpop.f32.mrf.mxu0
      %v2442 = vadd.f32 0.0, %v2441
      %2443 = vmatmul.bf16.gmra.mxu0 %v1825
      %v2444 = vpop.f32.mrf.mxu0
      %v2445 = vadd.f32 0.0, %v2444
      %v2446 = vpop.f32.mrf.mxu0
      %v2447 = vadd.f32 0.0, %v2446
      %2448 = vmatmul.bf16.gmra.mxu0 %v1827
      %v2449 = vpop.f32.mrf.mxu0
      %v2450 = vadd.f32 0.0, %v2449
      %v2451 = vpop.f32.mrf.mxu0
      %v2452 = vadd.f32 0.0, %v2451
      %2453 = vmatmul.bf16.gmra.mxu0 %v1829
      %v2454 = vpop.f32.mrf.mxu0
      %v2455 = vadd.f32 0.0, %v2454
      %v2456 = vpop.f32.mrf.mxu0
      %v2457 = vadd.f32 0.0, %v2456
      %2458 = vmatmul.bf16.gmra.mxu0 %v1831
      %v2459 = vpop.f32.mrf.mxu0
      %v2460 = vadd.f32 0.0, %v2459
      %v2461 = vpop.f32.mrf.mxu0
      %v2462 = vadd.f32 0.0, %v2461
      %2463 = vmatmul.bf16.gmra.mxu0 %v1833
      %v2464 = vpop.f32.mrf.mxu0
      %v2465 = vadd.f32 0.0, %v2464
      %v2466 = vpop.f32.mrf.mxu0
      %v2467 = vadd.f32 0.0, %v2466
      %2468 = vmatmul.bf16.gmra.mxu0 %v1835
      %v2469 = vpop.f32.mrf.mxu0
      %v2470 = vadd.f32 0.0, %v2469
      %v2471 = vpop.f32.mrf.mxu0
      %v2472 = vadd.f32 0.0, %v2471
      %2473 = vmatmul.bf16.gmra.mxu0 %v1837
      %v2474 = vpop.f32.mrf.mxu0
      %v2475 = vadd.f32 0.0, %v2474
      %v2476 = vpop.f32.mrf.mxu0
      %v2477 = vadd.f32 0.0, %v2476
      %2478 = vmatmul.bf16.gmra.mxu0 %v1839
      %v2479 = vpop.f32.mrf.mxu0
      %v2480 = vadd.f32 0.0, %v2479
      %v2481 = vpop.f32.mrf.mxu0
      %v2482 = vadd.f32 0.0, %v2481
      %2483 = vmatmul.bf16.gmra.mxu0 %v1841
      %v2484 = vpop.f32.mrf.mxu0
      %v2485 = vadd.f32 0.0, %v2484
      %v2486 = vpop.f32.mrf.mxu0
      %v2487 = vadd.f32 0.0, %v2486
      %2488 = vmatmul.bf16.gmra.mxu0 %v1843
      %v2489 = vpop.f32.mrf.mxu0
      %v2490 = vadd.f32 0.0, %v2489
      %v2491 = vpop.f32.mrf.mxu0
      %v2492 = vadd.f32 0.0, %v2491
      %2493 = vmatmul.bf16.gmra.mxu0 %v1845
      %v2494 = vpop.f32.mrf.mxu0
      %v2495 = vadd.f32 0.0, %v2494
      %v2496 = vpop.f32.mrf.mxu0
      %v2497 = vadd.f32 0.0, %v2496
      %2498 = vmatmul.bf16.gmra.mxu0 %v1847
      %v2499 = vpop.f32.mrf.mxu0
      %v2500 = vadd.f32 0.0, %v2499
      %v2501 = vpop.f32.mrf.mxu0
      %v2502 = vadd.f32 0.0, %v2501
      %2503 = vmatmul.bf16.gmra.mxu0 %v1849
      %v2504 = vpop.f32.mrf.mxu0
      %v2505 = vadd.f32 0.0, %v2504
      %v2506 = vpop.f32.mrf.mxu0
      %v2507 = vadd.f32 0.0, %v2506
      %2508 = vmatmul.bf16.gmra.mxu0 %v1851
      %v2509 = vpop.f32.mrf.mxu0
      %v2510 = vadd.f32 0.0, %v2509
      %v2511 = vpop.f32.mrf.mxu0
      %v2512 = vadd.f32 0.0, %v2511
      %2513 = vmatmul.bf16.gmra.mxu0 %v1853
      %v2514 = vpop.f32.mrf.mxu0
      %v2515 = vadd.f32 0.0, %v2514
      %v2516 = vpop.f32.mrf.mxu0
      %v2517 = vadd.f32 0.0, %v2516
      %2518 = vmatmul.bf16.gmra.mxu0 %v1855
      %v2519 = vpop.f32.mrf.mxu0
      %v2520 = vadd.f32 0.0, %v2519
      %v2521 = vpop.f32.mrf.mxu0
      %v2522 = vadd.f32 0.0, %v2521
      %2523 = vmatmul.bf16.gmra.mxu0 %v1857
      %v2524 = vpop.f32.mrf.mxu0
      %v2525 = vadd.f32 0.0, %v2524
      %v2526 = vpop.f32.mrf.mxu0
      %v2527 = vadd.f32 0.0, %v2526
      %2528 = vmatmul.bf16.gmra.mxu0 %v1859
      %v2529 = vpop.f32.mrf.mxu0
      %v2530 = vadd.f32 0.0, %v2529
      %v2531 = vpop.f32.mrf.mxu0
      %v2532 = vadd.f32 0.0, %v2531
      %2533 = vmatmul.bf16.gmra.mxu0 %v1861
      %v2534 = vpop.f32.mrf.mxu0
      %v2535 = vadd.f32 0.0, %v2534
      %v2536 = vpop.f32.mrf.mxu0
      %v2537 = vadd.f32 0.0, %v2536
      %2538 = vmatmul.bf16.gmra.mxu0 %v1863
      %v2539 = vpop.f32.mrf.mxu0
      %v2540 = vadd.f32 0.0, %v2539
      %v2541 = vpop.f32.mrf.mxu0
      %v2542 = vadd.f32 0.0, %v2541
      %2543 = vmatmul.bf16.gmra.mxu0 %v1865
      %v2544 = vpop.f32.mrf.mxu0
      %v2545 = vadd.f32 0.0, %v2544
      %v2546 = vpop.f32.mrf.mxu0
      %v2547 = vadd.f32 0.0, %v2546
      %2548 = vmatmul.bf16.gmra.mxu0 %v1867
      %v2549 = vpop.f32.mrf.mxu0
      %v2550 = vadd.f32 0.0, %v2549
      %v2551 = vpop.f32.mrf.mxu0
      %v2552 = vadd.f32 0.0, %v2551
      %2553 = vmatmul.bf16.gmra.mxu0 %v1869
      %v2554 = vpop.f32.mrf.mxu0
      %v2555 = vadd.f32 0.0, %v2554
      %v2556 = vpop.f32.mrf.mxu0
      %v2557 = vadd.f32 0.0, %v2556
      %2558 = vmatmul.bf16.gmra.mxu0 %v1871
      %v2559 = vpop.f32.mrf.mxu0
      %v2560 = vadd.f32 0.0, %v2559
      %v2561 = vpop.f32.mrf.mxu0
      %v2562 = vadd.f32 0.0, %v2561
      %2563 = vmatmul.bf16.gmra.mxu0 %v1873
      %v2564 = vpop.f32.mrf.mxu0
      %v2565 = vadd.f32 0.0, %v2564
      %v2566 = vpop.f32.mrf.mxu0
      %v2567 = vadd.f32 0.0, %v2566
      %2568 = vmatmul.bf16.gmra.mxu0 %v1875
      %v2569 = vpop.f32.mrf.mxu0
      %v2570 = vadd.f32 0.0, %v2569
      %v2571 = vpop.f32.mrf.mxu0
      %2572 = vdwg.mxu0
      %2573 = vmatpush.bf16.msra.mxu0 %v2036
      %2574 = vmatpush.bf16.msra.mxu0 %v2034
      %2575 = vmatpush.bf16.msra.mxu0 %v2032
      %2576 = vmatpush.bf16.msra.mxu0 %v2030
      %2577 = vmatpush.bf16.msra.mxu0 %v2028
      %2578 = vmatpush.bf16.msra.mxu0 %v2026
      %2579 = vmatpush.bf16.msra.mxu0 %v2024
      %2580 = vmatpush.bf16.msra.mxu0 %v2022
      %2581 = vmatmul.bf16.gmra.mxu0 %v1814
      %v2582 = vpop.f32.mrf.mxu0
      %v2583 = vadd.f32 %v2415, %v2582
      %v2584 = vpop.f32.mrf.mxu0
      %v2585 = vadd.f32 %v2417, %v2584
      %2586 = vmatmul.bf16.gmra.mxu0 %v1816
      %v2587 = vpop.f32.mrf.mxu0
      %v2588 = vadd.f32 %v2420, %v2587
      %v2589 = vpop.f32.mrf.mxu0
      %v2590 = vadd.f32 %v2422, %v2589
      %2591 = vmatmul.bf16.gmra.mxu0 %v1818
      %v2592 = vpop.f32.mrf.mxu0
      %v2593 = vadd.f32 %v2425, %v2592
      %v2594 = vpop.f32.mrf.mxu0
      %v2595 = vadd.f32 %v2427, %v2594
      %2596 = vmatmul.bf16.gmra.mxu0 %v1820
      %v2597 = vpop.f32.mrf.mxu0
      %v2598 = vadd.f32 %v2430, %v2597
      %v2599 = vpop.f32.mrf.mxu0
      %v2600 = vadd.f32 %v2432, %v2599
      %2601 = vmatmul.bf16.gmra.mxu0 %v1822
      %v2602 = vpop.f32.mrf.mxu0
      %v2603 = vadd.f32 %v2435, %v2602
      %v2604 = vpop.f32.mrf.mxu0
      %v2605 = vadd.f32 %v2437, %v2604
      %2606 = vmatmul.bf16.gmra.mxu0 %v1824
      %v2607 = vpop.f32.mrf.mxu0
      %v2608 = vadd.f32 %v2440, %v2607
      %v2609 = vpop.f32.mrf.mxu0
      %v2610 = vadd.f32 %v2442, %v2609
      %2611 = vmatmul.bf16.gmra.mxu0 %v1826
      %v2612 = vpop.f32.mrf.mxu0
      %v2613 = vadd.f32 %v2445, %v2612
      %v2614 = vpop.f32.mrf.mxu0
      %v2615 = vadd.f32 %v2447, %v2614
      %2616 = vmatmul.bf16.gmra.mxu0 %v1828
      %v2617 = vpop.f32.mrf.mxu0
      %v2618 = vadd.f32 %v2450, %v2617
      %v2619 = vpop.f32.mrf.mxu0
      %v2620 = vadd.f32 %v2452, %v2619
      %2621 = vmatmul.bf16.gmra.mxu0 %v1830
      %v2622 = vpop.f32.mrf.mxu0
      %v2623 = vadd.f32 %v2455, %v2622
      %v2624 = vpop.f32.mrf.mxu0
      %v2625 = vadd.f32 %v2457, %v2624
      %2626 = vmatmul.bf16.gmra.mxu0 %v1832
      %v2627 = vpop.f32.mrf.mxu0
      %v2628 = vadd.f32 %v2460, %v2627
      %v2629 = vpop.f32.mrf.mxu0
      %v2630 = vadd.f32 %v2462, %v2629
      %2631 = vmatmul.bf16.gmra.mxu0 %v1834
      %v2632 = vpop.f32.mrf.mxu0
      %v2633 = vadd.f32 %v2465, %v2632
      %v2634 = vpop.f32.mrf.mxu0
      %v2635 = vadd.f32 %v2467, %v2634
      %2636 = vmatmul.bf16.gmra.mxu0 %v1836
      %v2637 = vpop.f32.mrf.mxu0
      %v2638 = vadd.f32 %v2470, %v2637
      %v2639 = vpop.f32.mrf.mxu0
      %v2640 = vadd.f32 %v2472, %v2639
      %2641 = vmatmul.bf16.gmra.mxu0 %v1838
      %v2642 = vpop.f32.mrf.mxu0
      %v2643 = vadd.f32 %v2475, %v2642
      %v2644 = vpop.f32.mrf.mxu0
      %v2645 = vadd.f32 %v2477, %v2644
      %2646 = vmatmul.bf16.gmra.mxu0 %v1840
      %v2647 = vpop.f32.mrf.mxu0
      %v2648 = vadd.f32 %v2480, %v2647
      %v2649 = vpop.f32.mrf.mxu0
      %v2650 = vadd.f32 %v2482, %v2649
      %2651 = vmatmul.bf16.gmra.mxu0 %v1842
      %v2652 = vpop.f32.mrf.mxu0
      %v2653 = vadd.f32 %v2485, %v2652
      %v2654 = vpop.f32.mrf.mxu0
      %v2655 = vadd.f32 %v2487, %v2654
      %2656 = vmatmul.bf16.gmra.mxu0 %v1844
      %v2657 = vpop.f32.mrf.mxu0
      %v2658 = vadd.f32 %v2490, %v2657
      %v2659 = vpop.f32.mrf.mxu0
      %v2660 = vadd.f32 %v2492, %v2659
      %2661 = vmatmul.bf16.gmra.mxu0 %v1846
      %v2662 = vpop.f32.mrf.mxu0
      %v2663 = vadd.f32 %v2495, %v2662
      %v2664 = vpop.f32.mrf.mxu0
      %v2665 = vadd.f32 %v2497, %v2664
      %2666 = vmatmul.bf16.gmra.mxu0 %v1848
      %v2667 = vpop.f32.mrf.mxu0
      %v2668 = vadd.f32 %v2500, %v2667
      %v2669 = vpop.f32.mrf.mxu0
      %v2670 = vadd.f32 %v2502, %v2669
      %2671 = vmatmul.bf16.gmra.mxu0 %v1850
      %v2672 = vpop.f32.mrf.mxu0
      %v2673 = vadd.f32 %v2505, %v2672
      %v2674 = vpop.f32.mrf.mxu0
      %v2675 = vadd.f32 %v2507, %v2674
      %2676 = vmatmul.bf16.gmra.mxu0 %v1852
      %v2677 = vpop.f32.mrf.mxu0
      %v2678 = vadd.f32 %v2510, %v2677
      %v2679 = vpop.f32.mrf.mxu0
      %v2680 = vadd.f32 %v2512, %v2679
      %2681 = vmatmul.bf16.gmra.mxu0 %v1854
      %v2682 = vpop.f32.mrf.mxu0
      %v2683 = vadd.f32 %v2515, %v2682
      %v2684 = vpop.f32.mrf.mxu0
      %v2685 = vadd.f32 %v2517, %v2684
      %2686 = vmatmul.bf16.gmra.mxu0 %v1856
      %v2687 = vpop.f32.mrf.mxu0
      %v2688 = vadd.f32 %v2520, %v2687
      %v2689 = vpop.f32.mrf.mxu0
      %v2690 = vadd.f32 %v2522, %v2689
      %2691 = vmatmul.bf16.gmra.mxu0 %v1858
      %v2692 = vpop.f32.mrf.mxu0
      %v2693 = vadd.f32 %v2525, %v2692
      %v2694 = vpop.f32.mrf.mxu0
      %v2695 = vadd.f32 %v2527, %v2694
      %2696 = vmatmul.bf16.gmra.mxu0 %v1860
      %v2697 = vpop.f32.mrf.mxu0
      %v2698 = vadd.f32 %v2530, %v2697
      %v2699 = vpop.f32.mrf.mxu0
      %v2700 = vadd.f32 %v2532, %v2699
      %2701 = vmatmul.bf16.gmra.mxu0 %v1862
      %v2702 = vpop.f32.mrf.mxu0
      %v2703 = vadd.f32 %v2535, %v2702
      %v2704 = vpop.f32.mrf.mxu0
      %v2705 = vadd.f32 %v2537, %v2704
      %2706 = vmatmul.bf16.gmra.mxu0 %v1864
      %v2707 = vpop.f32.mrf.mxu0
      %v2708 = vadd.f32 %v2540, %v2707
      %v2709 = vpop.f32.mrf.mxu0
      %v2710 = vadd.f32 %v2542, %v2709
      %2711 = vmatmul.bf16.gmra.mxu0 %v1866
      %v2712 = vpop.f32.mrf.mxu0
      %v2713 = vadd.f32 %v2545, %v2712
      %v2714 = vpop.f32.mrf.mxu0
      %v2715 = vadd.f32 %v2547, %v2714
      %2716 = vmatmul.bf16.gmra.mxu0 %v1868
      %v2717 = vpop.f32.mrf.mxu0
      %v2718 = vadd.f32 %v2550, %v2717
      %v2719 = vpop.f32.mrf.mxu0
      %v2720 = vadd.f32 %v2552, %v2719
      %2721 = vmatmul.bf16.gmra.mxu0 %v1870
      %v2722 = vpop.f32.mrf.mxu0
      %v2723 = vadd.f32 %v2555, %v2722
      %v2724 = vpop.f32.mrf.mxu0
      %v2725 = vadd.f32 %v2557, %v2724
      %2726 = vmatmul.bf16.gmra.mxu0 %v1872
      %v2727 = vpop.f32.mrf.mxu0
      %v2728 = vadd.f32 %v2560, %v2727
      %v2729 = vpop.f32.mrf.mxu0
      %v2730 = vadd.f32 %v2562, %v2729
      %2731 = vmatmul.bf16.gmra.mxu0 %v1874
      %v2732 = vpop.f32.mrf.mxu0
      %v2733 = vadd.f32 %v2565, %v2732
      %v2734 = vpop.f32.mrf.mxu0
      %v2735 = vadd.f32 %v2567, %v2734
      %2736 = vmatmul.bf16.gmra.mxu0 %v1876
      %v2737 = vpop.f32.mrf.mxu0
      %v2738 = vadd.f32 %v2570, %v2737
      %v2739 = vpop.f32.mrf.mxu0
      %2740 = vdwg.mxu0
      %v2741 = vpack.c.bf16 %v2583, %v2247
      %v2742 = vpack.c.bf16 %v2585, %v2249
      %v2743 = vpack.c.bf16 %v2588, %v2252
      %v2744 = vpack.c.bf16 %v2590, %v2254
      %v2745 = vpack.c.bf16 %v2593, %v2257
      %v2746 = vpack.c.bf16 %v2595, %v2259
      %v2747 = vpack.c.bf16 %v2598, %v2262
      %v2748 = vpack.c.bf16 %v2600, %v2264
      %v2749 = vpack.c.bf16 %v2603, %v2267
      %v2750 = vpack.c.bf16 %v2605, %v2269
      %v2751 = vpack.c.bf16 %v2608, %v2272
      %v2752 = vpack.c.bf16 %v2610, %v2274
      %v2753 = vpack.c.bf16 %v2613, %v2277
      %v2754 = vpack.c.bf16 %v2615, %v2279
      %v2755 = vpack.c.bf16 %v2618, %v2282
      %v2756 = vpack.c.bf16 %v2620, %v2284
      %v2757 = vpack.c.bf16 %v2623, %v2287
      %v2758 = vpack.c.bf16 %v2625, %v2289
      %v2759 = vpack.c.bf16 %v2628, %v2292
      %v2760 = vpack.c.bf16 %v2630, %v2294
      %v2761 = vpack.c.bf16 %v2633, %v2297
      %v2762 = vpack.c.bf16 %v2635, %v2299
      %v2763 = vpack.c.bf16 %v2638, %v2302
      %v2764 = vpack.c.bf16 %v2640, %v2304
      %v2765 = vpack.c.bf16 %v2643, %v2307
      %v2766 = vpack.c.bf16 %v2645, %v2309
      %v2767 = vpack.c.bf16 %v2648, %v2312
      %v2768 = vpack.c.bf16 %v2650, %v2314
      %v2769 = vpack.c.bf16 %v2653, %v2317
      %v2770 = vpack.c.bf16 %v2655, %v2319
      %v2771 = vpack.c.bf16 %v2658, %v2322
      %v2772 = vpack.c.bf16 %v2660, %v2324
      %v2773 = vpack.c.bf16 %v2663, %v2327
      %v2774 = vpack.c.bf16 %v2665, %v2329
      %v2775 = vpack.c.bf16 %v2668, %v2332
      %v2776 = vpack.c.bf16 %v2670, %v2334
      %v2777 = vpack.c.bf16 %v2673, %v2337
      %v2778 = vpack.c.bf16 %v2675, %v2339
      %v2779 = vpack.c.bf16 %v2678, %v2342
      %v2780 = vpack.c.bf16 %v2680, %v2344
      %v2781 = vpack.c.bf16 %v2683, %v2347
      %v2782 = vpack.c.bf16 %v2685, %v2349
      %v2783 = vpack.c.bf16 %v2688, %v2352
      %v2784 = vpack.c.bf16 %v2690, %v2354
      %v2785 = vpack.c.bf16 %v2693, %v2357
      %v2786 = vpack.c.bf16 %v2695, %v2359
      %v2787 = vpack.c.bf16 %v2698, %v2362
      %v2788 = vpack.c.bf16 %v2700, %v2364
      %v2789 = vpack.c.bf16 %v2703, %v2367
      %v2790 = vpack.c.bf16 %v2705, %v2369
      %v2791 = vpack.c.bf16 %v2708, %v2372
      %v2792 = vpack.c.bf16 %v2710, %v2374
      %v2793 = vpack.c.bf16 %v2713, %v2377
      %v2794 = vpack.c.bf16 %v2715, %v2379
      %v2795 = vpack.c.bf16 %v2718, %v2382
      %v2796 = vpack.c.bf16 %v2720, %v2384
      %v2797 = vpack.c.bf16 %v2723, %v2387
      %v2798 = vpack.c.bf16 %v2725, %v2389
      %v2799 = vpack.c.bf16 %v2728, %v2392
      %v2800 = vpack.c.bf16 %v2730, %v2394
      %v2801 = vpack.c.bf16 %v2733, %v2397
      %v2802 = vpack.c.bf16 %v2735, %v2399
      %v2803 = vpack.c.bf16 %v2738, %v2402
      %v2804 = vld [vmem:[%s5] sm:$0x3]
      %2806 = vst [vmem:[#allocation1] ss:$9 sm:$0xff] %v2804
      %v2807 = vld [vmem:[#allocation1] sm:$0xff]
      %v2808 = vld [vmem:[#allocation1 + $0x9] sm:$0xff]
      %v2809 = vpack.i.b16 %v2807, %v2807
      %v2811 = vperm.slane %v2809, 0
      %v2812 = vpack.i.b16 %v2808, %v2808
      %v2814 = vperm.slane %v2812, 0
      %v2815 = vunpack.c.l.bf16 %v2741
      %v2816 = vunpack.c.h.bf16 %v2741
      %v2817 = vunpack.c.l.bf16 %v2742
      %v2818 = vunpack.c.h.bf16 %v2742
      %v2819 = vunpack.c.l.bf16 %v2743
      %v2820 = vunpack.c.h.bf16 %v2743
      %v2821 = vunpack.c.l.bf16 %v2744
      %v2822 = vunpack.c.h.bf16 %v2744
      %v2823 = vunpack.c.l.bf16 %v2745
      %v2824 = vunpack.c.h.bf16 %v2745
      %v2825 = vunpack.c.l.bf16 %v2746
      %v2826 = vunpack.c.h.bf16 %v2746
      %v2827 = vunpack.c.l.bf16 %v2747
      %v2828 = vunpack.c.h.bf16 %v2747
      %v2829 = vunpack.c.l.bf16 %v2748
      %v2830 = vunpack.c.h.bf16 %v2748
      %v2831 = vunpack.c.l.bf16 %v2749
      %v2832 = vunpack.c.h.bf16 %v2749
      %v2833 = vunpack.c.l.bf16 %v2750
      %v2834 = vunpack.c.h.bf16 %v2750
      %v2835 = vunpack.c.l.bf16 %v2751
      %v2836 = vunpack.c.h.bf16 %v2751
      %v2837 = vunpack.c.l.bf16 %v2752
      %v2838 = vunpack.c.h.bf16 %v2752
      %v2839 = vunpack.c.l.bf16 %v2753
      %v2840 = vunpack.c.h.bf16 %v2753
      %v2841 = vunpack.c.l.bf16 %v2754
      %v2842 = vunpack.c.h.bf16 %v2754
      %v2843 = vunpack.c.l.bf16 %v2755
      %v2844 = vunpack.c.h.bf16 %v2755
      %v2845 = vunpack.c.l.bf16 %v2756
      %v2846 = vunpack.c.h.bf16 %v2756
      %v2847 = vunpack.c.l.bf16 %v2757
      %v2848 = vunpack.c.h.bf16 %v2757
      %v2849 = vunpack.c.l.bf16 %v2758
      %v2850 = vunpack.c.h.bf16 %v2758
      %v2851 = vunpack.c.l.bf16 %v2759
      %v2852 = vunpack.c.h.bf16 %v2759
      %v2853 = vunpack.c.l.bf16 %v2760
      %v2854 = vunpack.c.h.bf16 %v2760
      %v2855 = vunpack.c.l.bf16 %v2761
      %v2856 = vunpack.c.h.bf16 %v2761
      %v2857 = vunpack.c.l.bf16 %v2762
      %v2858 = vunpack.c.h.bf16 %v2762
      %v2859 = vunpack.c.l.bf16 %v2763
      %v2860 = vunpack.c.h.bf16 %v2763
      %v2861 = vunpack.c.l.bf16 %v2764
      %v2862 = vunpack.c.h.bf16 %v2764
      %v2863 = vunpack.c.l.bf16 %v2765
      %v2864 = vunpack.c.h.bf16 %v2765
      %v2865 = vunpack.c.l.bf16 %v2766
      %v2866 = vunpack.c.h.bf16 %v2766
      %v2867 = vunpack.c.l.bf16 %v2767
      %v2868 = vunpack.c.h.bf16 %v2767
      %v2869 = vunpack.c.l.bf16 %v2768
      %v2870 = vunpack.c.h.bf16 %v2768
      %v2871 = vunpack.c.l.bf16 %v2769
      %v2872 = vunpack.c.h.bf16 %v2769
      %v2873 = vunpack.c.l.bf16 %v2770
      %v2874 = vunpack.c.h.bf16 %v2770
      %v2875 = vunpack.c.l.bf16 %v2771
      %v2876 = vunpack.c.h.bf16 %v2771
      %v2877 = vunpack.c.l.bf16 %v2772
      %v2878 = vunpack.c.h.bf16 %v2772
      %v2879 = vunpack.c.l.bf16 %v2773
      %v2880 = vunpack.c.h.bf16 %v2773
      %v2881 = vunpack.c.l.bf16 %v2774
      %v2882 = vunpack.c.h.bf16 %v2774
      %v2883 = vunpack.c.l.bf16 %v2775
      %v2884 = vunpack.c.h.bf16 %v2775
      %v2885 = vunpack.c.l.bf16 %v2776
      %v2886 = vunpack.c.h.bf16 %v2776
      %v2887 = vunpack.c.l.bf16 %v2777
      %v2888 = vunpack.c.h.bf16 %v2777
      %v2889 = vunpack.c.l.bf16 %v2778
      %v2890 = vunpack.c.h.bf16 %v2778
      %v2891 = vunpack.c.l.bf16 %v2779
      %v2892 = vunpack.c.h.bf16 %v2779
      %v2893 = vunpack.c.l.bf16 %v2780
      %v2894 = vunpack.c.h.bf16 %v2780
      %v2895 = vunpack.c.l.bf16 %v2781
      %v2896 = vunpack.c.h.bf16 %v2781
      %v2897 = vunpack.c.l.bf16 %v2782
      %v2898 = vunpack.c.h.bf16 %v2782
      %v2899 = vunpack.c.l.bf16 %v2783
      %v2900 = vunpack.c.h.bf16 %v2783
      %v2901 = vunpack.c.l.bf16 %v2784
      %v2902 = vunpack.c.h.bf16 %v2784
      %v2903 = vunpack.c.l.bf16 %v2785
      %v2904 = vunpack.c.h.bf16 %v2785
      %v2905 = vunpack.c.l.bf16 %v2786
      %v2906 = vunpack.c.h.bf16 %v2786
      %v2907 = vunpack.c.l.bf16 %v2787
      %v2908 = vunpack.c.h.bf16 %v2787
      %v2909 = vunpack.c.l.bf16 %v2788
      %v2910 = vunpack.c.h.bf16 %v2788
      %v2911 = vunpack.c.l.bf16 %v2789
      %v2912 = vunpack.c.h.bf16 %v2789
      %v2913 = vunpack.c.l.bf16 %v2790
      %v2914 = vunpack.c.h.bf16 %v2790
      %v2915 = vunpack.c.l.bf16 %v2791
      %v2916 = vunpack.c.h.bf16 %v2791
      %v2917 = vunpack.c.l.bf16 %v2792
      %v2918 = vunpack.c.h.bf16 %v2792
      %v2919 = vunpack.c.l.bf16 %v2793
      %v2920 = vunpack.c.h.bf16 %v2793
      %v2921 = vunpack.c.l.bf16 %v2794
      %v2922 = vunpack.c.h.bf16 %v2794
      %v2923 = vunpack.c.l.bf16 %v2795
      %v2924 = vunpack.c.h.bf16 %v2795
      %v2925 = vunpack.c.l.bf16 %v2796
      %v2926 = vunpack.c.h.bf16 %v2796
      %v2927 = vunpack.c.l.bf16 %v2797
      %v2928 = vunpack.c.h.bf16 %v2797
      %v2929 = vunpack.c.l.bf16 %v2798
      %v2930 = vunpack.c.h.bf16 %v2798
      %v2931 = vunpack.c.l.bf16 %v2799
      %v2932 = vunpack.c.h.bf16 %v2799
      %v2933 = vunpack.c.l.bf16 %v2800
      %v2934 = vunpack.c.h.bf16 %v2800
      %v2935 = vunpack.c.l.bf16 %v2801
      %v2936 = vunpack.c.h.bf16 %v2801
      %v2937 = vunpack.c.l.bf16 %v2802
      %v2938 = vunpack.c.h.bf16 %v2802
      %v2939 = vunpack.c.l.bf16 %v2803
      %v2940 = vunpack.c.h.bf16 %v2803
      %v2941 = vunpack.c.l.bf16 %v2811
      %v2942 = vunpack.c.l.bf16 %v2814
      %v2943 = vadd.f32 %v2815, %v2941
      %v2944 = vadd.f32 %v2816, %v2942
      %v2945 = vadd.f32 %v2817, %v2941
      %v2946 = vadd.f32 %v2818, %v2942
      %v2947 = vadd.f32 %v2819, %v2941
      %v2948 = vadd.f32 %v2820, %v2942
      %v2949 = vadd.f32 %v2821, %v2941
      %v2950 = vadd.f32 %v2822, %v2942
      %v2951 = vadd.f32 %v2823, %v2941
      %v2952 = vadd.f32 %v2824, %v2942
      %v2953 = vadd.f32 %v2825, %v2941
      %v2954 = vadd.f32 %v2826, %v2942
      %v2955 = vadd.f32 %v2827, %v2941
      %v2956 = vadd.f32 %v2828, %v2942
      %v2957 = vadd.f32 %v2829, %v2941
      %v2958 = vadd.f32 %v2830, %v2942
      %v2959 = vadd.f32 %v2831, %v2941
      %v2960 = vadd.f32 %v2832, %v2942
      %v2961 = vadd.f32 %v2833, %v2941
      %v2962 = vadd.f32 %v2834, %v2942
      %v2963 = vadd.f32 %v2835, %v2941
      %v2964 = vadd.f32 %v2836, %v2942
      %v2965 = vadd.f32 %v2837, %v2941
      %v2966 = vadd.f32 %v2838, %v2942
      %v2967 = vadd.f32 %v2839, %v2941
      %v2968 = vadd.f32 %v2840, %v2942
      %v2969 = vadd.f32 %v2841, %v2941
      %v2970 = vadd.f32 %v2842, %v2942
      %v2971 = vadd.f32 %v2843, %v2941
      %v2972 = vadd.f32 %v2844, %v2942
      %v2973 = vadd.f32 %v2845, %v2941
      %v2974 = vadd.f32 %v2846, %v2942
      %v2975 = vadd.f32 %v2847, %v2941
      %v2976 = vadd.f32 %v2848, %v2942
      %v2977 = vadd.f32 %v2849, %v2941
      %v2978 = vadd.f32 %v2850, %v2942
      %v2979 = vadd.f32 %v2851, %v2941
      %v2980 = vadd.f32 %v2852, %v2942
      %v2981 = vadd.f32 %v2853, %v2941
      %v2982 = vadd.f32 %v2854, %v2942
      %v2983 = vadd.f32 %v2855, %v2941
      %v2984 = vadd.f32 %v2856, %v2942
      %v2985 = vadd.f32 %v2857, %v2941
      %v2986 = vadd.f32 %v2858, %v2942
      %v2987 = vadd.f32 %v2859, %v2941
      %v2988 = vadd.f32 %v2860, %v2942
      %v2989 = vadd.f32 %v2861, %v2941
      %v2990 = vadd.f32 %v2862, %v2942
      %v2991 = vadd.f32 %v2863, %v2941
      %v2992 = vadd.f32 %v2864, %v2942
      %v2993 = vadd.f32 %v2865, %v2941
      %v2994 = vadd.f32 %v2866, %v2942
      %v2995 = vadd.f32 %v2867, %v2941
      %v2996 = vadd.f32 %v2868, %v2942
      %v2997 = vadd.f32 %v2869, %v2941
      %v2998 = vadd.f32 %v2870, %v2942
      %v2999 = vadd.f32 %v2871, %v2941
      %v3000 = vadd.f32 %v2872, %v2942
      %v3001 = vadd.f32 %v2873, %v2941
      %v3002 = vadd.f32 %v2874, %v2942
      %v3003 = vadd.f32 %v2875, %v2941
      %v3004 = vadd.f32 %v2876, %v2942
      %v3005 = vadd.f32 %v2877, %v2941
      %v3006 = vadd.f32 %v2878, %v2942
      %v3007 = vadd.f32 %v2879, %v2941
      %v3008 = vadd.f32 %v2880, %v2942
      %v3009 = vadd.f32 %v2881, %v2941
      %v3010 = vadd.f32 %v2882, %v2942
      %v3011 = vadd.f32 %v2883, %v2941
      %v3012 = vadd.f32 %v2884, %v2942
      %v3013 = vadd.f32 %v2885, %v2941
      %v3014 = vadd.f32 %v2886, %v2942
      %v3015 = vadd.f32 %v2887, %v2941
      %v3016 = vadd.f32 %v2888, %v2942
      %v3017 = vadd.f32 %v2889, %v2941
      %v3018 = vadd.f32 %v2890, %v2942
      %v3019 = vadd.f32 %v2891, %v2941
      %v3020 = vadd.f32 %v2892, %v2942
      %v3021 = vadd.f32 %v2893, %v2941
      %v3022 = vadd.f32 %v2894, %v2942
      %v3023 = vadd.f32 %v2895, %v2941
      %v3024 = vadd.f32 %v2896, %v2942
      %v3025 = vadd.f32 %v2897, %v2941
      %v3026 = vadd.f32 %v2898, %v2942
      %v3027 = vadd.f32 %v2899, %v2941
      %v3028 = vadd.f32 %v2900, %v2942
      %v3029 = vadd.f32 %v2901, %v2941
      %v3030 = vadd.f32 %v2902, %v2942
      %v3031 = vadd.f32 %v2903, %v2941
      %v3032 = vadd.f32 %v2904, %v2942
      %v3033 = vadd.f32 %v2905, %v2941
      %v3034 = vadd.f32 %v2906, %v2942
      %v3035 = vadd.f32 %v2907, %v2941
      %v3036 = vadd.f32 %v2908, %v2942
      %v3037 = vadd.f32 %v2909, %v2941
      %v3038 = vadd.f32 %v2910, %v2942
      %v3039 = vadd.f32 %v2911, %v2941
      %v3040 = vadd.f32 %v2912, %v2942
      %v3041 = vadd.f32 %v2913, %v2941
      %v3042 = vadd.f32 %v2914, %v2942
      %v3043 = vadd.f32 %v2915, %v2941
      %v3044 = vadd.f32 %v2916, %v2942
      %v3045 = vadd.f32 %v2917, %v2941
      %v3046 = vadd.f32 %v2918, %v2942
      %v3047 = vadd.f32 %v2919, %v2941
      %v3048 = vadd.f32 %v2920, %v2942
      %v3049 = vadd.f32 %v2921, %v2941
      %v3050 = vadd.f32 %v2922, %v2942
      %v3051 = vadd.f32 %v2923, %v2941
      %v3052 = vadd.f32 %v2924, %v2942
      %v3053 = vadd.f32 %v2925, %v2941
      %v3054 = vadd.f32 %v2926, %v2942
      %v3055 = vadd.f32 %v2927, %v2941
      %v3056 = vadd.f32 %v2928, %v2942
      %v3057 = vadd.f32 %v2929, %v2941
      %v3058 = vadd.f32 %v2930, %v2942
      %v3059 = vadd.f32 %v2931, %v2941
      %v3060 = vadd.f32 %v2932, %v2942
      %v3061 = vadd.f32 %v2933, %v2941
      %v3062 = vadd.f32 %v2934, %v2942
      %v3063 = vadd.f32 %v2935, %v2941
      %v3064 = vadd.f32 %v2936, %v2942
      %v3065 = vadd.f32 %v2937, %v2941
      %v3066 = vadd.f32 %v2938, %v2942
      %v3067 = vadd.f32 %v2939, %v2941
      %v3068 = vadd.f32 %v2940, %v2942
      %v3069 = vpack.c.bf16 %v2944, %v2943
      %v3070 = vpack.c.bf16 %v2946, %v2945
      %v3071 = vpack.c.bf16 %v2948, %v2947
      %v3072 = vpack.c.bf16 %v2950, %v2949
      %v3073 = vpack.c.bf16 %v2952, %v2951
      %v3074 = vpack.c.bf16 %v2954, %v2953
      %v3075 = vpack.c.bf16 %v2956, %v2955
      %v3076 = vpack.c.bf16 %v2958, %v2957
      %v3077 = vpack.c.bf16 %v2960, %v2959
      %v3078 = vpack.c.bf16 %v2962, %v2961
      %v3079 = vpack.c.bf16 %v2964, %v2963
      %v3080 = vpack.c.bf16 %v2966, %v2965
      %v3081 = vpack.c.bf16 %v2968, %v2967
      %v3082 = vpack.c.bf16 %v2970, %v2969
      %v3083 = vpack.c.bf16 %v2972, %v2971
      %v3084 = vpack.c.bf16 %v2974, %v2973
      %v3085 = vpack.c.bf16 %v2976, %v2975
      %v3086 = vpack.c.bf16 %v2978, %v2977
      %v3087 = vpack.c.bf16 %v2980, %v2979
      %v3088 = vpack.c.bf16 %v2982, %v2981
      %v3089 = vpack.c.bf16 %v2984, %v2983
      %v3090 = vpack.c.bf16 %v2986, %v2985
      %v3091 = vpack.c.bf16 %v2988, %v2987
      %v3092 = vpack.c.bf16 %v2990, %v2989
      %v3093 = vpack.c.bf16 %v2992, %v2991
      %v3094 = vpack.c.bf16 %v2994, %v2993
      %v3095 = vpack.c.bf16 %v2996, %v2995
      %v3096 = vpack.c.bf16 %v2998, %v2997
      %v3097 = vpack.c.bf16 %v3000, %v2999
      %v3098 = vpack.c.bf16 %v3002, %v3001
      %v3099 = vpack.c.bf16 %v3004, %v3003
      %v3100 = vpack.c.bf16 %v3006, %v3005
      %v3101 = vpack.c.bf16 %v3008, %v3007
      %v3102 = vpack.c.bf16 %v3010, %v3009
      %v3103 = vpack.c.bf16 %v3012, %v3011
      %v3104 = vpack.c.bf16 %v3014, %v3013
      %v3105 = vpack.c.bf16 %v3016, %v3015
      %v3106 = vpack.c.bf16 %v3018, %v3017
      %v3107 = vpack.c.bf16 %v3020, %v3019
      %v3108 = vpack.c.bf16 %v3022, %v3021
      %v3109 = vpack.c.bf16 %v3024, %v3023
      %v3110 = vpack.c.bf16 %v3026, %v3025
      %v3111 = vpack.c.bf16 %v3028, %v3027
      %v3112 = vpack.c.bf16 %v3030, %v3029
      %v3113 = vpack.c.bf16 %v3032, %v3031
      %v3114 = vpack.c.bf16 %v3034, %v3033
      %v3115 = vpack.c.bf16 %v3036, %v3035
      %v3116 = vpack.c.bf16 %v3038, %v3037
      %v3117 = vpack.c.bf16 %v3040, %v3039
      %v3118 = vpack.c.bf16 %v3042, %v3041
      %v3119 = vpack.c.bf16 %v3044, %v3043
      %v3120 = vpack.c.bf16 %v3046, %v3045
      %v3121 = vpack.c.bf16 %v3048, %v3047
      %v3122 = vpack.c.bf16 %v3050, %v3049
      %v3123 = vpack.c.bf16 %v3052, %v3051
      %v3124 = vpack.c.bf16 %v3054, %v3053
      %v3125 = vpack.c.bf16 %v3056, %v3055
      %v3126 = vpack.c.bf16 %v3058, %v3057
      %v3127 = vpack.c.bf16 %v3060, %v3059
      %v3128 = vpack.c.bf16 %v3062, %v3061
      %v3129 = vpack.c.bf16 %v3064, %v3063
      %v3130 = vpack.c.bf16 %v3066, %v3065
      %v3131 = vpack.c.bf16 %v3068, %v3067
      %v3132 = vunpack.c.l.bf16 %v3069
      %v3133 = vunpack.c.h.bf16 %v3069
      %v3134 = vunpack.c.l.bf16 %v3070
      %v3135 = vunpack.c.h.bf16 %v3070
      %v3136 = vunpack.c.l.bf16 %v3071
      %v3137 = vunpack.c.h.bf16 %v3071
      %v3138 = vunpack.c.l.bf16 %v3072
      %v3139 = vunpack.c.h.bf16 %v3072
      %v3140 = vunpack.c.l.bf16 %v3073
      %v3141 = vunpack.c.h.bf16 %v3073
      %v3142 = vunpack.c.l.bf16 %v3074
      %v3143 = vunpack.c.h.bf16 %v3074
      %v3144 = vunpack.c.l.bf16 %v3075
      %v3145 = vunpack.c.h.bf16 %v3075
      %v3146 = vunpack.c.l.bf16 %v3076
      %v3147 = vunpack.c.h.bf16 %v3076
      %v3148 = vunpack.c.l.bf16 %v3077
      %v3149 = vunpack.c.h.bf16 %v3077
      %v3150 = vunpack.c.l.bf16 %v3078
      %v3151 = vunpack.c.h.bf16 %v3078
      %v3152 = vunpack.c.l.bf16 %v3079
      %v3153 = vunpack.c.h.bf16 %v3079
      %v3154 = vunpack.c.l.bf16 %v3080
      %v3155 = vunpack.c.h.bf16 %v3080
      %v3156 = vunpack.c.l.bf16 %v3081
      %v3157 = vunpack.c.h.bf16 %v3081
      %v3158 = vunpack.c.l.bf16 %v3082
      %v3159 = vunpack.c.h.bf16 %v3082
      %v3160 = vunpack.c.l.bf16 %v3083
      %v3161 = vunpack.c.h.bf16 %v3083
      %v3162 = vunpack.c.l.bf16 %v3084
      %v3163 = vunpack.c.h.bf16 %v3084
      %v3164 = vunpack.c.l.bf16 %v3085
      %v3165 = vunpack.c.h.bf16 %v3085
      %v3166 = vunpack.c.l.bf16 %v3086
      %v3167 = vunpack.c.h.bf16 %v3086
      %v3168 = vunpack.c.l.bf16 %v3087
      %v3169 = vunpack.c.h.bf16 %v3087
      %v3170 = vunpack.c.l.bf16 %v3088
      %v3171 = vunpack.c.h.bf16 %v3088
      %v3172 = vunpack.c.l.bf16 %v3089
      %v3173 = vunpack.c.h.bf16 %v3089
      %v3174 = vunpack.c.l.bf16 %v3090
      %v3175 = vunpack.c.h.bf16 %v3090
      %v3176 = vunpack.c.l.bf16 %v3091
      %v3177 = vunpack.c.h.bf16 %v3091
      %v3178 = vunpack.c.l.bf16 %v3092
      %v3179 = vunpack.c.h.bf16 %v3092
      %v3180 = vunpack.c.l.bf16 %v3093
      %v3181 = vunpack.c.h.bf16 %v3093
      %v3182 = vunpack.c.l.bf16 %v3094
      %v3183 = vunpack.c.h.bf16 %v3094
      %v3184 = vunpack.c.l.bf16 %v3095
      %v3185 = vunpack.c.h.bf16 %v3095
      %v3186 = vunpack.c.l.bf16 %v3096
      %v3187 = vunpack.c.h.bf16 %v3096
      %v3188 = vunpack.c.l.bf16 %v3097
      %v3189 = vunpack.c.h.bf16 %v3097
      %v3190 = vunpack.c.l.bf16 %v3098
      %v3191 = vunpack.c.h.bf16 %v3098
      %v3192 = vunpack.c.l.bf16 %v3099
      %v3193 = vunpack.c.h.bf16 %v3099
      %v3194 = vunpack.c.l.bf16 %v3100
      %v3195 = vunpack.c.h.bf16 %v3100
      %v3196 = vunpack.c.l.bf16 %v3101
      %v3197 = vunpack.c.h.bf16 %v3101
      %v3198 = vunpack.c.l.bf16 %v3102
      %v3199 = vunpack.c.h.bf16 %v3102
      %v3200 = vunpack.c.l.bf16 %v3103
      %v3201 = vunpack.c.h.bf16 %v3103
      %v3202 = vunpack.c.l.bf16 %v3104
      %v3203 = vunpack.c.h.bf16 %v3104
      %v3204 = vunpack.c.l.bf16 %v3105
      %v3205 = vunpack.c.h.bf16 %v3105
      %v3206 = vunpack.c.l.bf16 %v3106
      %v3207 = vunpack.c.h.bf16 %v3106
      %v3208 = vunpack.c.l.bf16 %v3107
      %v3209 = vunpack.c.h.bf16 %v3107
      %v3210 = vunpack.c.l.bf16 %v3108
      %v3211 = vunpack.c.h.bf16 %v3108
      %v3212 = vunpack.c.l.bf16 %v3109
      %v3213 = vunpack.c.h.bf16 %v3109
      %v3214 = vunpack.c.l.bf16 %v3110
      %v3215 = vunpack.c.h.bf16 %v3110
      %v3216 = vunpack.c.l.bf16 %v3111
      %v3217 = vunpack.c.h.bf16 %v3111
      %v3218 = vunpack.c.l.bf16 %v3112
      %v3219 = vunpack.c.h.bf16 %v3112
      %v3220 = vunpack.c.l.bf16 %v3113
      %v3221 = vunpack.c.h.bf16 %v3113
      %v3222 = vunpack.c.l.bf16 %v3114
      %v3223 = vunpack.c.h.bf16 %v3114
      %v3224 = vunpack.c.l.bf16 %v3115
      %v3225 = vunpack.c.h.bf16 %v3115
      %v3226 = vunpack.c.l.bf16 %v3116
      %v3227 = vunpack.c.h.bf16 %v3116
      %v3228 = vunpack.c.l.bf16 %v3117
      %v3229 = vunpack.c.h.bf16 %v3117
      %v3230 = vunpack.c.l.bf16 %v3118
      %v3231 = vunpack.c.h.bf16 %v3118
      %v3232 = vunpack.c.l.bf16 %v3119
      %v3233 = vunpack.c.h.bf16 %v3119
      %v3234 = vunpack.c.l.bf16 %v3120
      %v3235 = vunpack.c.h.bf16 %v3120
      %v3236 = vunpack.c.l.bf16 %v3121
      %v3237 = vunpack.c.h.bf16 %v3121
      %v3238 = vunpack.c.l.bf16 %v3122
      %v3239 = vunpack.c.h.bf16 %v3122
      %v3240 = vunpack.c.l.bf16 %v3123
      %v3241 = vunpack.c.h.bf16 %v3123
      %v3242 = vunpack.c.l.bf16 %v3124
      %v3243 = vunpack.c.h.bf16 %v3124
      %v3244 = vunpack.c.l.bf16 %v3125
      %v3245 = vunpack.c.h.bf16 %v3125
      %v3246 = vunpack.c.l.bf16 %v3126
      %v3247 = vunpack.c.h.bf16 %v3126
      %v3248 = vunpack.c.l.bf16 %v3127
      %v3249 = vunpack.c.h.bf16 %v3127
      %v3250 = vunpack.c.l.bf16 %v3128
      %v3251 = vunpack.c.h.bf16 %v3128
      %v3252 = vunpack.c.l.bf16 %v3129
      %v3253 = vunpack.c.h.bf16 %v3129
      %v3254 = vunpack.c.l.bf16 %v3130
      %v3255 = vunpack.c.h.bf16 %v3130
      %v3256 = vunpack.c.l.bf16 %v3131
      %v3257 = vunpack.c.h.bf16 %v3131
      %v3258 = vmax.f32 %v3132, 0.0
      %v3259 = vmax.f32 %v3133, 0.0
      %v3260 = vmax.f32 %v3134, 0.0
      %v3261 = vmax.f32 %v3135, 0.0
      %v3262 = vmax.f32 %v3136, 0.0
      %v3263 = vmax.f32 %v3137, 0.0
      %v3264 = vmax.f32 %v3138, 0.0
      %v3265 = vmax.f32 %v3139, 0.0
      %v3266 = vmax.f32 %v3140, 0.0
      %v3267 = vmax.f32 %v3141, 0.0
      %v3268 = vmax.f32 %v3142, 0.0
      %v3269 = vmax.f32 %v3143, 0.0
      %v3270 = vmax.f32 %v3144, 0.0
      %v3271 = vmax.f32 %v3145, 0.0
      %v3272 = vmax.f32 %v3146, 0.0
      %v3273 = vmax.f32 %v3147, 0.0
      %v3274 = vmax.f32 %v3148, 0.0
      %v3275 = vmax.f32 %v3149, 0.0
      %v3276 = vmax.f32 %v3150, 0.0
      %v3277 = vmax.f32 %v3151, 0.0
      %v3278 = vmax.f32 %v3152, 0.0
      %v3279 = vmax.f32 %v3153, 0.0
      %v3280 = vmax.f32 %v3154, 0.0
      %v3281 = vmax.f32 %v3155, 0.0
      %v3282 = vmax.f32 %v3156, 0.0
      %v3283 = vmax.f32 %v3157, 0.0
      %v3284 = vmax.f32 %v3158, 0.0
      %v3285 = vmax.f32 %v3159, 0.0
      %v3286 = vmax.f32 %v3160, 0.0
      %v3287 = vmax.f32 %v3161, 0.0
      %v3288 = vmax.f32 %v3162, 0.0
      %v3289 = vmax.f32 %v3163, 0.0
      %v3290 = vmax.f32 %v3164, 0.0
      %v3291 = vmax.f32 %v3165, 0.0
      %v3292 = vmax.f32 %v3166, 0.0
      %v3293 = vmax.f32 %v3167, 0.0
      %v3294 = vmax.f32 %v3168, 0.0
      %v3295 = vmax.f32 %v3169, 0.0
      %v3296 = vmax.f32 %v3170, 0.0
      %v3297 = vmax.f32 %v3171, 0.0
      %v3298 = vmax.f32 %v3172, 0.0
      %v3299 = vmax.f32 %v3173, 0.0
      %v3300 = vmax.f32 %v3174, 0.0
      %v3301 = vmax.f32 %v3175, 0.0
      %v3302 = vmax.f32 %v3176, 0.0
      %v3303 = vmax.f32 %v3177, 0.0
      %v3304 = vmax.f32 %v3178, 0.0
      %v3305 = vmax.f32 %v3179, 0.0
      %v3306 = vmax.f32 %v3180, 0.0
      %v3307 = vmax.f32 %v3181, 0.0
      %v3308 = vmax.f32 %v3182, 0.0
      %v3309 = vmax.f32 %v3183, 0.0
      %v3310 = vmax.f32 %v3184, 0.0
      %v3311 = vmax.f32 %v3185, 0.0
      %v3312 = vmax.f32 %v3186, 0.0
      %v3313 = vmax.f32 %v3187, 0.0
      %v3314 = vmax.f32 %v3188, 0.0
      %v3315 = vmax.f32 %v3189, 0.0
      %v3316 = vmax.f32 %v3190, 0.0
      %v3317 = vmax.f32 %v3191, 0.0
      %v3318 = vmax.f32 %v3192, 0.0
      %v3319 = vmax.f32 %v3193, 0.0
      %v3320 = vmax.f32 %v3194, 0.0
      %v3321 = vmax.f32 %v3195, 0.0
      %v3322 = vmax.f32 %v3196, 0.0
      %v3323 = vmax.f32 %v3197, 0.0
      %v3324 = vmax.f32 %v3198, 0.0
      %v3325 = vmax.f32 %v3199, 0.0
      %v3326 = vmax.f32 %v3200, 0.0
      %v3327 = vmax.f32 %v3201, 0.0
      %v3328 = vmax.f32 %v3202, 0.0
      %v3329 = vmax.f32 %v3203, 0.0
      %v3330 = vmax.f32 %v3204, 0.0
      %v3331 = vmax.f32 %v3205, 0.0
      %v3332 = vmax.f32 %v3206, 0.0
      %v3333 = vmax.f32 %v3207, 0.0
      %v3334 = vmax.f32 %v3208, 0.0
      %v3335 = vmax.f32 %v3209, 0.0
      %v3336 = vmax.f32 %v3210, 0.0
      %v3337 = vmax.f32 %v3211, 0.0
      %v3338 = vmax.f32 %v3212, 0.0
      %v3339 = vmax.f32 %v3213, 0.0
      %v3340 = vmax.f32 %v3214, 0.0
      %v3341 = vmax.f32 %v3215, 0.0
      %v3342 = vmax.f32 %v3216, 0.0
      %v3343 = vmax.f32 %v3217, 0.0
      %v3344 = vmax.f32 %v3218, 0.0
      %v3345 = vmax.f32 %v3219, 0.0
      %v3346 = vmax.f32 %v3220, 0.0
      %v3347 = vmax.f32 %v3221, 0.0
      %v3348 = vmax.f32 %v3222, 0.0
      %v3349 = vmax.f32 %v3223, 0.0
      %v3350 = vmax.f32 %v3224, 0.0
      %v3351 = vmax.f32 %v3225, 0.0
      %v3352 = vmax.f32 %v3226, 0.0
      %v3353 = vmax.f32 %v3227, 0.0
      %v3354 = vmax.f32 %v3228, 0.0
      %v3355 = vmax.f32 %v3229, 0.0
      %v3356 = vmax.f32 %v3230, 0.0
      %v3357 = vmax.f32 %v3231, 0.0
      %v3358 = vmax.f32 %v3232, 0.0
      %v3359 = vmax.f32 %v3233, 0.0
      %v3360 = vmax.f32 %v3234, 0.0
      %v3361 = vmax.f32 %v3235, 0.0
      %v3362 = vmax.f32 %v3236, 0.0
      %v3363 = vmax.f32 %v3237, 0.0
      %v3364 = vmax.f32 %v3238, 0.0
      %v3365 = vmax.f32 %v3239, 0.0
      %v3366 = vmax.f32 %v3240, 0.0
      %v3367 = vmax.f32 %v3241, 0.0
      %v3368 = vmax.f32 %v3242, 0.0
      %v3369 = vmax.f32 %v3243, 0.0
      %v3370 = vmax.f32 %v3244, 0.0
      %v3371 = vmax.f32 %v3245, 0.0
      %v3372 = vmax.f32 %v3246, 0.0
      %v3373 = vmax.f32 %v3247, 0.0
      %v3374 = vmax.f32 %v3248, 0.0
      %v3375 = vmax.f32 %v3249, 0.0
      %v3376 = vmax.f32 %v3250, 0.0
      %v3377 = vmax.f32 %v3251, 0.0
      %v3378 = vmax.f32 %v3252, 0.0
      %v3379 = vmax.f32 %v3253, 0.0
      %v3380 = vmax.f32 %v3254, 0.0
      %v3381 = vmax.f32 %v3255, 0.0
      %v3382 = vmax.f32 %v3256, 0.0
      %v3383 = vmax.f32 %v3257, 0.0
      %v3384 = vpack.c.bf16 %v3260, %v3258
      %v3385 = vpack.c.bf16 %v3261, %v3259
      %v3386 = vpack.c.bf16 %v3264, %v3262
      %v3387 = vpack.c.bf16 %v3265, %v3263
      %v3388 = vpack.c.bf16 %v3268, %v3266
      %v3389 = vpack.c.bf16 %v3269, %v3267
      %v3390 = vpack.c.bf16 %v3272, %v3270
      %v3391 = vpack.c.bf16 %v3273, %v3271
      %v3392 = vpack.c.bf16 %v3276, %v3274
      %v3393 = vpack.c.bf16 %v3277, %v3275
      %v3394 = vpack.c.bf16 %v3280, %v3278
      %v3395 = vpack.c.bf16 %v3281, %v3279
      %v3396 = vpack.c.bf16 %v3284, %v3282
      %v3397 = vpack.c.bf16 %v3285, %v3283
      %v3398 = vpack.c.bf16 %v3288, %v3286
      %v3399 = vpack.c.bf16 %v3289, %v3287
      %v3400 = vpack.c.bf16 %v3292, %v3290
      %v3401 = vpack.c.bf16 %v3293, %v3291
      %v3402 = vpack.c.bf16 %v3296, %v3294
      %v3403 = vpack.c.bf16 %v3297, %v3295
      %v3404 = vpack.c.bf16 %v3300, %v3298
      %v3405 = vpack.c.bf16 %v3301, %v3299
      %v3406 = vpack.c.bf16 %v3304, %v3302
      %v3407 = vpack.c.bf16 %v3305, %v3303
      %v3408 = vpack.c.bf16 %v3308, %v3306
      %v3409 = vpack.c.bf16 %v3309, %v3307
      %v3410 = vpack.c.bf16 %v3312, %v3310
      %v3411 = vpack.c.bf16 %v3313, %v3311
      %v3412 = vpack.c.bf16 %v3316, %v3314
      %v3413 = vpack.c.bf16 %v3317, %v3315
      %v3414 = vpack.c.bf16 %v3320, %v3318
      %v3415 = vpack.c.bf16 %v3321, %v3319
      %v3416 = vpack.c.bf16 %v3324, %v3322
      %v3417 = vpack.c.bf16 %v3325, %v3323
      %v3418 = vpack.c.bf16 %v3328, %v3326
      %v3419 = vpack.c.bf16 %v3329, %v3327
      %v3420 = vpack.c.bf16 %v3332, %v3330
      %v3421 = vpack.c.bf16 %v3333, %v3331
      %v3422 = vpack.c.bf16 %v3336, %v3334
      %v3423 = vpack.c.bf16 %v3337, %v3335
      %v3424 = vpack.c.bf16 %v3340, %v3338
      %v3425 = vpack.c.bf16 %v3341, %v3339
      %v3426 = vpack.c.bf16 %v3344, %v3342
      %v3427 = vpack.c.bf16 %v3345, %v3343
      %v3428 = vpack.c.bf16 %v3348, %v3346
      %v3429 = vpack.c.bf16 %v3349, %v3347
      %v3430 = vpack.c.bf16 %v3352, %v3350
      %v3431 = vpack.c.bf16 %v3353, %v3351
      %v3432 = vpack.c.bf16 %v3356, %v3354
      %v3433 = vpack.c.bf16 %v3357, %v3355
      %v3434 = vpack.c.bf16 %v3360, %v3358
      %v3435 = vpack.c.bf16 %v3361, %v3359
      %v3436 = vpack.c.bf16 %v3364, %v3362
      %v3437 = vpack.c.bf16 %v3365, %v3363
      %v3438 = vpack.c.bf16 %v3368, %v3366
      %v3439 = vpack.c.bf16 %v3369, %v3367
      %v3440 = vpack.c.bf16 %v3372, %v3370
      %v3441 = vpack.c.bf16 %v3373, %v3371
      %v3442 = vpack.c.bf16 %v3376, %v3374
      %v3443 = vpack.c.bf16 %v3377, %v3375
      %v3444 = vpack.c.bf16 %v3380, %v3378
      %v3445 = vpack.c.bf16 %v3381, %v3379
      %v3446 = vpack.c.bf16 %v3382, %v3382
      %v3447 = vpack.c.bf16 %v3383, %v3383
      %v3448 = vld [vmem:[%s6] sm:$0xff]
      %v3449 = vld [vmem:[%s6 + $0x8] sm:$0xff]
      %v3450 = vld [vmem:[%s6 + $0x10] sm:$0xff]
      %v3451 = vld [vmem:[%s6 + $0x18] sm:$0xff]
      %v3452 = vld [vmem:[%s6 + $0x20] sm:$0xff]
      %v3453 = vld [vmem:[%s6 + $0x28] sm:$0xff]
      %v3454 = vld [vmem:[%s6 + $0x30] sm:$0xff]
      %v3455 = vld [vmem:[%s6 + $0x38] sm:$0xff]
      %v3456 = vld [vmem:[%s6 + $0x40] sm:$0xff]
      %v3457 = vld [vmem:[%s6 + $0x48] sm:$0xff]
      %v3458 = vld [vmem:[%s6 + $0x50] sm:$0xff]
      %v3459 = vld [vmem:[%s6 + $0x58] sm:$0xff]
      %v3460 = vld [vmem:[%s6 + $0x60] sm:$0xff]
      %v3461 = vld [vmem:[%s6 + $0x68] sm:$0xff]
      %v3462 = vld [vmem:[%s6 + $0x70] sm:$0xff]
      %v3463 = vld [vmem:[%s6 + $0x78] sm:$0xff]
      %v3464 = vld [vmem:[%s6 + $0x80] sm:$0xff]
      %v3465 = vld [vmem:[%s6 + $0x88] sm:$0xff]
      %v3466 = vld [vmem:[%s6 + $0x90] sm:$0xff]
      %v3467 = vld [vmem:[%s6 + $0x98] sm:$0xff]
      %v3468 = vld [vmem:[%s6 + $0xa0] sm:$0xff]
      %v3469 = vld [vmem:[%s6 + $0xa8] sm:$0xff]
      %v3470 = vld [vmem:[%s6 + $0xb0] sm:$0xff]
      %v3471 = vld [vmem:[%s6 + $0xb8] sm:$0xff]
      %v3472 = vld [vmem:[%s6 + $0xc0] sm:$0xff]
      %v3473 = vld [vmem:[%s6 + $0xc8] sm:$0xff]
      %v3474 = vld [vmem:[%s6 + $0xd0] sm:$0xff]
      %v3475 = vld [vmem:[%s6 + $0xd8] sm:$0xff]
      %v3476 = vld [vmem:[%s6 + $0xe0] sm:$0xff]
      %v3477 = vld [vmem:[%s6 + $0xe8] sm:$0xff]
      %v3478 = vld [vmem:[%s6 + $0xf0] sm:$0xff]
      %v3479 = vld [vmem:[%s6 + $0xf8] sm:$0xff]
      %v3512 = vunpack.c.l.b16 %v3448
      %v3513 = vunpack.c.h.b16 %v3448
      %v3514 = vunpack.c.l.b16 %v3449
      %v3515 = vunpack.c.h.b16 %v3449
      %v3516 = vunpack.c.l.b16 %v3450
      %v3517 = vunpack.c.h.b16 %v3450
      %v3518 = vunpack.c.l.b16 %v3451
      %v3519 = vunpack.c.h.b16 %v3451
      %v3520 = vunpack.c.l.b16 %v3452
      %v3521 = vunpack.c.h.b16 %v3452
      %v3522 = vunpack.c.l.b16 %v3453
      %v3523 = vunpack.c.h.b16 %v3453
      %v3524 = vunpack.c.l.b16 %v3454
      %v3525 = vunpack.c.h.b16 %v3454
      %v3526 = vunpack.c.l.b16 %v3455
      %v3527 = vunpack.c.h.b16 %v3455
      %v3528 = vunpack.c.l.b16 %v3456
      %v3529 = vunpack.c.h.b16 %v3456
      %v3530 = vunpack.c.l.b16 %v3457
      %v3531 = vunpack.c.h.b16 %v3457
      %v3532 = vunpack.c.l.b16 %v3458
      %v3533 = vunpack.c.h.b16 %v3458
      %v3534 = vunpack.c.l.b16 %v3459
      %v3535 = vunpack.c.h.b16 %v3459
      %v3536 = vunpack.c.l.b16 %v3460
      %v3537 = vunpack.c.h.b16 %v3460
      %v3538 = vunpack.c.l.b16 %v3461
      %v3539 = vunpack.c.h.b16 %v3461
      %v3540 = vunpack.c.l.b16 %v3462
      %v3541 = vunpack.c.h.b16 %v3462
      %v3542 = vunpack.c.l.b16 %v3463
      %v3543 = vunpack.c.h.b16 %v3463
      %v3544 = vunpack.c.l.b16 %v3464
      %v3545 = vunpack.c.h.b16 %v3464
      %v3546 = vunpack.c.l.b16 %v3465
      %v3547 = vunpack.c.h.b16 %v3465
      %v3548 = vunpack.c.l.b16 %v3466
      %v3549 = vunpack.c.h.b16 %v3466
      %v3550 = vunpack.c.l.b16 %v3467
      %v3551 = vunpack.c.h.b16 %v3467
      %v3552 = vunpack.c.l.b16 %v3468
      %v3553 = vunpack.c.h.b16 %v3468
      %v3554 = vunpack.c.l.b16 %v3469
      %v3555 = vunpack.c.h.b16 %v3469
      %v3556 = vunpack.c.l.b16 %v3470
      %v3557 = vunpack.c.h.b16 %v3470
      %v3558 = vunpack.c.l.b16 %v3471
      %v3559 = vunpack.c.h.b16 %v3471
      %v3560 = vunpack.c.l.b16 %v3472
      %v3561 = vunpack.c.h.b16 %v3472
      %v3562 = vunpack.c.l.b16 %v3473
      %v3563 = vunpack.c.h.b16 %v3473
      %v3564 = vunpack.c.l.b16 %v3474
      %v3565 = vunpack.c.h.b16 %v3474
      %v3566 = vunpack.c.l.b16 %v3475
      %v3567 = vunpack.c.h.b16 %v3475
      %v3568 = vunpack.c.l.b16 %v3476
      %v3569 = vunpack.c.h.b16 %v3476
      %v3570 = vunpack.c.l.b16 %v3477
      %v3571 = vunpack.c.h.b16 %v3477
      %v3572 = vunpack.c.l.b16 %v3478
      %v3573 = vunpack.c.h.b16 %v3478
      %v3574 = vunpack.c.l.b16 %v3479
      %v3575 = vunpack.c.h.b16 %v3479
      %v3576 = vpack.c.b16 %v3514, %v3512
      %v3577 = vpack.c.b16 %v3515, %v3513
      %v3578 = vpack.c.b16 %v3518, %v3516
      %v3579 = vpack.c.b16 %v3519, %v3517
      %v3580 = vpack.c.b16 %v3522, %v3520
      %v3581 = vpack.c.b16 %v3523, %v3521
      %v3582 = vpack.c.b16 %v3526, %v3524
      %v3583 = vpack.c.b16 %v3527, %v3525
      %v3584 = vpack.c.b16 %v3530, %v3528
      %v3585 = vpack.c.b16 %v3531, %v3529
      %v3586 = vpack.c.b16 %v3534, %v3532
      %v3587 = vpack.c.b16 %v3535, %v3533
      %v3588 = vpack.c.b16 %v3538, %v3536
      %v3589 = vpack.c.b16 %v3539, %v3537
      %v3590 = vpack.c.b16 %v3542, %v3540
      %v3591 = vpack.c.b16 %v3543, %v3541
      %v3592 = vpack.c.b16 %v3546, %v3544
      %v3593 = vpack.c.b16 %v3547, %v3545
      %v3594 = vpack.c.b16 %v3550, %v3548
      %v3595 = vpack.c.b16 %v3551, %v3549
      %v3596 = vpack.c.b16 %v3554, %v3552
      %v3597 = vpack.c.b16 %v3555, %v3553
      %v3598 = vpack.c.b16 %v3558, %v3556
      %v3599 = vpack.c.b16 %v3559, %v3557
      %v3600 = vpack.c.b16 %v3562, %v3560
      %v3601 = vpack.c.b16 %v3563, %v3561
      %v3602 = vpack.c.b16 %v3566, %v3564
      %v3603 = vpack.c.b16 %v3567, %v3565
      %v3604 = vpack.c.b16 %v3570, %v3568
      %v3605 = vpack.c.b16 %v3571, %v3569
      %v3606 = vpack.c.b16 %v3574, %v3572
      %v3607 = vpack.c.b16 %v3575, %v3573
      %3640 = vmatpush.bf16.msra.mxu0 %v3590
      %3641 = vmatpush.bf16.msra.mxu0 %v3588
      %3642 = vmatpush.bf16.msra.mxu0 %v3586
      %3643 = vmatpush.bf16.msra.mxu0 %v3584
      %3644 = vmatpush.bf16.msra.mxu0 %v3582
      %3645 = vmatpush.bf16.msra.mxu0 %v3580
      %3646 = vmatpush.bf16.msra.mxu0 %v3578
      %3647 = vmatpush.bf16.msra.mxu0 %v3576
      %3648 = vmatmul.bf16.gmra.mxu0 %v3384
      %v3649 = vpop.f32.mrf.mxu0
      %v3650 = vadd.f32 0.0, %v3649
      %v3651 = vpop.f32.mrf.mxu0
      %v3652 = vadd.f32 0.0, %v3651
      %3653 = vmatmul.bf16.gmra.mxu0 %v3386
      %v3654 = vpop.f32.mrf.mxu0
      %v3655 = vadd.f32 0.0, %v3654
      %v3656 = vpop.f32.mrf.mxu0
      %v3657 = vadd.f32 0.0, %v3656
      %3658 = vmatmul.bf16.gmra.mxu0 %v3388
      %v3659 = vpop.f32.mrf.mxu0
      %v3660 = vadd.f32 0.0, %v3659
      %v3661 = vpop.f32.mrf.mxu0
      %v3662 = vadd.f32 0.0, %v3661
      %3663 = vmatmul.bf16.gmra.mxu0 %v3390
      %v3664 = vpop.f32.mrf.mxu0
      %v3665 = vadd.f32 0.0, %v3664
      %v3666 = vpop.f32.mrf.mxu0
      %v3667 = vadd.f32 0.0, %v3666
      %3668 = vmatmul.bf16.gmra.mxu0 %v3392
      %v3669 = vpop.f32.mrf.mxu0
      %v3670 = vadd.f32 0.0, %v3669
      %v3671 = vpop.f32.mrf.mxu0
      %v3672 = vadd.f32 0.0, %v3671
      %3673 = vmatmul.bf16.gmra.mxu0 %v3394
      %v3674 = vpop.f32.mrf.mxu0
      %v3675 = vadd.f32 0.0, %v3674
      %v3676 = vpop.f32.mrf.mxu0
      %v3677 = vadd.f32 0.0, %v3676
      %3678 = vmatmul.bf16.gmra.mxu0 %v3396
      %v3679 = vpop.f32.mrf.mxu0
      %v3680 = vadd.f32 0.0, %v3679
      %v3681 = vpop.f32.mrf.mxu0
      %v3682 = vadd.f32 0.0, %v3681
      %3683 = vmatmul.bf16.gmra.mxu0 %v3398
      %v3684 = vpop.f32.mrf.mxu0
      %v3685 = vadd.f32 0.0, %v3684
      %v3686 = vpop.f32.mrf.mxu0
      %v3687 = vadd.f32 0.0, %v3686
      %3688 = vmatmul.bf16.gmra.mxu0 %v3400
      %v3689 = vpop.f32.mrf.mxu0
      %v3690 = vadd.f32 0.0, %v3689
      %v3691 = vpop.f32.mrf.mxu0
      %v3692 = vadd.f32 0.0, %v3691
      %3693 = vmatmul.bf16.gmra.mxu0 %v3402
      %v3694 = vpop.f32.mrf.mxu0
      %v3695 = vadd.f32 0.0, %v3694
      %v3696 = vpop.f32.mrf.mxu0
      %v3697 = vadd.f32 0.0, %v3696
      %3698 = vmatmul.bf16.gmra.mxu0 %v3404
      %v3699 = vpop.f32.mrf.mxu0
      %v3700 = vadd.f32 0.0, %v3699
      %v3701 = vpop.f32.mrf.mxu0
      %v3702 = vadd.f32 0.0, %v3701
      %3703 = vmatmul.bf16.gmra.mxu0 %v3406
      %v3704 = vpop.f32.mrf.mxu0
      %v3705 = vadd.f32 0.0, %v3704
      %v3706 = vpop.f32.mrf.mxu0
      %v3707 = vadd.f32 0.0, %v3706
      %3708 = vmatmul.bf16.gmra.mxu0 %v3408
      %v3709 = vpop.f32.mrf.mxu0
      %v3710 = vadd.f32 0.0, %v3709
      %v3711 = vpop.f32.mrf.mxu0
      %v3712 = vadd.f32 0.0, %v3711
      %3713 = vmatmul.bf16.gmra.mxu0 %v3410
      %v3714 = vpop.f32.mrf.mxu0
      %v3715 = vadd.f32 0.0, %v3714
      %v3716 = vpop.f32.mrf.mxu0
      %v3717 = vadd.f32 0.0, %v3716
      %3718 = vmatmul.bf16.gmra.mxu0 %v3412
      %v3719 = vpop.f32.mrf.mxu0
      %v3720 = vadd.f32 0.0, %v3719
      %v3721 = vpop.f32.mrf.mxu0
      %v3722 = vadd.f32 0.0, %v3721
      %3723 = vmatmul.bf16.gmra.mxu0 %v3414
      %v3724 = vpop.f32.mrf.mxu0
      %v3725 = vadd.f32 0.0, %v3724
      %v3726 = vpop.f32.mrf.mxu0
      %v3727 = vadd.f32 0.0, %v3726
      %3728 = vmatmul.bf16.gmra.mxu0 %v3416
      %v3729 = vpop.f32.mrf.mxu0
      %v3730 = vadd.f32 0.0, %v3729
      %v3731 = vpop.f32.mrf.mxu0
      %v3732 = vadd.f32 0.0, %v3731
      %3733 = vmatmul.bf16.gmra.mxu0 %v3418
      %v3734 = vpop.f32.mrf.mxu0
      %v3735 = vadd.f32 0.0, %v3734
      %v3736 = vpop.f32.mrf.mxu0
      %v3737 = vadd.f32 0.0, %v3736
      %3738 = vmatmul.bf16.gmra.mxu0 %v3420
      %v3739 = vpop.f32.mrf.mxu0
      %v3740 = vadd.f32 0.0, %v3739
      %v3741 = vpop.f32.mrf.mxu0
      %v3742 = vadd.f32 0.0, %v3741
      %3743 = vmatmul.bf16.gmra.mxu0 %v3422
      %v3744 = vpop.f32.mrf.mxu0
      %v3745 = vadd.f32 0.0, %v3744
      %v3746 = vpop.f32.mrf.mxu0
      %v3747 = vadd.f32 0.0, %v3746
      %3748 = vmatmul.bf16.gmra.mxu0 %v3424
      %v3749 = vpop.f32.mrf.mxu0
      %v3750 = vadd.f32 0.0, %v3749
      %v3751 = vpop.f32.mrf.mxu0
      %v3752 = vadd.f32 0.0, %v3751
      %3753 = vmatmul.bf16.gmra.mxu0 %v3426
      %v3754 = vpop.f32.mrf.mxu0
      %v3755 = vadd.f32 0.0, %v3754
      %v3756 = vpop.f32.mrf.mxu0
      %v3757 = vadd.f32 0.0, %v3756
      %3758 = vmatmul.bf16.gmra.mxu0 %v3428
      %v3759 = vpop.f32.mrf.mxu0
      %v3760 = vadd.f32 0.0, %v3759
      %v3761 = vpop.f32.mrf.mxu0
      %v3762 = vadd.f32 0.0, %v3761
      %3763 = vmatmul.bf16.gmra.mxu0 %v3430
      %v3764 = vpop.f32.mrf.mxu0
      %v3765 = vadd.f32 0.0, %v3764
      %v3766 = vpop.f32.mrf.mxu0
      %v3767 = vadd.f32 0.0, %v3766
      %3768 = vmatmul.bf16.gmra.mxu0 %v3432
      %v3769 = vpop.f32.mrf.mxu0
      %v3770 = vadd.f32 0.0, %v3769
      %v3771 = vpop.f32.mrf.mxu0
      %v3772 = vadd.f32 0.0, %v3771
      %3773 = vmatmul.bf16.gmra.mxu0 %v3434
      %v3774 = vpop.f32.mrf.mxu0
      %v3775 = vadd.f32 0.0, %v3774
      %v3776 = vpop.f32.mrf.mxu0
      %v3777 = vadd.f32 0.0, %v3776
      %3778 = vmatmul.bf16.gmra.mxu0 %v3436
      %v3779 = vpop.f32.mrf.mxu0
      %v3780 = vadd.f32 0.0, %v3779
      %v3781 = vpop.f32.mrf.mxu0
      %v3782 = vadd.f32 0.0, %v3781
      %3783 = vmatmul.bf16.gmra.mxu0 %v3438
      %v3784 = vpop.f32.mrf.mxu0
      %v3785 = vadd.f32 0.0, %v3784
      %v3786 = vpop.f32.mrf.mxu0
      %v3787 = vadd.f32 0.0, %v3786
      %3788 = vmatmul.bf16.gmra.mxu0 %v3440
      %v3789 = vpop.f32.mrf.mxu0
      %v3790 = vadd.f32 0.0, %v3789
      %v3791 = vpop.f32.mrf.mxu0
      %v3792 = vadd.f32 0.0, %v3791
      %3793 = vmatmul.bf16.gmra.mxu0 %v3442
      %v3794 = vpop.f32.mrf.mxu0
      %v3795 = vadd.f32 0.0, %v3794
      %v3796 = vpop.f32.mrf.mxu0
      %v3797 = vadd.f32 0.0, %v3796
      %3798 = vmatmul.bf16.gmra.mxu0 %v3444
      %v3799 = vpop.f32.mrf.mxu0
      %v3800 = vadd.f32 0.0, %v3799
      %v3801 = vpop.f32.mrf.mxu0
      %v3802 = vadd.f32 0.0, %v3801
      %3803 = vmatmul.bf16.gmra.mxu0 %v3446
      %v3804 = vpop.f32.mrf.mxu0
      %v3805 = vadd.f32 0.0, %v3804
      %v3806 = vpop.f32.mrf.mxu0
      %3807 = vdwg.mxu0
      %3808 = vmatpush.bf16.msra.mxu0 %v3606
      %3809 = vmatpush.bf16.msra.mxu0 %v3604
      %3810 = vmatpush.bf16.msra.mxu0 %v3602
      %3811 = vmatpush.bf16.msra.mxu0 %v3600
      %3812 = vmatpush.bf16.msra.mxu0 %v3598
      %3813 = vmatpush.bf16.msra.mxu0 %v3596
      %3814 = vmatpush.bf16.msra.mxu0 %v3594
      %3815 = vmatpush.bf16.msra.mxu0 %v3592
      %3816 = vmatmul.bf16.gmra.mxu0 %v3385
      %v3817 = vpop.f32.mrf.mxu0
      %v3818 = vadd.f32 %v3650, %v3817
      %v3819 = vpop.f32.mrf.mxu0
      %v3820 = vadd.f32 %v3652, %v3819
      %3821 = vmatmul.bf16.gmra.mxu0 %v3387
      %v3822 = vpop.f32.mrf.mxu0
      %v3823 = vadd.f32 %v3655, %v3822
      %v3824 = vpop.f32.mrf.mxu0
      %v3825 = vadd.f32 %v3657, %v3824
      %3826 = vmatmul.bf16.gmra.mxu0 %v3389
      %v3827 = vpop.f32.mrf.mxu0
      %v3828 = vadd.f32 %v3660, %v3827
      %v3829 = vpop.f32.mrf.mxu0
      %v3830 = vadd.f32 %v3662, %v3829
      %3831 = vmatmul.bf16.gmra.mxu0 %v3391
      %v3832 = vpop.f32.mrf.mxu0
      %v3833 = vadd.f32 %v3665, %v3832
      %v3834 = vpop.f32.mrf.mxu0
      %v3835 = vadd.f32 %v3667, %v3834
      %3836 = vmatmul.bf16.gmra.mxu0 %v3393
      %v3837 = vpop.f32.mrf.mxu0
      %v3838 = vadd.f32 %v3670, %v3837
      %v3839 = vpop.f32.mrf.mxu0
      %v3840 = vadd.f32 %v3672, %v3839
      %3841 = vmatmul.bf16.gmra.mxu0 %v3395
      %v3842 = vpop.f32.mrf.mxu0
      %v3843 = vadd.f32 %v3675, %v3842
      %v3844 = vpop.f32.mrf.mxu0
      %v3845 = vadd.f32 %v3677, %v3844
      %3846 = vmatmul.bf16.gmra.mxu0 %v3397
      %v3847 = vpop.f32.mrf.mxu0
      %v3848 = vadd.f32 %v3680, %v3847
      %v3849 = vpop.f32.mrf.mxu0
      %v3850 = vadd.f32 %v3682, %v3849
      %3851 = vmatmul.bf16.gmra.mxu0 %v3399
      %v3852 = vpop.f32.mrf.mxu0
      %v3853 = vadd.f32 %v3685, %v3852
      %v3854 = vpop.f32.mrf.mxu0
      %v3855 = vadd.f32 %v3687, %v3854
      %3856 = vmatmul.bf16.gmra.mxu0 %v3401
      %v3857 = vpop.f32.mrf.mxu0
      %v3858 = vadd.f32 %v3690, %v3857
      %v3859 = vpop.f32.mrf.mxu0
      %v3860 = vadd.f32 %v3692, %v3859
      %3861 = vmatmul.bf16.gmra.mxu0 %v3403
      %v3862 = vpop.f32.mrf.mxu0
      %v3863 = vadd.f32 %v3695, %v3862
      %v3864 = vpop.f32.mrf.mxu0
      %v3865 = vadd.f32 %v3697, %v3864
      %3866 = vmatmul.bf16.gmra.mxu0 %v3405
      %v3867 = vpop.f32.mrf.mxu0
      %v3868 = vadd.f32 %v3700, %v3867
      %v3869 = vpop.f32.mrf.mxu0
      %v3870 = vadd.f32 %v3702, %v3869
      %3871 = vmatmul.bf16.gmra.mxu0 %v3407
      %v3872 = vpop.f32.mrf.mxu0
      %v3873 = vadd.f32 %v3705, %v3872
      %v3874 = vpop.f32.mrf.mxu0
      %v3875 = vadd.f32 %v3707, %v3874
      %3876 = vmatmul.bf16.gmra.mxu0 %v3409
      %v3877 = vpop.f32.mrf.mxu0
      %v3878 = vadd.f32 %v3710, %v3877
      %v3879 = vpop.f32.mrf.mxu0
      %v3880 = vadd.f32 %v3712, %v3879
      %3881 = vmatmul.bf16.gmra.mxu0 %v3411
      %v3882 = vpop.f32.mrf.mxu0
      %v3883 = vadd.f32 %v3715, %v3882
      %v3884 = vpop.f32.mrf.mxu0
      %v3885 = vadd.f32 %v3717, %v3884
      %3886 = vmatmul.bf16.gmra.mxu0 %v3413
      %v3887 = vpop.f32.mrf.mxu0
      %v3888 = vadd.f32 %v3720, %v3887
      %v3889 = vpop.f32.mrf.mxu0
      %v3890 = vadd.f32 %v3722, %v3889
      %3891 = vmatmul.bf16.gmra.mxu0 %v3415
      %v3892 = vpop.f32.mrf.mxu0
      %v3893 = vadd.f32 %v3725, %v3892
      %v3894 = vpop.f32.mrf.mxu0
      %v3895 = vadd.f32 %v3727, %v3894
      %3896 = vmatmul.bf16.gmra.mxu0 %v3417
      %v3897 = vpop.f32.mrf.mxu0
      %v3898 = vadd.f32 %v3730, %v3897
      %v3899 = vpop.f32.mrf.mxu0
      %v3900 = vadd.f32 %v3732, %v3899
      %3901 = vmatmul.bf16.gmra.mxu0 %v3419
      %v3902 = vpop.f32.mrf.mxu0
      %v3903 = vadd.f32 %v3735, %v3902
      %v3904 = vpop.f32.mrf.mxu0
      %v3905 = vadd.f32 %v3737, %v3904
      %3906 = vmatmul.bf16.gmra.mxu0 %v3421
      %v3907 = vpop.f32.mrf.mxu0
      %v3908 = vadd.f32 %v3740, %v3907
      %v3909 = vpop.f32.mrf.mxu0
      %v3910 = vadd.f32 %v3742, %v3909
      %3911 = vmatmul.bf16.gmra.mxu0 %v3423
      %v3912 = vpop.f32.mrf.mxu0
      %v3913 = vadd.f32 %v3745, %v3912
      %v3914 = vpop.f32.mrf.mxu0
      %v3915 = vadd.f32 %v3747, %v3914
      %3916 = vmatmul.bf16.gmra.mxu0 %v3425
      %v3917 = vpop.f32.mrf.mxu0
      %v3918 = vadd.f32 %v3750, %v3917
      %v3919 = vpop.f32.mrf.mxu0
      %v3920 = vadd.f32 %v3752, %v3919
      %3921 = vmatmul.bf16.gmra.mxu0 %v3427
      %v3922 = vpop.f32.mrf.mxu0
      %v3923 = vadd.f32 %v3755, %v3922
      %v3924 = vpop.f32.mrf.mxu0
      %v3925 = vadd.f32 %v3757, %v3924
      %3926 = vmatmul.bf16.gmra.mxu0 %v3429
      %v3927 = vpop.f32.mrf.mxu0
      %v3928 = vadd.f32 %v3760, %v3927
      %v3929 = vpop.f32.mrf.mxu0
      %v3930 = vadd.f32 %v3762, %v3929
      %3931 = vmatmul.bf16.gmra.mxu0 %v3431
      %v3932 = vpop.f32.mrf.mxu0
      %v3933 = vadd.f32 %v3765, %v3932
      %v3934 = vpop.f32.mrf.mxu0
      %v3935 = vadd.f32 %v3767, %v3934
      %3936 = vmatmul.bf16.gmra.mxu0 %v3433
      %v3937 = vpop.f32.mrf.mxu0
      %v3938 = vadd.f32 %v3770, %v3937
      %v3939 = vpop.f32.mrf.mxu0
      %v3940 = vadd.f32 %v3772, %v3939
      %3941 = vmatmul.bf16.gmra.mxu0 %v3435
      %v3942 = vpop.f32.mrf.mxu0
      %v3943 = vadd.f32 %v3775, %v3942
      %v3944 = vpop.f32.mrf.mxu0
      %v3945 = vadd.f32 %v3777, %v3944
      %3946 = vmatmul.bf16.gmra.mxu0 %v3437
      %v3947 = vpop.f32.mrf.mxu0
      %v3948 = vadd.f32 %v3780, %v3947
      %v3949 = vpop.f32.mrf.mxu0
      %v3950 = vadd.f32 %v3782, %v3949
      %3951 = vmatmul.bf16.gmra.mxu0 %v3439
      %v3952 = vpop.f32.mrf.mxu0
      %v3953 = vadd.f32 %v3785, %v3952
      %v3954 = vpop.f32.mrf.mxu0
      %v3955 = vadd.f32 %v3787, %v3954
      %3956 = vmatmul.bf16.gmra.mxu0 %v3441
      %v3957 = vpop.f32.mrf.mxu0
      %v3958 = vadd.f32 %v3790, %v3957
      %v3959 = vpop.f32.mrf.mxu0
      %v3960 = vadd.f32 %v3792, %v3959
      %3961 = vmatmul.bf16.gmra.mxu0 %v3443
      %v3962 = vpop.f32.mrf.mxu0
      %v3963 = vadd.f32 %v3795, %v3962
      %v3964 = vpop.f32.mrf.mxu0
      %v3965 = vadd.f32 %v3797, %v3964
      %3966 = vmatmul.bf16.gmra.mxu0 %v3445
      %v3967 = vpop.f32.mrf.mxu0
      %v3968 = vadd.f32 %v3800, %v3967
      %v3969 = vpop.f32.mrf.mxu0
      %v3970 = vadd.f32 %v3802, %v3969
      %3971 = vmatmul.bf16.gmra.mxu0 %v3447
      %v3972 = vpop.f32.mrf.mxu0
      %v3973 = vadd.f32 %v3805, %v3972
      %v3974 = vpop.f32.mrf.mxu0
      %3975 = vdwg.mxu0
      %3976 = vmatpush.bf16.msra.mxu0 %v3591
      %3977 = vmatpush.bf16.msra.mxu0 %v3589
      %3978 = vmatpush.bf16.msra.mxu0 %v3587
      %3979 = vmatpush.bf16.msra.mxu0 %v3585
      %3980 = vmatpush.bf16.msra.mxu0 %v3583
      %3981 = vmatpush.bf16.msra.mxu0 %v3581
      %3982 = vmatpush.bf16.msra.mxu0 %v3579
      %3983 = vmatpush.bf16.msra.mxu0 %v3577
      %3984 = vmatmul.bf16.gmra.mxu0 %v3384
      %v3985 = vpop.f32.mrf.mxu0
      %v3986 = vadd.f32 0.0, %v3985
      %v3987 = vpop.f32.mrf.mxu0
      %v3988 = vadd.f32 0.0, %v3987
      %3989 = vmatmul.bf16.gmra.mxu0 %v3386
      %v3990 = vpop.f32.mrf.mxu0
      %v3991 = vadd.f32 0.0, %v3990
      %v3992 = vpop.f32.mrf.mxu0
      %v3993 = vadd.f32 0.0, %v3992
      %3994 = vmatmul.bf16.gmra.mxu0 %v3388
      %v3995 = vpop.f32.mrf.mxu0
      %v3996 = vadd.f32 0.0, %v3995
      %v3997 = vpop.f32.mrf.mxu0
      %v3998 = vadd.f32 0.0, %v3997
      %3999 = vmatmul.bf16.gmra.mxu0 %v3390
      %v4000 = vpop.f32.mrf.mxu0
      %v4001 = vadd.f32 0.0, %v4000
      %v4002 = vpop.f32.mrf.mxu0
      %v4003 = vadd.f32 0.0, %v4002
      %4004 = vmatmul.bf16.gmra.mxu0 %v3392
      %v4005 = vpop.f32.mrf.mxu0
      %v4006 = vadd.f32 0.0, %v4005
      %v4007 = vpop.f32.mrf.mxu0
      %v4008 = vadd.f32 0.0, %v4007
      %4009 = vmatmul.bf16.gmra.mxu0 %v3394
      %v4010 = vpop.f32.mrf.mxu0
      %v4011 = vadd.f32 0.0, %v4010
      %v4012 = vpop.f32.mrf.mxu0
      %v4013 = vadd.f32 0.0, %v4012
      %4014 = vmatmul.bf16.gmra.mxu0 %v3396
      %v4015 = vpop.f32.mrf.mxu0
      %v4016 = vadd.f32 0.0, %v4015
      %v4017 = vpop.f32.mrf.mxu0
      %v4018 = vadd.f32 0.0, %v4017
      %4019 = vmatmul.bf16.gmra.mxu0 %v3398
      %v4020 = vpop.f32.mrf.mxu0
      %v4021 = vadd.f32 0.0, %v4020
      %v4022 = vpop.f32.mrf.mxu0
      %v4023 = vadd.f32 0.0, %v4022
      %4024 = vmatmul.bf16.gmra.mxu0 %v3400
      %v4025 = vpop.f32.mrf.mxu0
      %v4026 = vadd.f32 0.0, %v4025
      %v4027 = vpop.f32.mrf.mxu0
      %v4028 = vadd.f32 0.0, %v4027
      %4029 = vmatmul.bf16.gmra.mxu0 %v3402
      %v4030 = vpop.f32.mrf.mxu0
      %v4031 = vadd.f32 0.0, %v4030
      %v4032 = vpop.f32.mrf.mxu0
      %v4033 = vadd.f32 0.0, %v4032
      %4034 = vmatmul.bf16.gmra.mxu0 %v3404
      %v4035 = vpop.f32.mrf.mxu0
      %v4036 = vadd.f32 0.0, %v4035
      %v4037 = vpop.f32.mrf.mxu0
      %v4038 = vadd.f32 0.0, %v4037
      %4039 = vmatmul.bf16.gmra.mxu0 %v3406
      %v4040 = vpop.f32.mrf.mxu0
      %v4041 = vadd.f32 0.0, %v4040
      %v4042 = vpop.f32.mrf.mxu0
      %v4043 = vadd.f32 0.0, %v4042
      %4044 = vmatmul.bf16.gmra.mxu0 %v3408
      %v4045 = vpop.f32.mrf.mxu0
      %v4046 = vadd.f32 0.0, %v4045
      %v4047 = vpop.f32.mrf.mxu0
      %v4048 = vadd.f32 0.0, %v4047
      %4049 = vmatmul.bf16.gmra.mxu0 %v3410
      %v4050 = vpop.f32.mrf.mxu0
      %v4051 = vadd.f32 0.0, %v4050
      %v4052 = vpop.f32.mrf.mxu0
      %v4053 = vadd.f32 0.0, %v4052
      %4054 = vmatmul.bf16.gmra.mxu0 %v3412
      %v4055 = vpop.f32.mrf.mxu0
      %v4056 = vadd.f32 0.0, %v4055
      %v4057 = vpop.f32.mrf.mxu0
      %v4058 = vadd.f32 0.0, %v4057
      %4059 = vmatmul.bf16.gmra.mxu0 %v3414
      %v4060 = vpop.f32.mrf.mxu0
      %v4061 = vadd.f32 0.0, %v4060
      %v4062 = vpop.f32.mrf.mxu0
      %v4063 = vadd.f32 0.0, %v4062
      %4064 = vmatmul.bf16.gmra.mxu0 %v3416
      %v4065 = vpop.f32.mrf.mxu0
      %v4066 = vadd.f32 0.0, %v4065
      %v4067 = vpop.f32.mrf.mxu0
      %v4068 = vadd.f32 0.0, %v4067
      %4069 = vmatmul.bf16.gmra.mxu0 %v3418
      %v4070 = vpop.f32.mrf.mxu0
      %v4071 = vadd.f32 0.0, %v4070
      %v4072 = vpop.f32.mrf.mxu0
      %v4073 = vadd.f32 0.0, %v4072
      %4074 = vmatmul.bf16.gmra.mxu0 %v3420
      %v4075 = vpop.f32.mrf.mxu0
      %v4076 = vadd.f32 0.0, %v4075
      %v4077 = vpop.f32.mrf.mxu0
      %v4078 = vadd.f32 0.0, %v4077
      %4079 = vmatmul.bf16.gmra.mxu0 %v3422
      %v4080 = vpop.f32.mrf.mxu0
      %v4081 = vadd.f32 0.0, %v4080
      %v4082 = vpop.f32.mrf.mxu0
      %v4083 = vadd.f32 0.0, %v4082
      %4084 = vmatmul.bf16.gmra.mxu0 %v3424
      %v4085 = vpop.f32.mrf.mxu0
      %v4086 = vadd.f32 0.0, %v4085
      %v4087 = vpop.f32.mrf.mxu0
      %v4088 = vadd.f32 0.0, %v4087
      %4089 = vmatmul.bf16.gmra.mxu0 %v3426
      %v4090 = vpop.f32.mrf.mxu0
      %v4091 = vadd.f32 0.0, %v4090
      %v4092 = vpop.f32.mrf.mxu0
      %v4093 = vadd.f32 0.0, %v4092
      %4094 = vmatmul.bf16.gmra.mxu0 %v3428
      %v4095 = vpop.f32.mrf.mxu0
      %v4096 = vadd.f32 0.0, %v4095
      %v4097 = vpop.f32.mrf.mxu0
      %v4098 = vadd.f32 0.0, %v4097
      %4099 = vmatmul.bf16.gmra.mxu0 %v3430
      %v4100 = vpop.f32.mrf.mxu0
      %v4101 = vadd.f32 0.0, %v4100
      %v4102 = vpop.f32.mrf.mxu0
      %v4103 = vadd.f32 0.0, %v4102
      %4104 = vmatmul.bf16.gmra.mxu0 %v3432
      %v4105 = vpop.f32.mrf.mxu0
      %v4106 = vadd.f32 0.0, %v4105
      %v4107 = vpop.f32.mrf.mxu0
      %v4108 = vadd.f32 0.0, %v4107
      %4109 = vmatmul.bf16.gmra.mxu0 %v3434
      %v4110 = vpop.f32.mrf.mxu0
      %v4111 = vadd.f32 0.0, %v4110
      %v4112 = vpop.f32.mrf.mxu0
      %v4113 = vadd.f32 0.0, %v4112
      %4114 = vmatmul.bf16.gmra.mxu0 %v3436
      %v4115 = vpop.f32.mrf.mxu0
      %v4116 = vadd.f32 0.0, %v4115
      %v4117 = vpop.f32.mrf.mxu0
      %v4118 = vadd.f32 0.0, %v4117
      %4119 = vmatmul.bf16.gmra.mxu0 %v3438
      %v4120 = vpop.f32.mrf.mxu0
      %v4121 = vadd.f32 0.0, %v4120
      %v4122 = vpop.f32.mrf.mxu0
      %v4123 = vadd.f32 0.0, %v4122
      %4124 = vmatmul.bf16.gmra.mxu0 %v3440
      %v4125 = vpop.f32.mrf.mxu0
      %v4126 = vadd.f32 0.0, %v4125
      %v4127 = vpop.f32.mrf.mxu0
      %v4128 = vadd.f32 0.0, %v4127
      %4129 = vmatmul.bf16.gmra.mxu0 %v3442
      %v4130 = vpop.f32.mrf.mxu0
      %v4131 = vadd.f32 0.0, %v4130
      %v4132 = vpop.f32.mrf.mxu0
      %v4133 = vadd.f32 0.0, %v4132
      %4134 = vmatmul.bf16.gmra.mxu0 %v3444
      %v4135 = vpop.f32.mrf.mxu0
      %v4136 = vadd.f32 0.0, %v4135
      %v4137 = vpop.f32.mrf.mxu0
      %v4138 = vadd.f32 0.0, %v4137
      %4139 = vmatmul.bf16.gmra.mxu0 %v3446
      %v4140 = vpop.f32.mrf.mxu0
      %v4141 = vadd.f32 0.0, %v4140
      %v4142 = vpop.f32.mrf.mxu0
      %4143 = vdwg.mxu0
      %4144 = vmatpush.bf16.msra.mxu0 %v3607
      %4145 = vmatpush.bf16.msra.mxu0 %v3605
      %4146 = vmatpush.bf16.msra.mxu0 %v3603
      %4147 = vmatpush.bf16.msra.mxu0 %v3601
      %4148 = vmatpush.bf16.msra.mxu0 %v3599
      %4149 = vmatpush.bf16.msra.mxu0 %v3597
      %4150 = vmatpush.bf16.msra.mxu0 %v3595
      %4151 = vmatpush.bf16.msra.mxu0 %v3593
      %4152 = vmatmul.bf16.gmra.mxu0 %v3385
      %v4153 = vpop.f32.mrf.mxu0
      %v4154 = vadd.f32 %v3986, %v4153
      %v4155 = vpop.f32.mrf.mxu0
      %v4156 = vadd.f32 %v3988, %v4155
      %4157 = vmatmul.bf16.gmra.mxu0 %v3387
      %v4158 = vpop.f32.mrf.mxu0
      %v4159 = vadd.f32 %v3991, %v4158
      %v4160 = vpop.f32.mrf.mxu0
      %v4161 = vadd.f32 %v3993, %v4160
      %4162 = vmatmul.bf16.gmra.mxu0 %v3389
      %v4163 = vpop.f32.mrf.mxu0
      %v4164 = vadd.f32 %v3996, %v4163
      %v4165 = vpop.f32.mrf.mxu0
      %v4166 = vadd.f32 %v3998, %v4165
      %4167 = vmatmul.bf16.gmra.mxu0 %v3391
      %v4168 = vpop.f32.mrf.mxu0
      %v4169 = vadd.f32 %v4001, %v4168
      %v4170 = vpop.f32.mrf.mxu0
      %v4171 = vadd.f32 %v4003, %v4170
      %4172 = vmatmul.bf16.gmra.mxu0 %v3393
      %v4173 = vpop.f32.mrf.mxu0
      %v4174 = vadd.f32 %v4006, %v4173
      %v4175 = vpop.f32.mrf.mxu0
      %v4176 = vadd.f32 %v4008, %v4175
      %4177 = vmatmul.bf16.gmra.mxu0 %v3395
      %v4178 = vpop.f32.mrf.mxu0
      %v4179 = vadd.f32 %v4011, %v4178
      %v4180 = vpop.f32.mrf.mxu0
      %v4181 = vadd.f32 %v4013, %v4180
      %4182 = vmatmul.bf16.gmra.mxu0 %v3397
      %v4183 = vpop.f32.mrf.mxu0
      %v4184 = vadd.f32 %v4016, %v4183
      %v4185 = vpop.f32.mrf.mxu0
      %v4186 = vadd.f32 %v4018, %v4185
      %4187 = vmatmul.bf16.gmra.mxu0 %v3399
      %v4188 = vpop.f32.mrf.mxu0
      %v4189 = vadd.f32 %v4021, %v4188
      %v4190 = vpop.f32.mrf.mxu0
      %v4191 = vadd.f32 %v4023, %v4190
      %4192 = vmatmul.bf16.gmra.mxu0 %v3401
      %v4193 = vpop.f32.mrf.mxu0
      %v4194 = vadd.f32 %v4026, %v4193
      %v4195 = vpop.f32.mrf.mxu0
      %v4196 = vadd.f32 %v4028, %v4195
      %4197 = vmatmul.bf16.gmra.mxu0 %v3403
      %v4198 = vpop.f32.mrf.mxu0
      %v4199 = vadd.f32 %v4031, %v4198
      %v4200 = vpop.f32.mrf.mxu0
      %v4201 = vadd.f32 %v4033, %v4200
      %4202 = vmatmul.bf16.gmra.mxu0 %v3405
      %v4203 = vpop.f32.mrf.mxu0
      %v4204 = vadd.f32 %v4036, %v4203
      %v4205 = vpop.f32.mrf.mxu0
      %v4206 = vadd.f32 %v4038, %v4205
      %4207 = vmatmul.bf16.gmra.mxu0 %v3407
      %v4208 = vpop.f32.mrf.mxu0
      %v4209 = vadd.f32 %v4041, %v4208
      %v4210 = vpop.f32.mrf.mxu0
      %v4211 = vadd.f32 %v4043, %v4210
      %4212 = vmatmul.bf16.gmra.mxu0 %v3409
      %v4213 = vpop.f32.mrf.mxu0
      %v4214 = vadd.f32 %v4046, %v4213
      %v4215 = vpop.f32.mrf.mxu0
      %v4216 = vadd.f32 %v4048, %v4215
      %4217 = vmatmul.bf16.gmra.mxu0 %v3411
      %v4218 = vpop.f32.mrf.mxu0
      %v4219 = vadd.f32 %v4051, %v4218
      %v4220 = vpop.f32.mrf.mxu0
      %v4221 = vadd.f32 %v4053, %v4220
      %4222 = vmatmul.bf16.gmra.mxu0 %v3413
      %v4223 = vpop.f32.mrf.mxu0
      %v4224 = vadd.f32 %v4056, %v4223
      %v4225 = vpop.f32.mrf.mxu0
      %v4226 = vadd.f32 %v4058, %v4225
      %4227 = vmatmul.bf16.gmra.mxu0 %v3415
      %v4228 = vpop.f32.mrf.mxu0
      %v4229 = vadd.f32 %v4061, %v4228
      %v4230 = vpop.f32.mrf.mxu0
      %v4231 = vadd.f32 %v4063, %v4230
      %4232 = vmatmul.bf16.gmra.mxu0 %v3417
      %v4233 = vpop.f32.mrf.mxu0
      %v4234 = vadd.f32 %v4066, %v4233
      %v4235 = vpop.f32.mrf.mxu0
      %v4236 = vadd.f32 %v4068, %v4235
      %4237 = vmatmul.bf16.gmra.mxu0 %v3419
      %v4238 = vpop.f32.mrf.mxu0
      %v4239 = vadd.f32 %v4071, %v4238
      %v4240 = vpop.f32.mrf.mxu0
      %v4241 = vadd.f32 %v4073, %v4240
      %4242 = vmatmul.bf16.gmra.mxu0 %v3421
      %v4243 = vpop.f32.mrf.mxu0
      %v4244 = vadd.f32 %v4076, %v4243
      %v4245 = vpop.f32.mrf.mxu0
      %v4246 = vadd.f32 %v4078, %v4245
      %4247 = vmatmul.bf16.gmra.mxu0 %v3423
      %v4248 = vpop.f32.mrf.mxu0
      %v4249 = vadd.f32 %v4081, %v4248
      %v4250 = vpop.f32.mrf.mxu0
      %v4251 = vadd.f32 %v4083, %v4250
      %4252 = vmatmul.bf16.gmra.mxu0 %v3425
      %v4253 = vpop.f32.mrf.mxu0
      %v4254 = vadd.f32 %v4086, %v4253
      %v4255 = vpop.f32.mrf.mxu0
      %v4256 = vadd.f32 %v4088, %v4255
      %4257 = vmatmul.bf16.gmra.mxu0 %v3427
      %v4258 = vpop.f32.mrf.mxu0
      %v4259 = vadd.f32 %v4091, %v4258
      %v4260 = vpop.f32.mrf.mxu0
      %v4261 = vadd.f32 %v4093, %v4260
      %4262 = vmatmul.bf16.gmra.mxu0 %v3429
      %v4263 = vpop.f32.mrf.mxu0
      %v4264 = vadd.f32 %v4096, %v4263
      %v4265 = vpop.f32.mrf.mxu0
      %v4266 = vadd.f32 %v4098, %v4265
      %4267 = vmatmul.bf16.gmra.mxu0 %v3431
      %v4268 = vpop.f32.mrf.mxu0
      %v4269 = vadd.f32 %v4101, %v4268
      %v4270 = vpop.f32.mrf.mxu0
      %v4271 = vadd.f32 %v4103, %v4270
      %4272 = vmatmul.bf16.gmra.mxu0 %v3433
      %v4273 = vpop.f32.mrf.mxu0
      %v4274 = vadd.f32 %v4106, %v4273
      %v4275 = vpop.f32.mrf.mxu0
      %v4276 = vadd.f32 %v4108, %v4275
      %4277 = vmatmul.bf16.gmra.mxu0 %v3435
      %v4278 = vpop.f32.mrf.mxu0
      %v4279 = vadd.f32 %v4111, %v4278
      %v4280 = vpop.f32.mrf.mxu0
      %v4281 = vadd.f32 %v4113, %v4280
      %4282 = vmatmul.bf16.gmra.mxu0 %v3437
      %v4283 = vpop.f32.mrf.mxu0
      %v4284 = vadd.f32 %v4116, %v4283
      %v4285 = vpop.f32.mrf.mxu0
      %v4286 = vadd.f32 %v4118, %v4285
      %4287 = vmatmul.bf16.gmra.mxu0 %v3439
      %v4288 = vpop.f32.mrf.mxu0
      %v4289 = vadd.f32 %v4121, %v4288
      %v4290 = vpop.f32.mrf.mxu0
      %v4291 = vadd.f32 %v4123, %v4290
      %4292 = vmatmul.bf16.gmra.mxu0 %v3441
      %v4293 = vpop.f32.mrf.mxu0
      %v4294 = vadd.f32 %v4126, %v4293
      %v4295 = vpop.f32.mrf.mxu0
      %v4296 = vadd.f32 %v4128, %v4295
      %4297 = vmatmul.bf16.gmra.mxu0 %v3443
      %v4298 = vpop.f32.mrf.mxu0
      %v4299 = vadd.f32 %v4131, %v4298
      %v4300 = vpop.f32.mrf.mxu0
      %v4301 = vadd.f32 %v4133, %v4300
      %4302 = vmatmul.bf16.gmra.mxu0 %v3445
      %v4303 = vpop.f32.mrf.mxu0
      %v4304 = vadd.f32 %v4136, %v4303
      %v4305 = vpop.f32.mrf.mxu0
      %v4306 = vadd.f32 %v4138, %v4305
      %4307 = vmatmul.bf16.gmra.mxu0 %v3447
      %v4308 = vpop.f32.mrf.mxu0
      %v4309 = vadd.f32 %v4141, %v4308
      %v4310 = vpop.f32.mrf.mxu0
      %4311 = vdwg.mxu0
      %v4312 = vld [vmem:[%s7] sm:$0xf]
      %v4313 = vld [vmem:[%s7 + $0x4] sm:$0xf]
      %v4314 = vld [vmem:[%s7 + $0x8] sm:$0xf]
      %v4315 = vld [vmem:[%s7 + $0xc] sm:$0xf]
      %v4316 = vld [vmem:[%s7 + $0x10] sm:$0xf]
      %v4380 = vunpack.c.l.b16 %v476
      %v4381 = vunpack.c.l.b16 %v477
      %v4382 = vunpack.c.l.b16 %v478
      %v4383 = vunpack.c.l.b16 %v479
      %v4384 = vunpack.c.l.b16 %v480
      %v4385 = vunpack.c.l.b16 %v481
      %v4386 = vunpack.c.l.b16 %v482
      %v4387 = vunpack.c.l.b16 %v483
      %v4388 = vunpack.c.l.b16 %v484
      %v4389 = vunpack.c.l.b16 %v485
      %v4390 = vunpack.c.l.b16 %v486
      %v4391 = vunpack.c.l.b16 %v487
      %v4392 = vunpack.c.l.b16 %v488
      %v4393 = vunpack.c.l.b16 %v489
      %v4394 = vunpack.c.l.b16 %v490
      %v4395 = vunpack.c.l.b16 %v491
      %v4396 = vunpack.c.l.b16 %v492
      %v4397 = vunpack.c.l.b16 %v493
      %v4398 = vunpack.c.l.b16 %v494
      %v4399 = vunpack.c.l.b16 %v495
      %v4400 = vunpack.c.l.b16 %v496
      %v4401 = vunpack.c.l.b16 %v497
      %v4402 = vunpack.c.l.b16 %v498
      %v4403 = vunpack.c.l.b16 %v499
      %v4404 = vunpack.c.l.b16 %v500
      %v4405 = vunpack.c.l.b16 %v501
      %v4406 = vunpack.c.l.b16 %v502
      %v4407 = vunpack.c.l.b16 %v503
      %v4408 = vunpack.c.l.b16 %v504
      %v4409 = vunpack.c.l.b16 %v505
      %v4410 = vunpack.c.l.b16 %v506
      %v4411 = vunpack.c.l.b16 %v507
      %v4412 = vunpack.c.l.b16 %v508
      %v4413 = vunpack.c.l.b16 %v509
      %v4414 = vunpack.c.l.b16 %v510
      %v4415 = vunpack.c.l.b16 %v511
      %v4416 = vunpack.c.l.b16 %v512
      %v4417 = vunpack.c.l.b16 %v513
      %v4418 = vunpack.c.l.b16 %v514
      %v4419 = vunpack.c.l.b16 %v515
      %v4420 = vunpack.c.l.b16 %v516
      %v4421 = vunpack.c.l.b16 %v517
      %v4422 = vunpack.c.l.b16 %v518
      %v4423 = vunpack.c.l.b16 %v519
      %v4424 = vunpack.c.l.b16 %v520
      %v4425 = vunpack.c.l.b16 %v521
      %v4426 = vunpack.c.l.b16 %v522
      %v4427 = vunpack.c.l.b16 %v523
      %v4428 = vunpack.c.l.b16 %v524
      %v4429 = vunpack.c.l.b16 %v525
      %v4430 = vunpack.c.l.b16 %v526
      %v4431 = vunpack.c.l.b16 %v527
      %v4432 = vunpack.c.l.b16 %v528
      %v4433 = vunpack.c.l.b16 %v529
      %v4434 = vunpack.c.l.b16 %v530
      %v4435 = vunpack.c.l.b16 %v531
      %v4436 = vunpack.c.l.b16 %v532
      %v4437 = vunpack.c.l.b16 %v533
      %v4438 = vunpack.c.l.b16 %v534
      %v4439 = vunpack.c.l.b16 %v535
      %v4440 = vunpack.c.l.b16 %v536
      %v4441 = vunpack.c.l.b16 %v537
      %v4442 = vunpack.c.l.b16 %v538
      %v4443 = vpack.c.b16 %v4381, %v4380
      %v4444 = vpack.c.b16 %v4383, %v4382
      %v4445 = vpack.c.b16 %v4385, %v4384
      %v4446 = vpack.c.b16 %v4387, %v4386
      %v4447 = vpack.c.b16 %v4389, %v4388
      %v4448 = vpack.c.b16 %v4391, %v4390
      %v4449 = vpack.c.b16 %v4393, %v4392
      %v4450 = vpack.c.b16 %v4395, %v4394
      %v4451 = vpack.c.b16 %v4397, %v4396
      %v4452 = vpack.c.b16 %v4399, %v4398
      %v4453 = vpack.c.b16 %v4401, %v4400
      %v4454 = vpack.c.b16 %v4403, %v4402
      %v4455 = vpack.c.b16 %v4405, %v4404
      %v4456 = vpack.c.b16 %v4407, %v4406
      %v4457 = vpack.c.b16 %v4409, %v4408
      %v4458 = vpack.c.b16 %v4411, %v4410
      %v4459 = vpack.c.b16 %v4413, %v4412
      %v4460 = vpack.c.b16 %v4415, %v4414
      %v4461 = vpack.c.b16 %v4417, %v4416
      %v4462 = vpack.c.b16 %v4419, %v4418
      %v4463 = vpack.c.b16 %v4421, %v4420
      %v4464 = vpack.c.b16 %v4423, %v4422
      %v4465 = vpack.c.b16 %v4425, %v4424
      %v4466 = vpack.c.b16 %v4427, %v4426
      %v4467 = vpack.c.b16 %v4429, %v4428
      %v4468 = vpack.c.b16 %v4431, %v4430
      %v4469 = vpack.c.b16 %v4433, %v4432
      %v4470 = vpack.c.b16 %v4435, %v4434
      %v4471 = vpack.c.b16 %v4437, %v4436
      %v4472 = vpack.c.b16 %v4439, %v4438
      %v4473 = vpack.c.b16 %v4441, %v4440
      %v4474 = vpack.c.b16 %v4442, %v4442
      %v4480 = vunpack.c.l.b16 %v4312
      %v4481 = vunpack.c.l.b16 %v4313
      %v4482 = vunpack.c.l.b16 %v4314
      %v4483 = vunpack.c.l.b16 %v4315
      %v4484 = vunpack.c.l.b16 %v4316
      %v4485 = vpack.c.b16 %v4481, %v4480
      %v4486 = vpack.c.b16 %v4483, %v4482
      %v4487 = vpack.c.b16 %v4484, %v4484
      %v4491 = vsel %vm727, %v4443, 0
      %v4494 = vsel %vm727, %v4444, 0
      %v4497 = vsel %vm727, %v4445, 0
      %v4500 = vsel %vm727, %v4446, 0
      %v4503 = vsel %vm727, %v4447, 0
      %v4506 = vsel %vm727, %v4448, 0
      %v4509 = vsel %vm727, %v4449, 0
      %v4512 = vsel %vm727, %v4450, 0
      %v4515 = vsel %vm727, %v4451, 0
      %v4518 = vsel %vm727, %v4452, 0
      %v4521 = vsel %vm727, %v4453, 0
      %v4524 = vsel %vm727, %v4454, 0
      %v4527 = vsel %vm727, %v4455, 0
      %v4530 = vsel %vm727, %v4456, 0
      %v4533 = vsel %vm727, %v4457, 0
      %v4536 = vsel %vm727, %v4458, 0
      %v4539 = vsel %vm727, %v4459, 0
      %v4542 = vsel %vm727, %v4460, 0
      %v4545 = vsel %vm727, %v4461, 0
      %v4548 = vsel %vm727, %v4462, 0
      %v4551 = vsel %vm727, %v4463, 0
      %v4554 = vsel %vm727, %v4464, 0
      %v4557 = vsel %vm727, %v4465, 0
      %v4560 = vsel %vm727, %v4466, 0
      %v4563 = vsel %vm727, %v4467, 0
      %v4566 = vsel %vm727, %v4468, 0
      %v4569 = vsel %vm727, %v4469, 0
      %v4572 = vsel %vm727, %v4470, 0
      %v4575 = vsel %vm727, %v4471, 0
      %v4578 = vsel %vm727, %v4472, 0
      %v4581 = vsel %vm727, %v4473, 0
      %v4584 = vsel %vm727, %v4474, 0
      %v4587 = vand.u32 %v4487, %v827
      %4589 = vmatpush.bf16.msra.mxu0 0
      %4590 = vmatpush.bf16.msra.mxu0 0
      %4591 = vmatpush.bf16.msra.mxu0 0
      %4592 = vmatpush.bf16.msra.mxu0 0
      %4593 = vmatpush.bf16.msra.mxu0 0
      %4594 = vmatpush.bf16.msra.mxu0 %v4587
      %4595 = vmatpush.bf16.msra.mxu0 %v4486
      %4596 = vmatpush.bf16.msra.mxu0 %v4485
      %4597 = vmatmul.bf16.gmra.mxu0 %v4491
      %v4598 = vpop.f32.mrf.mxu0
      %v4599 = vadd.f32 0.0, %v4598
      %v4600 = vpop.f32.mrf.mxu0
      %v4601 = vadd.f32 0.0, %v4600
      %4602 = vmatmul.bf16.gmra.mxu0 %v4494
      %v4603 = vpop.f32.mrf.mxu0
      %v4604 = vadd.f32 0.0, %v4603
      %v4605 = vpop.f32.mrf.mxu0
      %v4606 = vadd.f32 0.0, %v4605
      %4607 = vmatmul.bf16.gmra.mxu0 %v4497
      %v4608 = vpop.f32.mrf.mxu0
      %v4609 = vadd.f32 0.0, %v4608
      %v4610 = vpop.f32.mrf.mxu0
      %v4611 = vadd.f32 0.0, %v4610
      %4612 = vmatmul.bf16.gmra.mxu0 %v4500
      %v4613 = vpop.f32.mrf.mxu0
      %v4614 = vadd.f32 0.0, %v4613
      %v4615 = vpop.f32.mrf.mxu0
      %v4616 = vadd.f32 0.0, %v4615
      %4617 = vmatmul.bf16.gmra.mxu0 %v4503
      %v4618 = vpop.f32.mrf.mxu0
      %v4619 = vadd.f32 0.0, %v4618
      %v4620 = vpop.f32.mrf.mxu0
      %v4621 = vadd.f32 0.0, %v4620
      %4622 = vmatmul.bf16.gmra.mxu0 %v4506
      %v4623 = vpop.f32.mrf.mxu0
      %v4624 = vadd.f32 0.0, %v4623
      %v4625 = vpop.f32.mrf.mxu0
      %v4626 = vadd.f32 0.0, %v4625
      %4627 = vmatmul.bf16.gmra.mxu0 %v4509
      %v4628 = vpop.f32.mrf.mxu0
      %v4629 = vadd.f32 0.0, %v4628
      %v4630 = vpop.f32.mrf.mxu0
      %v4631 = vadd.f32 0.0, %v4630
      %4632 = vmatmul.bf16.gmra.mxu0 %v4512
      %v4633 = vpop.f32.mrf.mxu0
      %v4634 = vadd.f32 0.0, %v4633
      %v4635 = vpop.f32.mrf.mxu0
      %v4636 = vadd.f32 0.0, %v4635
      %4637 = vmatmul.bf16.gmra.mxu0 %v4515
      %v4638 = vpop.f32.mrf.mxu0
      %v4639 = vadd.f32 0.0, %v4638
      %v4640 = vpop.f32.mrf.mxu0
      %v4641 = vadd.f32 0.0, %v4640
      %4642 = vmatmul.bf16.gmra.mxu0 %v4518
      %v4643 = vpop.f32.mrf.mxu0
      %v4644 = vadd.f32 0.0, %v4643
      %v4645 = vpop.f32.mrf.mxu0
      %v4646 = vadd.f32 0.0, %v4645
      %4647 = vmatmul.bf16.gmra.mxu0 %v4521
      %v4648 = vpop.f32.mrf.mxu0
      %v4649 = vadd.f32 0.0, %v4648
      %v4650 = vpop.f32.mrf.mxu0
      %v4651 = vadd.f32 0.0, %v4650
      %4652 = vmatmul.bf16.gmra.mxu0 %v4524
      %v4653 = vpop.f32.mrf.mxu0
      %v4654 = vadd.f32 0.0, %v4653
      %v4655 = vpop.f32.mrf.mxu0
      %v4656 = vadd.f32 0.0, %v4655
      %4657 = vmatmul.bf16.gmra.mxu0 %v4527
      %v4658 = vpop.f32.mrf.mxu0
      %v4659 = vadd.f32 0.0, %v4658
      %v4660 = vpop.f32.mrf.mxu0
      %v4661 = vadd.f32 0.0, %v4660
      %4662 = vmatmul.bf16.gmra.mxu0 %v4530
      %v4663 = vpop.f32.mrf.mxu0
      %v4664 = vadd.f32 0.0, %v4663
      %v4665 = vpop.f32.mrf.mxu0
      %v4666 = vadd.f32 0.0, %v4665
      %4667 = vmatmul.bf16.gmra.mxu0 %v4533
      %v4668 = vpop.f32.mrf.mxu0
      %v4669 = vadd.f32 0.0, %v4668
      %v4670 = vpop.f32.mrf.mxu0
      %v4671 = vadd.f32 0.0, %v4670
      %4672 = vmatmul.bf16.gmra.mxu0 %v4536
      %v4673 = vpop.f32.mrf.mxu0
      %v4674 = vadd.f32 0.0, %v4673
      %v4675 = vpop.f32.mrf.mxu0
      %v4676 = vadd.f32 0.0, %v4675
      %4677 = vmatmul.bf16.gmra.mxu0 %v4539
      %v4678 = vpop.f32.mrf.mxu0
      %v4679 = vadd.f32 0.0, %v4678
      %v4680 = vpop.f32.mrf.mxu0
      %v4681 = vadd.f32 0.0, %v4680
      %4682 = vmatmul.bf16.gmra.mxu0 %v4542
      %v4683 = vpop.f32.mrf.mxu0
      %v4684 = vadd.f32 0.0, %v4683
      %v4685 = vpop.f32.mrf.mxu0
      %v4686 = vadd.f32 0.0, %v4685
      %4687 = vmatmul.bf16.gmra.mxu0 %v4545
      %v4688 = vpop.f32.mrf.mxu0
      %v4689 = vadd.f32 0.0, %v4688
      %v4690 = vpop.f32.mrf.mxu0
      %v4691 = vadd.f32 0.0, %v4690
      %4692 = vmatmul.bf16.gmra.mxu0 %v4548
      %v4693 = vpop.f32.mrf.mxu0
      %v4694 = vadd.f32 0.0, %v4693
      %v4695 = vpop.f32.mrf.mxu0
      %v4696 = vadd.f32 0.0, %v4695
      %4697 = vmatmul.bf16.gmra.mxu0 %v4551
      %v4698 = vpop.f32.mrf.mxu0
      %v4699 = vadd.f32 0.0, %v4698
      %v4700 = vpop.f32.mrf.mxu0
      %v4701 = vadd.f32 0.0, %v4700
      %4702 = vmatmul.bf16.gmra.mxu0 %v4554
      %v4703 = vpop.f32.mrf.mxu0
      %v4704 = vadd.f32 0.0, %v4703
      %v4705 = vpop.f32.mrf.mxu0
      %v4706 = vadd.f32 0.0, %v4705
      %4707 = vmatmul.bf16.gmra.mxu0 %v4557
      %v4708 = vpop.f32.mrf.mxu0
      %v4709 = vadd.f32 0.0, %v4708
      %v4710 = vpop.f32.mrf.mxu0
      %v4711 = vadd.f32 0.0, %v4710
      %4712 = vmatmul.bf16.gmra.mxu0 %v4560
      %v4713 = vpop.f32.mrf.mxu0
      %v4714 = vadd.f32 0.0, %v4713
      %v4715 = vpop.f32.mrf.mxu0
      %v4716 = vadd.f32 0.0, %v4715
      %4717 = vmatmul.bf16.gmra.mxu0 %v4563
      %v4718 = vpop.f32.mrf.mxu0
      %v4719 = vadd.f32 0.0, %v4718
      %v4720 = vpop.f32.mrf.mxu0
      %v4721 = vadd.f32 0.0, %v4720
      %4722 = vmatmul.bf16.gmra.mxu0 %v4566
      %v4723 = vpop.f32.mrf.mxu0
      %v4724 = vadd.f32 0.0, %v4723
      %v4725 = vpop.f32.mrf.mxu0
      %v4726 = vadd.f32 0.0, %v4725
      %4727 = vmatmul.bf16.gmra.mxu0 %v4569
      %v4728 = vpop.f32.mrf.mxu0
      %v4729 = vadd.f32 0.0, %v4728
      %v4730 = vpop.f32.mrf.mxu0
      %v4731 = vadd.f32 0.0, %v4730
      %4732 = vmatmul.bf16.gmra.mxu0 %v4572
      %v4733 = vpop.f32.mrf.mxu0
      %v4734 = vadd.f32 0.0, %v4733
      %v4735 = vpop.f32.mrf.mxu0
      %v4736 = vadd.f32 0.0, %v4735
      %4737 = vmatmul.bf16.gmra.mxu0 %v4575
      %v4738 = vpop.f32.mrf.mxu0
      %v4739 = vadd.f32 0.0, %v4738
      %v4740 = vpop.f32.mrf.mxu0
      %v4741 = vadd.f32 0.0, %v4740
      %4742 = vmatmul.bf16.gmra.mxu0 %v4578
      %v4743 = vpop.f32.mrf.mxu0
      %v4744 = vadd.f32 0.0, %v4743
      %v4745 = vpop.f32.mrf.mxu0
      %v4746 = vadd.f32 0.0, %v4745
      %4747 = vmatmul.bf16.gmra.mxu0 %v4581
      %v4748 = vpop.f32.mrf.mxu0
      %v4749 = vadd.f32 0.0, %v4748
      %v4750 = vpop.f32.mrf.mxu0
      %v4751 = vadd.f32 0.0, %v4750
      %4752 = vmatmul.bf16.gmra.mxu0 %v4584
      %v4753 = vpop.f32.mrf.mxu0
      %v4754 = vadd.f32 0.0, %v4753
      %v4755 = vpop.f32.mrf.mxu0
      %4756 = vdwg.mxu0
      %v4757 = vadd.f32 %v3818, %v4599
      %v4758 = vadd.f32 %v3820, %v4601
      %v4759 = vadd.f32 %v3823, %v4604
      %v4760 = vadd.f32 %v3825, %v4606
      %v4761 = vadd.f32 %v3828, %v4609
      %v4762 = vadd.f32 %v3830, %v4611
      %v4763 = vadd.f32 %v3833, %v4614
      %v4764 = vadd.f32 %v3835, %v4616
      %v4765 = vadd.f32 %v3838, %v4619
      %v4766 = vadd.f32 %v3840, %v4621
      %v4767 = vadd.f32 %v3843, %v4624
      %v4768 = vadd.f32 %v3845, %v4626
      %v4769 = vadd.f32 %v3848, %v4629
      %v4770 = vadd.f32 %v3850, %v4631
      %v4771 = vadd.f32 %v3853, %v4634
      %v4772 = vadd.f32 %v3855, %v4636
      %v4773 = vadd.f32 %v3858, %v4639
      %v4774 = vadd.f32 %v3860, %v4641
      %v4775 = vadd.f32 %v3863, %v4644
      %v4776 = vadd.f32 %v3865, %v4646
      %v4777 = vadd.f32 %v3868, %v4649
      %v4778 = vadd.f32 %v3870, %v4651
      %v4779 = vadd.f32 %v3873, %v4654
      %v4780 = vadd.f32 %v3875, %v4656
      %v4781 = vadd.f32 %v3878, %v4659
      %v4782 = vadd.f32 %v3880, %v4661
      %v4783 = vadd.f32 %v3883, %v4664
      %v4784 = vadd.f32 %v3885, %v4666
      %v4785 = vadd.f32 %v3888, %v4669
      %v4786 = vadd.f32 %v3890, %v4671
      %v4787 = vadd.f32 %v3893, %v4674
      %v4788 = vadd.f32 %v3895, %v4676
      %v4789 = vadd.f32 %v3898, %v4679
      %v4790 = vadd.f32 %v3900, %v4681
      %v4791 = vadd.f32 %v3903, %v4684
      %v4792 = vadd.f32 %v3905, %v4686
      %v4793 = vadd.f32 %v3908, %v4689
      %v4794 = vadd.f32 %v3910, %v4691
      %v4795 = vadd.f32 %v3913, %v4694
      %v4796 = vadd.f32 %v3915, %v4696
      %v4797 = vadd.f32 %v3918, %v4699
      %v4798 = vadd.f32 %v3920, %v4701
      %v4799 = vadd.f32 %v3923, %v4704
      %v4800 = vadd.f32 %v3925, %v4706
      %v4801 = vadd.f32 %v3928, %v4709
      %v4802 = vadd.f32 %v3930, %v4711
      %v4803 = vadd.f32 %v3933, %v4714
      %v4804 = vadd.f32 %v3935, %v4716
      %v4805 = vadd.f32 %v3938, %v4719
      %v4806 = vadd.f32 %v3940, %v4721
      %v4807 = vadd.f32 %v3943, %v4724
      %v4808 = vadd.f32 %v3945, %v4726
      %v4809 = vadd.f32 %v3948, %v4729
      %v4810 = vadd.f32 %v3950, %v4731
      %v4811 = vadd.f32 %v3953, %v4734
      %v4812 = vadd.f32 %v3955, %v4736
      %v4813 = vadd.f32 %v3958, %v4739
      %v4814 = vadd.f32 %v3960, %v4741
      %v4815 = vadd.f32 %v3963, %v4744
      %v4816 = vadd.f32 %v3965, %v4746
      %v4817 = vadd.f32 %v3968, %v4749
      %v4818 = vadd.f32 %v3970, %v4751
      %v4819 = vadd.f32 %v3973, %v4754
      %v4820 = vpack.c.bf16 %v4757, %v4757
      %v4821 = vpack.c.bf16 %v4758, %v4758
      %v4822 = vpack.c.bf16 %v4759, %v4759
      %v4823 = vpack.c.bf16 %v4760, %v4760
      %v4824 = vpack.c.bf16 %v4761, %v4761
      %v4825 = vpack.c.bf16 %v4762, %v4762
      %v4826 = vpack.c.bf16 %v4763, %v4763
      %v4827 = vpack.c.bf16 %v4764, %v4764
      %v4828 = vpack.c.bf16 %v4765, %v4765
      %v4829 = vpack.c.bf16 %v4766, %v4766
      %v4830 = vpack.c.bf16 %v4767, %v4767
      %v4831 = vpack.c.bf16 %v4768, %v4768
      %v4832 = vpack.c.bf16 %v4769, %v4769
      %v4833 = vpack.c.bf16 %v4770, %v4770
      %v4834 = vpack.c.bf16 %v4771, %v4771
      %v4835 = vpack.c.bf16 %v4772, %v4772
      %v4836 = vpack.c.bf16 %v4773, %v4773
      %v4837 = vpack.c.bf16 %v4774, %v4774
      %v4838 = vpack.c.bf16 %v4775, %v4775
      %v4839 = vpack.c.bf16 %v4776, %v4776
      %v4840 = vpack.c.bf16 %v4777, %v4777
      %v4841 = vpack.c.bf16 %v4778, %v4778
      %v4842 = vpack.c.bf16 %v4779, %v4779
      %v4843 = vpack.c.bf16 %v4780, %v4780
      %v4844 = vpack.c.bf16 %v4781, %v4781
      %v4845 = vpack.c.bf16 %v4782, %v4782
      %v4846 = vpack.c.bf16 %v4783, %v4783
      %v4847 = vpack.c.bf16 %v4784, %v4784
      %v4848 = vpack.c.bf16 %v4785, %v4785
      %v4849 = vpack.c.bf16 %v4786, %v4786
      %v4850 = vpack.c.bf16 %v4787, %v4787
      %v4851 = vpack.c.bf16 %v4788, %v4788
      %v4852 = vpack.c.bf16 %v4789, %v4789
      %v4853 = vpack.c.bf16 %v4790, %v4790
      %v4854 = vpack.c.bf16 %v4791, %v4791
      %v4855 = vpack.c.bf16 %v4792, %v4792
      %v4856 = vpack.c.bf16 %v4793, %v4793
      %v4857 = vpack.c.bf16 %v4794, %v4794
      %v4858 = vpack.c.bf16 %v4795, %v4795
      %v4859 = vpack.c.bf16 %v4796, %v4796
      %v4860 = vpack.c.bf16 %v4797, %v4797
      %v4861 = vpack.c.bf16 %v4798, %v4798
      %v4862 = vpack.c.bf16 %v4799, %v4799
      %v4863 = vpack.c.bf16 %v4800, %v4800
      %v4864 = vpack.c.bf16 %v4801, %v4801
      %v4865 = vpack.c.bf16 %v4802, %v4802
      %v4866 = vpack.c.bf16 %v4803, %v4803
      %v4867 = vpack.c.bf16 %v4804, %v4804
      %v4868 = vpack.c.bf16 %v4805, %v4805
      %v4869 = vpack.c.bf16 %v4806, %v4806
      %v4870 = vpack.c.bf16 %v4807, %v4807
      %v4871 = vpack.c.bf16 %v4808, %v4808
      %v4872 = vpack.c.bf16 %v4809, %v4809
      %v4873 = vpack.c.bf16 %v4810, %v4810
      %v4874 = vpack.c.bf16 %v4811, %v4811
      %v4875 = vpack.c.bf16 %v4812, %v4812
      %v4876 = vpack.c.bf16 %v4813, %v4813
      %v4877 = vpack.c.bf16 %v4814, %v4814
      %v4878 = vpack.c.bf16 %v4815, %v4815
      %v4879 = vpack.c.bf16 %v4816, %v4816
      %v4880 = vpack.c.bf16 %v4817, %v4817
      %v4881 = vpack.c.bf16 %v4818, %v4818
      %v4882 = vpack.c.bf16 %v4819, %v4819
      %v4883 = vld [vmem:[%s8] sm:$0x1]
      %v4885 = vpack.i.b16 %v4883, %v4883
      %v4887 = vperm.slane %v4885, 0
      %v4888 = vunpack.c.l.bf16 %v4820
      %v4889 = vunpack.c.l.bf16 %v4821
      %v4890 = vunpack.c.l.bf16 %v4822
      %v4891 = vunpack.c.l.bf16 %v4823
      %v4892 = vunpack.c.l.bf16 %v4824
      %v4893 = vunpack.c.l.bf16 %v4825
      %v4894 = vunpack.c.l.bf16 %v4826
      %v4895 = vunpack.c.l.bf16 %v4827
      %v4896 = vunpack.c.l.bf16 %v4828
      %v4897 = vunpack.c.l.bf16 %v4829
      %v4898 = vunpack.c.l.bf16 %v4830
      %v4899 = vunpack.c.l.bf16 %v4831
      %v4900 = vunpack.c.l.bf16 %v4832
      %v4901 = vunpack.c.l.bf16 %v4833
      %v4902 = vunpack.c.l.bf16 %v4834
      %v4903 = vunpack.c.l.bf16 %v4835
      %v4904 = vunpack.c.l.bf16 %v4836
      %v4905 = vunpack.c.l.bf16 %v4837
      %v4906 = vunpack.c.l.bf16 %v4838
      %v4907 = vunpack.c.l.bf16 %v4839
      %v4908 = vunpack.c.l.bf16 %v4840
      %v4909 = vunpack.c.l.bf16 %v4841
      %v4910 = vunpack.c.l.bf16 %v4842
      %v4911 = vunpack.c.l.bf16 %v4843
      %v4912 = vunpack.c.l.bf16 %v4844
      %v4913 = vunpack.c.l.bf16 %v4845
      %v4914 = vunpack.c.l.bf16 %v4846
      %v4915 = vunpack.c.l.bf16 %v4847
      %v4916 = vunpack.c.l.bf16 %v4848
      %v4917 = vunpack.c.l.bf16 %v4849
      %v4918 = vunpack.c.l.bf16 %v4850
      %v4919 = vunpack.c.l.bf16 %v4851
      %v4920 = vunpack.c.l.bf16 %v4852
      %v4921 = vunpack.c.l.bf16 %v4853
      %v4922 = vunpack.c.l.bf16 %v4854
      %v4923 = vunpack.c.l.bf16 %v4855
      %v4924 = vunpack.c.l.bf16 %v4856
      %v4925 = vunpack.c.l.bf16 %v4857
      %v4926 = vunpack.c.l.bf16 %v4858
      %v4927 = vunpack.c.l.bf16 %v4859
      %v4928 = vunpack.c.l.bf16 %v4860
      %v4929 = vunpack.c.l.bf16 %v4861
      %v4930 = vunpack.c.l.bf16 %v4862
      %v4931 = vunpack.c.l.bf16 %v4863
      %v4932 = vunpack.c.l.bf16 %v4864
      %v4933 = vunpack.c.l.bf16 %v4865
      %v4934 = vunpack.c.l.bf16 %v4866
      %v4935 = vunpack.c.l.bf16 %v4867
      %v4936 = vunpack.c.l.bf16 %v4868
      %v4937 = vunpack.c.l.bf16 %v4869
      %v4938 = vunpack.c.l.bf16 %v4870
      %v4939 = vunpack.c.l.bf16 %v4871
      %v4940 = vunpack.c.l.bf16 %v4872
      %v4941 = vunpack.c.l.bf16 %v4873
      %v4942 = vunpack.c.l.bf16 %v4874
      %v4943 = vunpack.c.l.bf16 %v4875
      %v4944 = vunpack.c.l.bf16 %v4876
      %v4945 = vunpack.c.l.bf16 %v4877
      %v4946 = vunpack.c.l.bf16 %v4878
      %v4947 = vunpack.c.l.bf16 %v4879
      %v4948 = vunpack.c.l.bf16 %v4880
      %v4949 = vunpack.c.l.bf16 %v4881
      %v4950 = vunpack.c.l.bf16 %v4882
      %v4951 = vunpack.c.l.bf16 %v4887
      %v4952 = vadd.f32 %v4888, %v4951
      %v4953 = vadd.f32 %v4889, %v4951
      %v4954 = vadd.f32 %v4890, %v4951
      %v4955 = vadd.f32 %v4891, %v4951
      %v4956 = vadd.f32 %v4892, %v4951
      %v4957 = vadd.f32 %v4893, %v4951
      %v4958 = vadd.f32 %v4894, %v4951
      %v4959 = vadd.f32 %v4895, %v4951
      %v4960 = vadd.f32 %v4896, %v4951
      %v4961 = vadd.f32 %v4897, %v4951
      %v4962 = vadd.f32 %v4898, %v4951
      %v4963 = vadd.f32 %v4899, %v4951
      %v4964 = vadd.f32 %v4900, %v4951
      %v4965 = vadd.f32 %v4901, %v4951
      %v4966 = vadd.f32 %v4902, %v4951
      %v4967 = vadd.f32 %v4903, %v4951
      %v4968 = vadd.f32 %v4904, %v4951
      %v4969 = vadd.f32 %v4905, %v4951
      %v4970 = vadd.f32 %v4906, %v4951
      %v4971 = vadd.f32 %v4907, %v4951
      %v4972 = vadd.f32 %v4908, %v4951
      %v4973 = vadd.f32 %v4909, %v4951
      %v4974 = vadd.f32 %v4910, %v4951
      %v4975 = vadd.f32 %v4911, %v4951
      %v4976 = vadd.f32 %v4912, %v4951
      %v4977 = vadd.f32 %v4913, %v4951
      %v4978 = vadd.f32 %v4914, %v4951
      %v4979 = vadd.f32 %v4915, %v4951
      %v4980 = vadd.f32 %v4916, %v4951
      %v4981 = vadd.f32 %v4917, %v4951
      %v4982 = vadd.f32 %v4918, %v4951
      %v4983 = vadd.f32 %v4919, %v4951
      %v4984 = vadd.f32 %v4920, %v4951
      %v4985 = vadd.f32 %v4921, %v4951
      %v4986 = vadd.f32 %v4922, %v4951
      %v4987 = vadd.f32 %v4923, %v4951
      %v4988 = vadd.f32 %v4924, %v4951
      %v4989 = vadd.f32 %v4925, %v4951
      %v4990 = vadd.f32 %v4926, %v4951
      %v4991 = vadd.f32 %v4927, %v4951
      %v4992 = vadd.f32 %v4928, %v4951
      %v4993 = vadd.f32 %v4929, %v4951
      %v4994 = vadd.f32 %v4930, %v4951
      %v4995 = vadd.f32 %v4931, %v4951
      %v4996 = vadd.f32 %v4932, %v4951
      %v4997 = vadd.f32 %v4933, %v4951
      %v4998 = vadd.f32 %v4934, %v4951
      %v4999 = vadd.f32 %v4935, %v4951
      %v5000 = vadd.f32 %v4936, %v4951
      %v5001 = vadd.f32 %v4937, %v4951
      %v5002 = vadd.f32 %v4938, %v4951
      %v5003 = vadd.f32 %v4939, %v4951
      %v5004 = vadd.f32 %v4940, %v4951
      %v5005 = vadd.f32 %v4941, %v4951
      %v5006 = vadd.f32 %v4942, %v4951
      %v5007 = vadd.f32 %v4943, %v4951
      %v5008 = vadd.f32 %v4944, %v4951
      %v5009 = vadd.f32 %v4945, %v4951
      %v5010 = vadd.f32 %v4946, %v4951
      %v5011 = vadd.f32 %v4947, %v4951
      %v5012 = vadd.f32 %v4948, %v4951
      %v5013 = vadd.f32 %v4949, %v4951
      %v5014 = vadd.f32 %v4950, %v4951
      %v5015 = vpack.c.bf16 %v4952, %v4952
      %v5016 = vpack.c.bf16 %v4953, %v4953
      %v5017 = vpack.c.bf16 %v4954, %v4954
      %v5018 = vpack.c.bf16 %v4955, %v4955
      %v5019 = vpack.c.bf16 %v4956, %v4956
      %v5020 = vpack.c.bf16 %v4957, %v4957
      %v5021 = vpack.c.bf16 %v4958, %v4958
      %v5022 = vpack.c.bf16 %v4959, %v4959
      %v5023 = vpack.c.bf16 %v4960, %v4960
      %v5024 = vpack.c.bf16 %v4961, %v4961
      %v5025 = vpack.c.bf16 %v4962, %v4962
      %v5026 = vpack.c.bf16 %v4963, %v4963
      %v5027 = vpack.c.bf16 %v4964, %v4964
      %v5028 = vpack.c.bf16 %v4965, %v4965
      %v5029 = vpack.c.bf16 %v4966, %v4966
      %v5030 = vpack.c.bf16 %v4967, %v4967
      %v5031 = vpack.c.bf16 %v4968, %v4968
      %v5032 = vpack.c.bf16 %v4969, %v4969
      %v5033 = vpack.c.bf16 %v4970, %v4970
      %v5034 = vpack.c.bf16 %v4971, %v4971
      %v5035 = vpack.c.bf16 %v4972, %v4972
      %v5036 = vpack.c.bf16 %v4973, %v4973
      %v5037 = vpack.c.bf16 %v4974, %v4974
      %v5038 = vpack.c.bf16 %v4975, %v4975
      %v5039 = vpack.c.bf16 %v4976, %v4976
      %v5040 = vpack.c.bf16 %v4977, %v4977
      %v5041 = vpack.c.bf16 %v4978, %v4978
      %v5042 = vpack.c.bf16 %v4979, %v4979
      %v5043 = vpack.c.bf16 %v4980, %v4980
      %v5044 = vpack.c.bf16 %v4981, %v4981
      %v5045 = vpack.c.bf16 %v4982, %v4982
      %v5046 = vpack.c.bf16 %v4983, %v4983
      %v5047 = vpack.c.bf16 %v4984, %v4984
      %v5048 = vpack.c.bf16 %v4985, %v4985
      %v5049 = vpack.c.bf16 %v4986, %v4986
      %v5050 = vpack.c.bf16 %v4987, %v4987
      %v5051 = vpack.c.bf16 %v4988, %v4988
      %v5052 = vpack.c.bf16 %v4989, %v4989
      %v5053 = vpack.c.bf16 %v4990, %v4990
      %v5054 = vpack.c.bf16 %v4991, %v4991
      %v5055 = vpack.c.bf16 %v4992, %v4992
      %v5056 = vpack.c.bf16 %v4993, %v4993
      %v5057 = vpack.c.bf16 %v4994, %v4994
      %v5058 = vpack.c.bf16 %v4995, %v4995
      %v5059 = vpack.c.bf16 %v4996, %v4996
      %v5060 = vpack.c.bf16 %v4997, %v4997
      %v5061 = vpack.c.bf16 %v4998, %v4998
      %v5062 = vpack.c.bf16 %v4999, %v4999
      %v5063 = vpack.c.bf16 %v5000, %v5000
      %v5064 = vpack.c.bf16 %v5001, %v5001
      %v5065 = vpack.c.bf16 %v5002, %v5002
      %v5066 = vpack.c.bf16 %v5003, %v5003
      %v5067 = vpack.c.bf16 %v5004, %v5004
      %v5068 = vpack.c.bf16 %v5005, %v5005
      %v5069 = vpack.c.bf16 %v5006, %v5006
      %v5070 = vpack.c.bf16 %v5007, %v5007
      %v5071 = vpack.c.bf16 %v5008, %v5008
      %v5072 = vpack.c.bf16 %v5009, %v5009
      %v5073 = vpack.c.bf16 %v5010, %v5010
      %v5074 = vpack.c.bf16 %v5011, %v5011
      %v5075 = vpack.c.bf16 %v5012, %v5012
      %v5076 = vpack.c.bf16 %v5013, %v5013
      %v5077 = vpack.c.bf16 %v5014, %v5014
      %v5078 = vunpack.c.l.bf16 %v5015
      %v5079 = vunpack.c.l.bf16 %v5016
      %v5080 = vunpack.c.l.bf16 %v5017
      %v5081 = vunpack.c.l.bf16 %v5018
      %v5082 = vunpack.c.l.bf16 %v5019
      %v5083 = vunpack.c.l.bf16 %v5020
      %v5084 = vunpack.c.l.bf16 %v5021
      %v5085 = vunpack.c.l.bf16 %v5022
      %v5086 = vunpack.c.l.bf16 %v5023
      %v5087 = vunpack.c.l.bf16 %v5024
      %v5088 = vunpack.c.l.bf16 %v5025
      %v5089 = vunpack.c.l.bf16 %v5026
      %v5090 = vunpack.c.l.bf16 %v5027
      %v5091 = vunpack.c.l.bf16 %v5028
      %v5092 = vunpack.c.l.bf16 %v5029
      %v5093 = vunpack.c.l.bf16 %v5030
      %v5094 = vunpack.c.l.bf16 %v5031
      %v5095 = vunpack.c.l.bf16 %v5032
      %v5096 = vunpack.c.l.bf16 %v5033
      %v5097 = vunpack.c.l.bf16 %v5034
      %v5098 = vunpack.c.l.bf16 %v5035
      %v5099 = vunpack.c.l.bf16 %v5036
      %v5100 = vunpack.c.l.bf16 %v5037
      %v5101 = vunpack.c.l.bf16 %v5038
      %v5102 = vunpack.c.l.bf16 %v5039
      %v5103 = vunpack.c.l.bf16 %v5040
      %v5104 = vunpack.c.l.bf16 %v5041
      %v5105 = vunpack.c.l.bf16 %v5042
      %v5106 = vunpack.c.l.bf16 %v5043
      %v5107 = vunpack.c.l.bf16 %v5044
      %v5108 = vunpack.c.l.bf16 %v5045
      %v5109 = vunpack.c.l.bf16 %v5046
      %v5110 = vunpack.c.l.bf16 %v5047
      %v5111 = vunpack.c.l.bf16 %v5048
      %v5112 = vunpack.c.l.bf16 %v5049
      %v5113 = vunpack.c.l.bf16 %v5050
      %v5114 = vunpack.c.l.bf16 %v5051
      %v5115 = vunpack.c.l.bf16 %v5052
      %v5116 = vunpack.c.l.bf16 %v5053
      %v5117 = vunpack.c.l.bf16 %v5054
      %v5118 = vunpack.c.l.bf16 %v5055
      %v5119 = vunpack.c.l.bf16 %v5056
      %v5120 = vunpack.c.l.bf16 %v5057
      %v5121 = vunpack.c.l.bf16 %v5058
      %v5122 = vunpack.c.l.bf16 %v5059
      %v5123 = vunpack.c.l.bf16 %v5060
      %v5124 = vunpack.c.l.bf16 %v5061
      %v5125 = vunpack.c.l.bf16 %v5062
      %v5126 = vunpack.c.l.bf16 %v5063
      %v5127 = vunpack.c.l.bf16 %v5064
      %v5128 = vunpack.c.l.bf16 %v5065
      %v5129 = vunpack.c.l.bf16 %v5066
      %v5130 = vunpack.c.l.bf16 %v5067
      %v5131 = vunpack.c.l.bf16 %v5068
      %v5132 = vunpack.c.l.bf16 %v5069
      %v5133 = vunpack.c.l.bf16 %v5070
      %v5134 = vunpack.c.l.bf16 %v5071
      %v5135 = vunpack.c.l.bf16 %v5072
      %v5136 = vunpack.c.l.bf16 %v5073
      %v5137 = vunpack.c.l.bf16 %v5074
      %v5138 = vunpack.c.l.bf16 %v5075
      %v5139 = vunpack.c.l.bf16 %v5076
      %v5140 = vunpack.c.l.bf16 %v5077
      %v5141 = vmax.f32 %v5078, 0.0
      %v5142 = vmax.f32 %v5079, 0.0
      %v5143 = vmax.f32 %v5080, 0.0
      %v5144 = vmax.f32 %v5081, 0.0
      %v5145 = vmax.f32 %v5082, 0.0
      %v5146 = vmax.f32 %v5083, 0.0
      %v5147 = vmax.f32 %v5084, 0.0
      %v5148 = vmax.f32 %v5085, 0.0
      %v5149 = vmax.f32 %v5086, 0.0
      %v5150 = vmax.f32 %v5087, 0.0
      %v5151 = vmax.f32 %v5088, 0.0
      %v5152 = vmax.f32 %v5089, 0.0
      %v5153 = vmax.f32 %v5090, 0.0
      %v5154 = vmax.f32 %v5091, 0.0
      %v5155 = vmax.f32 %v5092, 0.0
      %v5156 = vmax.f32 %v5093, 0.0
      %v5157 = vmax.f32 %v5094, 0.0
      %v5158 = vmax.f32 %v5095, 0.0
      %v5159 = vmax.f32 %v5096, 0.0
      %v5160 = vmax.f32 %v5097, 0.0
      %v5161 = vmax.f32 %v5098, 0.0
      %v5162 = vmax.f32 %v5099, 0.0
      %v5163 = vmax.f32 %v5100, 0.0
      %v5164 = vmax.f32 %v5101, 0.0
      %v5165 = vmax.f32 %v5102, 0.0
      %v5166 = vmax.f32 %v5103, 0.0
      %v5167 = vmax.f32 %v5104, 0.0
      %v5168 = vmax.f32 %v5105, 0.0
      %v5169 = vmax.f32 %v5106, 0.0
      %v5170 = vmax.f32 %v5107, 0.0
      %v5171 = vmax.f32 %v5108, 0.0
      %v5172 = vmax.f32 %v5109, 0.0
      %v5173 = vmax.f32 %v5110, 0.0
      %v5174 = vmax.f32 %v5111, 0.0
      %v5175 = vmax.f32 %v5112, 0.0
      %v5176 = vmax.f32 %v5113, 0.0
      %v5177 = vmax.f32 %v5114, 0.0
      %v5178 = vmax.f32 %v5115, 0.0
      %v5179 = vmax.f32 %v5116, 0.0
      %v5180 = vmax.f32 %v5117, 0.0
      %v5181 = vmax.f32 %v5118, 0.0
      %v5182 = vmax.f32 %v5119, 0.0
      %v5183 = vmax.f32 %v5120, 0.0
      %v5184 = vmax.f32 %v5121, 0.0
      %v5185 = vmax.f32 %v5122, 0.0
      %v5186 = vmax.f32 %v5123, 0.0
      %v5187 = vmax.f32 %v5124, 0.0
      %v5188 = vmax.f32 %v5125, 0.0
      %v5189 = vmax.f32 %v5126, 0.0
      %v5190 = vmax.f32 %v5127, 0.0
      %v5191 = vmax.f32 %v5128, 0.0
      %v5192 = vmax.f32 %v5129, 0.0
      %v5193 = vmax.f32 %v5130, 0.0
      %v5194 = vmax.f32 %v5131, 0.0
      %v5195 = vmax.f32 %v5132, 0.0
      %v5196 = vmax.f32 %v5133, 0.0
      %v5197 = vmax.f32 %v5134, 0.0
      %v5198 = vmax.f32 %v5135, 0.0
      %v5199 = vmax.f32 %v5136, 0.0
      %v5200 = vmax.f32 %v5137, 0.0
      %v5201 = vmax.f32 %v5138, 0.0
      %v5202 = vmax.f32 %v5139, 0.0
      %v5203 = vmax.f32 %v5140, 0.0
      %v5204 = vpack.c.bf16 %v5142, %v5141
      %v5205 = vpack.c.bf16 %v5144, %v5143
      %v5206 = vpack.c.bf16 %v5146, %v5145
      %v5207 = vpack.c.bf16 %v5148, %v5147
      %v5208 = vpack.c.bf16 %v5150, %v5149
      %v5209 = vpack.c.bf16 %v5152, %v5151
      %v5210 = vpack.c.bf16 %v5154, %v5153
      %v5211 = vpack.c.bf16 %v5156, %v5155
      %v5212 = vpack.c.bf16 %v5158, %v5157
      %v5213 = vpack.c.bf16 %v5160, %v5159
      %v5214 = vpack.c.bf16 %v5162, %v5161
      %v5215 = vpack.c.bf16 %v5164, %v5163
      %v5216 = vpack.c.bf16 %v5166, %v5165
      %v5217 = vpack.c.bf16 %v5168, %v5167
      %v5218 = vpack.c.bf16 %v5170, %v5169
      %v5219 = vpack.c.bf16 %v5172, %v5171
      %v5220 = vpack.c.bf16 %v5174, %v5173
      %v5221 = vpack.c.bf16 %v5176, %v5175
      %v5222 = vpack.c.bf16 %v5178, %v5177
      %v5223 = vpack.c.bf16 %v5180, %v5179
      %v5224 = vpack.c.bf16 %v5182, %v5181
      %v5225 = vpack.c.bf16 %v5184, %v5183
      %v5226 = vpack.c.bf16 %v5186, %v5185
      %v5227 = vpack.c.bf16 %v5188, %v5187
      %v5228 = vpack.c.bf16 %v5190, %v5189
      %v5229 = vpack.c.bf16 %v5192, %v5191
      %v5230 = vpack.c.bf16 %v5194, %v5193
      %v5231 = vpack.c.bf16 %v5196, %v5195
      %v5232 = vpack.c.bf16 %v5198, %v5197
      %v5233 = vpack.c.bf16 %v5200, %v5199
      %v5234 = vpack.c.bf16 %v5202, %v5201
      %v5235 = vpack.c.bf16 %v5203, %v5203
      %v5236 = vld [vmem:[%s9] sm:$0xf]
      %v5237 = vld [vmem:[%s9 + $0x4] sm:$0xf]
      %v5238 = vld [vmem:[%s9 + $0x8] sm:$0xf]
      %v5239 = vld [vmem:[%s9 + $0xc] sm:$0xf]
      %v5240 = vld [vmem:[%s9 + $0x10] sm:$0xf]
      %v5241 = vld [vmem:[%s9 + $0x14] sm:$0xf]
      %v5242 = vld [vmem:[%s9 + $0x18] sm:$0xf]
      %v5243 = vld [vmem:[%s9 + $0x1c] sm:$0xf]
      %v5244 = vld [vmem:[%s9 + $0x20] sm:$0xf]
      %v5245 = vld [vmem:[%s9 + $0x24] sm:$0xf]
      %v5246 = vld [vmem:[%s9 + $0x28] sm:$0xf]
      %v5247 = vld [vmem:[%s9 + $0x2c] sm:$0xf]
      %v5248 = vld [vmem:[%s9 + $0x30] sm:$0xf]
      %v5249 = vld [vmem:[%s9 + $0x34] sm:$0xf]
      %v5250 = vld [vmem:[%s9 + $0x38] sm:$0xf]
      %v5251 = vld [vmem:[%s9 + $0x3c] sm:$0xf]
      %v5268 = vunpack.c.l.b16 %v5236
      %v5269 = vunpack.c.l.b16 %v5237
      %v5270 = vunpack.c.l.b16 %v5238
      %v5271 = vunpack.c.l.b16 %v5239
      %v5272 = vunpack.c.l.b16 %v5240
      %v5273 = vunpack.c.l.b16 %v5241
      %v5274 = vunpack.c.l.b16 %v5242
      %v5275 = vunpack.c.l.b16 %v5243
      %v5276 = vunpack.c.l.b16 %v5244
      %v5277 = vunpack.c.l.b16 %v5245
      %v5278 = vunpack.c.l.b16 %v5246
      %v5279 = vunpack.c.l.b16 %v5247
      %v5280 = vunpack.c.l.b16 %v5248
      %v5281 = vunpack.c.l.b16 %v5249
      %v5282 = vunpack.c.l.b16 %v5250
      %v5283 = vunpack.c.l.b16 %v5251
      %v5284 = vpack.c.b16 %v5269, %v5268
      %v5285 = vpack.c.b16 %v5271, %v5270
      %v5286 = vpack.c.b16 %v5273, %v5272
      %v5287 = vpack.c.b16 %v5275, %v5274
      %v5288 = vpack.c.b16 %v5277, %v5276
      %v5289 = vpack.c.b16 %v5279, %v5278
      %v5290 = vpack.c.b16 %v5281, %v5280
      %v5291 = vpack.c.b16 %v5283, %v5282
      %5300 = vmatpush.bf16.msra.mxu0 %v5291
      %5301 = vmatpush.bf16.msra.mxu0 %v5290
      %5302 = vmatpush.bf16.msra.mxu0 %v5289
      %5303 = vmatpush.bf16.msra.mxu0 %v5288
      %5304 = vmatpush.bf16.msra.mxu0 %v5287
      %5305 = vmatpush.bf16.msra.mxu0 %v5286
      %5306 = vmatpush.bf16.msra.mxu0 %v5285
      %5307 = vmatpush.bf16.msra.mxu0 %v5284
      %5308 = vmatmul.bf16.gmra.mxu0 %v5204
      %v5309 = vpop.f32.mrf.mxu0
      %v5310 = vadd.f32 %v4154, %v5309
      %v5311 = vpop.f32.mrf.mxu0
      %v5312 = vadd.f32 %v4156, %v5311
      %5313 = vmatmul.bf16.gmra.mxu0 %v5205
      %v5314 = vpop.f32.mrf.mxu0
      %v5315 = vadd.f32 %v4159, %v5314
      %v5316 = vpop.f32.mrf.mxu0
      %v5317 = vadd.f32 %v4161, %v5316
      %5318 = vmatmul.bf16.gmra.mxu0 %v5206
      %v5319 = vpop.f32.mrf.mxu0
      %v5320 = vadd.f32 %v4164, %v5319
      %v5321 = vpop.f32.mrf.mxu0
      %v5322 = vadd.f32 %v4166, %v5321
      %5323 = vmatmul.bf16.gmra.mxu0 %v5207
      %v5324 = vpop.f32.mrf.mxu0
      %v5325 = vadd.f32 %v4169, %v5324
      %v5326 = vpop.f32.mrf.mxu0
      %v5327 = vadd.f32 %v4171, %v5326
      %5328 = vmatmul.bf16.gmra.mxu0 %v5208
      %v5329 = vpop.f32.mrf.mxu0
      %v5330 = vadd.f32 %v4174, %v5329
      %v5331 = vpop.f32.mrf.mxu0
      %v5332 = vadd.f32 %v4176, %v5331
      %5333 = vmatmul.bf16.gmra.mxu0 %v5209
      %v5334 = vpop.f32.mrf.mxu0
      %v5335 = vadd.f32 %v4179, %v5334
      %v5336 = vpop.f32.mrf.mxu0
      %v5337 = vadd.f32 %v4181, %v5336
      %5338 = vmatmul.bf16.gmra.mxu0 %v5210
      %v5339 = vpop.f32.mrf.mxu0
      %v5340 = vadd.f32 %v4184, %v5339
      %v5341 = vpop.f32.mrf.mxu0
      %v5342 = vadd.f32 %v4186, %v5341
      %5343 = vmatmul.bf16.gmra.mxu0 %v5211
      %v5344 = vpop.f32.mrf.mxu0
      %v5345 = vadd.f32 %v4189, %v5344
      %v5346 = vpop.f32.mrf.mxu0
      %v5347 = vadd.f32 %v4191, %v5346
      %5348 = vmatmul.bf16.gmra.mxu0 %v5212
      %v5349 = vpop.f32.mrf.mxu0
      %v5350 = vadd.f32 %v4194, %v5349
      %v5351 = vpop.f32.mrf.mxu0
      %v5352 = vadd.f32 %v4196, %v5351
      %5353 = vmatmul.bf16.gmra.mxu0 %v5213
      %v5354 = vpop.f32.mrf.mxu0
      %v5355 = vadd.f32 %v4199, %v5354
      %v5356 = vpop.f32.mrf.mxu0
      %v5357 = vadd.f32 %v4201, %v5356
      %5358 = vmatmul.bf16.gmra.mxu0 %v5214
      %v5359 = vpop.f32.mrf.mxu0
      %v5360 = vadd.f32 %v4204, %v5359
      %v5361 = vpop.f32.mrf.mxu0
      %v5362 = vadd.f32 %v4206, %v5361
      %5363 = vmatmul.bf16.gmra.mxu0 %v5215
      %v5364 = vpop.f32.mrf.mxu0
      %v5365 = vadd.f32 %v4209, %v5364
      %v5366 = vpop.f32.mrf.mxu0
      %v5367 = vadd.f32 %v4211, %v5366
      %5368 = vmatmul.bf16.gmra.mxu0 %v5216
      %v5369 = vpop.f32.mrf.mxu0
      %v5370 = vadd.f32 %v4214, %v5369
      %v5371 = vpop.f32.mrf.mxu0
      %v5372 = vadd.f32 %v4216, %v5371
      %5373 = vmatmul.bf16.gmra.mxu0 %v5217
      %v5374 = vpop.f32.mrf.mxu0
      %v5375 = vadd.f32 %v4219, %v5374
      %v5376 = vpop.f32.mrf.mxu0
      %v5377 = vadd.f32 %v4221, %v5376
      %5378 = vmatmul.bf16.gmra.mxu0 %v5218
      %v5379 = vpop.f32.mrf.mxu0
      %v5380 = vadd.f32 %v4224, %v5379
      %v5381 = vpop.f32.mrf.mxu0
      %v5382 = vadd.f32 %v4226, %v5381
      %5383 = vmatmul.bf16.gmra.mxu0 %v5219
      %v5384 = vpop.f32.mrf.mxu0
      %v5385 = vadd.f32 %v4229, %v5384
      %v5386 = vpop.f32.mrf.mxu0
      %v5387 = vadd.f32 %v4231, %v5386
      %5388 = vmatmul.bf16.gmra.mxu0 %v5220
      %v5389 = vpop.f32.mrf.mxu0
      %v5390 = vadd.f32 %v4234, %v5389
      %v5391 = vpop.f32.mrf.mxu0
      %v5392 = vadd.f32 %v4236, %v5391
      %5393 = vmatmul.bf16.gmra.mxu0 %v5221
      %v5394 = vpop.f32.mrf.mxu0
      %v5395 = vadd.f32 %v4239, %v5394
      %v5396 = vpop.f32.mrf.mxu0
      %v5397 = vadd.f32 %v4241, %v5396
      %5398 = vmatmul.bf16.gmra.mxu0 %v5222
      %v5399 = vpop.f32.mrf.mxu0
      %v5400 = vadd.f32 %v4244, %v5399
      %v5401 = vpop.f32.mrf.mxu0
      %v5402 = vadd.f32 %v4246, %v5401
      %5403 = vmatmul.bf16.gmra.mxu0 %v5223
      %v5404 = vpop.f32.mrf.mxu0
      %v5405 = vadd.f32 %v4249, %v5404
      %v5406 = vpop.f32.mrf.mxu0
      %v5407 = vadd.f32 %v4251, %v5406
      %5408 = vmatmul.bf16.gmra.mxu0 %v5224
      %v5409 = vpop.f32.mrf.mxu0
      %v5410 = vadd.f32 %v4254, %v5409
      %v5411 = vpop.f32.mrf.mxu0
      %v5412 = vadd.f32 %v4256, %v5411
      %5413 = vmatmul.bf16.gmra.mxu0 %v5225
      %v5414 = vpop.f32.mrf.mxu0
      %v5415 = vadd.f32 %v4259, %v5414
      %v5416 = vpop.f32.mrf.mxu0
      %v5417 = vadd.f32 %v4261, %v5416
      %5418 = vmatmul.bf16.gmra.mxu0 %v5226
      %v5419 = vpop.f32.mrf.mxu0
      %v5420 = vadd.f32 %v4264, %v5419
      %v5421 = vpop.f32.mrf.mxu0
      %v5422 = vadd.f32 %v4266, %v5421
      %5423 = vmatmul.bf16.gmra.mxu0 %v5227
      %v5424 = vpop.f32.mrf.mxu0
      %v5425 = vadd.f32 %v4269, %v5424
      %v5426 = vpop.f32.mrf.mxu0
      %v5427 = vadd.f32 %v4271, %v5426
      %5428 = vmatmul.bf16.gmra.mxu0 %v5228
      %v5429 = vpop.f32.mrf.mxu0
      %v5430 = vadd.f32 %v4274, %v5429
      %v5431 = vpop.f32.mrf.mxu0
      %v5432 = vadd.f32 %v4276, %v5431
      %5433 = vmatmul.bf16.gmra.mxu0 %v5229
      %v5434 = vpop.f32.mrf.mxu0
      %v5435 = vadd.f32 %v4279, %v5434
      %v5436 = vpop.f32.mrf.mxu0
      %v5437 = vadd.f32 %v4281, %v5436
      %5438 = vmatmul.bf16.gmra.mxu0 %v5230
      %v5439 = vpop.f32.mrf.mxu0
      %v5440 = vadd.f32 %v4284, %v5439
      %v5441 = vpop.f32.mrf.mxu0
      %v5442 = vadd.f32 %v4286, %v5441
      %5443 = vmatmul.bf16.gmra.mxu0 %v5231
      %v5444 = vpop.f32.mrf.mxu0
      %v5445 = vadd.f32 %v4289, %v5444
      %v5446 = vpop.f32.mrf.mxu0
      %v5447 = vadd.f32 %v4291, %v5446
      %5448 = vmatmul.bf16.gmra.mxu0 %v5232
      %v5449 = vpop.f32.mrf.mxu0
      %v5450 = vadd.f32 %v4294, %v5449
      %v5451 = vpop.f32.mrf.mxu0
      %v5452 = vadd.f32 %v4296, %v5451
      %5453 = vmatmul.bf16.gmra.mxu0 %v5233
      %v5454 = vpop.f32.mrf.mxu0
      %v5455 = vadd.f32 %v4299, %v5454
      %v5456 = vpop.f32.mrf.mxu0
      %v5457 = vadd.f32 %v4301, %v5456
      %5458 = vmatmul.bf16.gmra.mxu0 %v5234
      %v5459 = vpop.f32.mrf.mxu0
      %v5460 = vadd.f32 %v4304, %v5459
      %v5461 = vpop.f32.mrf.mxu0
      %v5462 = vadd.f32 %v4306, %v5461
      %5463 = vmatmul.bf16.gmra.mxu0 %v5235
      %v5464 = vpop.f32.mrf.mxu0
      %v5465 = vadd.f32 %v4309, %v5464
      %v5466 = vpop.f32.mrf.mxu0
      %5467 = vdwg.mxu0
      %v5468 = vld [vmem:[%s10] sm:$0x1]
      %v5470 = vperm.slane %v5468, 0
      %v5472 = vadd.f32 %v5310, %v5470
      %v5473 = vadd.f32 %v5312, %v5470
      %v5474 = vadd.f32 %v5315, %v5470
      %v5475 = vadd.f32 %v5317, %v5470
      %v5476 = vadd.f32 %v5320, %v5470
      %v5477 = vadd.f32 %v5322, %v5470
      %v5478 = vadd.f32 %v5325, %v5470
      %v5479 = vadd.f32 %v5327, %v5470
      %v5480 = vadd.f32 %v5330, %v5470
      %v5481 = vadd.f32 %v5332, %v5470
      %v5482 = vadd.f32 %v5335, %v5470
      %v5483 = vadd.f32 %v5337, %v5470
      %v5484 = vadd.f32 %v5340, %v5470
      %v5485 = vadd.f32 %v5342, %v5470
      %v5486 = vadd.f32 %v5345, %v5470
      %v5487 = vadd.f32 %v5347, %v5470
      %v5488 = vadd.f32 %v5350, %v5470
      %v5489 = vadd.f32 %v5352, %v5470
      %v5490 = vadd.f32 %v5355, %v5470
      %v5491 = vadd.f32 %v5357, %v5470
      %v5492 = vadd.f32 %v5360, %v5470
      %v5493 = vadd.f32 %v5362, %v5470
      %v5494 = vadd.f32 %v5365, %v5470
      %v5495 = vadd.f32 %v5367, %v5470
      %v5496 = vadd.f32 %v5370, %v5470
      %v5497 = vadd.f32 %v5372, %v5470
      %v5498 = vadd.f32 %v5375, %v5470
      %v5499 = vadd.f32 %v5377, %v5470
      %v5500 = vadd.f32 %v5380, %v5470
      %v5501 = vadd.f32 %v5382, %v5470
      %v5502 = vadd.f32 %v5385, %v5470
      %v5503 = vadd.f32 %v5387, %v5470
      %v5504 = vadd.f32 %v5390, %v5470
      %v5505 = vadd.f32 %v5392, %v5470
      %v5506 = vadd.f32 %v5395, %v5470
      %v5507 = vadd.f32 %v5397, %v5470
      %v5508 = vadd.f32 %v5400, %v5470
      %v5509 = vadd.f32 %v5402, %v5470
      %v5510 = vadd.f32 %v5405, %v5470
      %v5511 = vadd.f32 %v5407, %v5470
      %v5512 = vadd.f32 %v5410, %v5470
      %v5513 = vadd.f32 %v5412, %v5470
      %v5514 = vadd.f32 %v5415, %v5470
      %v5515 = vadd.f32 %v5417, %v5470
      %v5516 = vadd.f32 %v5420, %v5470
      %v5517 = vadd.f32 %v5422, %v5470
      %v5518 = vadd.f32 %v5425, %v5470
      %v5519 = vadd.f32 %v5427, %v5470
      %v5520 = vadd.f32 %v5430, %v5470
      %v5521 = vadd.f32 %v5432, %v5470
      %v5522 = vadd.f32 %v5435, %v5470
      %v5523 = vadd.f32 %v5437, %v5470
      %v5524 = vadd.f32 %v5440, %v5470
      %v5525 = vadd.f32 %v5442, %v5470
      %v5526 = vadd.f32 %v5445, %v5470
      %v5527 = vadd.f32 %v5447, %v5470
      %v5528 = vadd.f32 %v5450, %v5470
      %v5529 = vadd.f32 %v5452, %v5470
      %v5530 = vadd.f32 %v5455, %v5470
      %v5531 = vadd.f32 %v5457, %v5470
      %v5532 = vadd.f32 %v5460, %v5470
      %v5533 = vadd.f32 %v5462, %v5470
      %v5534 = vadd.f32 %v5465, %v5470
      %vm5535 = vcmask 31744
      %5536 = vst.msk [vmem:[%s410] sm:$0xff] %vm5535, %v5472
      %5537 = vst.msk [vmem:[%s410 + $0x8] sm:$0xff] %vm5535, %v5473
      %5538 = vst.msk [vmem:[%s410 + $0x10] sm:$0xff] %vm5535, %v5474
      %5539 = vst.msk [vmem:[%s410 + $0x18] sm:$0xff] %vm5535, %v5475
      %5540 = vst.msk [vmem:[%s410 + $0x20] sm:$0xff] %vm5535, %v5476
      %5541 = vst.msk [vmem:[%s410 + $0x28] sm:$0xff] %vm5535, %v5477
      %5542 = vst.msk [vmem:[%s410 + $0x30] sm:$0xff] %vm5535, %v5478
      %5543 = vst.msk [vmem:[%s410 + $0x38] sm:$0xff] %vm5535, %v5479
      %5544 = vst.msk [vmem:[%s410 + $0x40] sm:$0xff] %vm5535, %v5480
      %5545 = vst.msk [vmem:[%s410 + $0x48] sm:$0xff] %vm5535, %v5481
      %5546 = vst.msk [vmem:[%s410 + $0x50] sm:$0xff] %vm5535, %v5482
      %5547 = vst.msk [vmem:[%s410 + $0x58] sm:$0xff] %vm5535, %v5483
      %5548 = vst.msk [vmem:[%s410 + $0x60] sm:$0xff] %vm5535, %v5484
      %5549 = vst.msk [vmem:[%s410 + $0x68] sm:$0xff] %vm5535, %v5485
      %5550 = vst.msk [vmem:[%s410 + $0x70] sm:$0xff] %vm5535, %v5486
      %5551 = vst.msk [vmem:[%s410 + $0x78] sm:$0xff] %vm5535, %v5487
      %5552 = vst.msk [vmem:[%s410 + $0x80] sm:$0xff] %vm5535, %v5488
      %5553 = vst.msk [vmem:[%s410 + $0x88] sm:$0xff] %vm5535, %v5489
      %5554 = vst.msk [vmem:[%s410 + $0x90] sm:$0xff] %vm5535, %v5490
      %5555 = vst.msk [vmem:[%s410 + $0x98] sm:$0xff] %vm5535, %v5491
      %5556 = vst.msk [vmem:[%s410 + $0xa0] sm:$0xff] %vm5535, %v5492
      %5557 = vst.msk [vmem:[%s410 + $0xa8] sm:$0xff] %vm5535, %v5493
      %5558 = vst.msk [vmem:[%s410 + $0xb0] sm:$0xff] %vm5535, %v5494
      %5559 = vst.msk [vmem:[%s410 + $0xb8] sm:$0xff] %vm5535, %v5495
      %5560 = vst.msk [vmem:[%s410 + $0xc0] sm:$0xff] %vm5535, %v5496
      %5561 = vst.msk [vmem:[%s410 + $0xc8] sm:$0xff] %vm5535, %v5497
      %5562 = vst.msk [vmem:[%s410 + $0xd0] sm:$0xff] %vm5535, %v5498
      %5563 = vst.msk [vmem:[%s410 + $0xd8] sm:$0xff] %vm5535, %v5499
      %5564 = vst.msk [vmem:[%s410 + $0xe0] sm:$0xff] %vm5535, %v5500
      %5565 = vst.msk [vmem:[%s410 + $0xe8] sm:$0xff] %vm5535, %v5501
      %5566 = vst.msk [vmem:[%s410 + $0xf0] sm:$0xff] %vm5535, %v5502
      %5567 = vst.msk [vmem:[%s410 + $0xf8] sm:$0xff] %vm5535, %v5503
      %5568 = vst.msk [vmem:[%s410 + $0x100] sm:$0xff] %vm5535, %v5504
      %5569 = vst.msk [vmem:[%s410 + $0x108] sm:$0xff] %vm5535, %v5505
      %5570 = vst.msk [vmem:[%s410 + $0x110] sm:$0xff] %vm5535, %v5506
      %5571 = vst.msk [vmem:[%s410 + $0x118] sm:$0xff] %vm5535, %v5507
      %5572 = vst.msk [vmem:[%s410 + $0x120] sm:$0xff] %vm5535, %v5508
      %5573 = vst.msk [vmem:[%s410 + $0x128] sm:$0xff] %vm5535, %v5509
      %5574 = vst.msk [vmem:[%s410 + $0x130] sm:$0xff] %vm5535, %v5510
      %5575 = vst.msk [vmem:[%s410 + $0x138] sm:$0xff] %vm5535, %v5511
      %5576 = vst.msk [vmem:[%s410 + $0x140] sm:$0xff] %vm5535, %v5512
      %5577 = vst.msk [vmem:[%s410 + $0x148] sm:$0xff] %vm5535, %v5513
      %5578 = vst.msk [vmem:[%s410 + $0x150] sm:$0xff] %vm5535, %v5514
      %5579 = vst.msk [vmem:[%s410 + $0x158] sm:$0xff] %vm5535, %v5515
      %5580 = vst.msk [vmem:[%s410 + $0x160] sm:$0xff] %vm5535, %v5516
      %5581 = vst.msk [vmem:[%s410 + $0x168] sm:$0xff] %vm5535, %v5517
      %5582 = vst.msk [vmem:[%s410 + $0x170] sm:$0xff] %vm5535, %v5518
      %5583 = vst.msk [vmem:[%s410 + $0x178] sm:$0xff] %vm5535, %v5519
      %5584 = vst.msk [vmem:[%s410 + $0x180] sm:$0xff] %vm5535, %v5520
      %5585 = vst.msk [vmem:[%s410 + $0x188] sm:$0xff] %vm5535, %v5521
      %5586 = vst.msk [vmem:[%s410 + $0x190] sm:$0xff] %vm5535, %v5522
      %5587 = vst.msk [vmem:[%s410 + $0x198] sm:$0xff] %vm5535, %v5523
      %5588 = vst.msk [vmem:[%s410 + $0x1a0] sm:$0xff] %vm5535, %v5524
      %5589 = vst.msk [vmem:[%s410 + $0x1a8] sm:$0xff] %vm5535, %v5525
      %5590 = vst.msk [vmem:[%s410 + $0x1b0] sm:$0xff] %vm5535, %v5526
      %5591 = vst.msk [vmem:[%s410 + $0x1b8] sm:$0xff] %vm5535, %v5527
      %5592 = vst.msk [vmem:[%s410 + $0x1c0] sm:$0xff] %vm5535, %v5528
      %5593 = vst.msk [vmem:[%s410 + $0x1c8] sm:$0xff] %vm5535, %v5529
      %5594 = vst.msk [vmem:[%s410 + $0x1d0] sm:$0xff] %vm5535, %v5530
      %5595 = vst.msk [vmem:[%s410 + $0x1d8] sm:$0xff] %vm5535, %v5531
      %5596 = vst.msk [vmem:[%s410 + $0x1e0] sm:$0xff] %vm5535, %v5532
      %5597 = vst.msk [vmem:[%s410 + $0x1e8] sm:$0xff] %vm5535, %v5533
      %5598 = vst.msk [vmem:[%s410 + $0x1f0] sm:$0xff] %vm5535, %v5534
      %s5599 = smul.u32 63, %s22
      %p5600 = scmp.lt.s32.totalorder %s5599, 125
      %s5601 = scalar_select %p5600, %s5599, 125
      %s5602 = smul.addr %s5601, 8
      %s5603 = scalar_lea.vmem %s11, %s5602
      // Predicated region
      $region65: #{tpu_custom_call.1} parent=63 // pred_check
        %p5604 = pneg %p281
      $region66: #{tpu_custom_call.1} parent=63 // pred_check_branch
        %5606 = sbr.rel (%p5604) target = $region68
      $region67: #{tpu_custom_call.1} parent=63 // pred_region
        %s5607 = smul.u32 63, %s22
      $region68: #{tpu_custom_call.1} parent=63 // pred_fallthru
        _
    $region64: #{tpu_custom_call.1} parent=5 // pred_fallthru
      _
    %p5608 = scmp.le.s32.totalorder 2, %s17
    // Predicated region
    $region69: #{tpu_custom_call.1} parent=5 // pred_check
      %p5609 = pneg %p5608
    $region70: #{tpu_custom_call.1} parent=5 // pred_check_branch
      %5611 = sbr.rel (%p5609) target = $region72
    $region71: #{tpu_custom_call.1} parent=5 // pred_region
      %s5612 = ssub.s32 %s17, 2
      // Predicated region
      $region73: #{tpu_custom_call.1} parent=71 // pred_check
        %p5613 = pneg %p287
      $region74: #{tpu_custom_call.1} parent=71 // pred_check_branch
        %5615 = sbr.rel (%p5613) target = $region76
      $region75: #{tpu_custom_call.1} parent=71 // pred_region
        %s5616 = smul.u32 63, %s23
        %p5617 = scmp.lt.s32.totalorder %s5616, 125
        %s5618 = scalar_select %p5617, %s5616, 125
        %s5619 = smul.addr %s5618, 8
        %s5620 = scalar_lea.vmem %s11, %s5619
      $region76: #{tpu_custom_call.1} parent=71 // pred_fallthru
        _
    $region72: #{tpu_custom_call.1} parent=5 // pred_fallthru
      _
  $region6: #{tpu_custom_call.1} parent=0 // loop_footer
    %s21 = sadd.s32 1, %s17
  $region7: #{tpu_custom_call.1} parent=0 // loop_footer_branch
    %16 = sbr.rel target = $region3
  $region8: #{tpu_custom_call.1} parent=0 // loop_exit
    _

</llo_original>
